<compile_context>
chip_gen: v6e
topology: v6e:2x2x1
jax: 0.10.0
libtpu: 0.0.40
codegen_flags: <defaults>
</compile_context>

<pallas_src>
import jax
import jax.numpy as jnp
import numpy as np
from jax import lax
from jax.experimental import pallas as pl
from jax.experimental.pallas import tpu as pltpu


def _decoder_kernel(z_ref, w1_ref, wih_ref, whh_ref, gbias_ref, bn_ref,
                    w3t_ref, b3_ref, out_ref):
    B = z_ref.shape[0]
    H = w1_ref.shape[1]
    T = out_ref.shape[1]

    # ---- fc1 (bias folded into the augmented ones column of z) + LeakyReLU(0.01) ----
    x = jnp.dot(z_ref[...], w1_ref[...], preferred_element_type=jnp.float32)   # (B, H)
    x = jnp.where(x >= 0.0, x, 0.01 * x)

    # ---- time-invariant input halves of all three gates: ONE (B, 3H) matmul ----
    gbias = gbias_ref[...]                                   # (2, 3H)
    gi = jnp.dot(x, wih_ref[...],
                 preferred_element_type=jnp.float32) + gbias[0:1, :]            # (B, 3H)
    bias_hn = gbias[1:2, :]                                  # zeros | zeros | b_hn

    whh = whh_ref[...]                                       # (H, 3H) fused r|z|n RHS
    w3t = w3t_ref[...]                                       # (H, O_pad)
    b3 = b3_ref[...]                                         # (1, O_pad)

    # ---- GRU recurrence, statically unrolled (T is a compile-time constant) ----
    h = jnp.zeros((B, H), jnp.float32)
    for t in range(T):
        gh = jnp.dot(h, whh, preferred_element_type=jnp.float32) + bias_hn      # (B, 3H)
        rz = jax.nn.sigmoid(gi[:, :2 * H] + gh[:, :2 * H])    # one EUP pass for r|z
        r, zt = rz[:, :H], rz[:, H:]
        n = jnp.tanh(gi[:, 2 * H:] + r * gh[:, 2 * H:])
        h = n + zt * (h - n)                                  # = (1 - zt) * n + zt * h

        # BatchNorm1d(seq_len): channel = t, train-mode biased stats over (B, H);
        # gamma folded into the rsqrt scale, beta into the shift.  fc3 + ReLU and
        # the lane-dense store are fused here; none of it feeds the recurrence, so
        # it overlaps with later steps.
        mean = jnp.mean(h, keepdims=True)                     # (1, 1)
        var = jnp.mean((h - mean) ** 2, keepdims=True)        # biased variance
        scale = lax.rsqrt(var + 1e-5) * bn_ref[0, t]          # gamma_t from SMEM
        shift = bn_ref[1, t] - mean * scale                   # beta_t from SMEM
        o = jnp.dot(h * scale + shift, w3t,
                    preferred_element_type=jnp.float32) + b3                    # (B, O_pad)
        out_ref[:, t, :] = jnp.maximum(o, 0.0)


def timeseries_decoder_forward(z, params, *, seq_len):
    """z: (B, latent_dim) float32 -> (B, seq_len, output_size) float32."""
    B, L = z.shape
    H = params["fc1_w"].shape[0]
    O = params["fc3_w"].shape[0]
    T = seq_len
    O_pad = ((O + 127) // 128) * 128          # lane-dense output width
    f32 = jnp.float32

    # fc1 with its bias folded in via an augmented ones column on z
    z_aug = jnp.concatenate([z.astype(f32), jnp.ones((B, 1), f32)], axis=1)      # (B, L+1)
    w1_aug = jnp.concatenate(
        [params["fc1_w"].astype(f32).T,
         params["fc1_b"].astype(f32).reshape(1, H)], axis=0)                     # (L+1, H)

    w_ih = params["w_ih"].astype(f32)         # (3H, H), gate order r, z, n
    w_hh = params["w_hh"].astype(f32)
    b_ih = params["b_ih"].astype(f32)
    b_hh = params["b_hh"].astype(f32)

    wih_t = w_ih.T                            # (H, 3H) fused input-gate RHS
    whh_t = w_hh.T                            # (H, 3H) fused recurrent RHS

    # gate biases packed into one (2, 3H) array:
    #   row 0 = [b_ir+b_hr | b_iz+b_hz | b_in]   (added to the input-gate precompute)
    #   row 1 = [   0      |    0      | b_hn]   (added to the recurrent matmul)
    bias_i = jnp.concatenate([b_ih[:H] + b_hh[:H],
                              b_ih[H:2 * H] + b_hh[H:2 * H],
                              b_ih[2 * H:]]).reshape(1, 3 * H)
    bias_hn = jnp.concatenate([jnp.zeros((2 * H,), f32),
                               b_hh[2 * H:]]).reshape(1, 3 * H)
    gate_bias = jnp.concatenate([bias_i, bias_hn], axis=0)                       # (2, 3H)

    # BN affine as per-time-step SMEM scalars: row 0 gamma, row 1 beta.
    bn_params = jnp.stack([params["bn_w"].astype(f32),
                           params["bn_b"].astype(f32)], axis=0)                  # (2, T)

    # fc3 padded to a lane-dense width; padded columns have zero weight/bias and are
    # sliced off below, so nothing leaks into the result.
    w3t = jnp.zeros((H, O_pad), f32).at[:, :O].set(params["fc3_w"].astype(f32).T)
    b3 = jnp.zeros((1, O_pad), f32).at[:, :O].set(
        params["fc3_b"].astype(f32).reshape(1, O))

    inputs = (z_aug, w1_aug, wih_t, whh_t, gate_bias, bn_params, w3t, b3)

    vmem = pl.BlockSpec(memory_space=pltpu.MemorySpace.VMEM)
    smem = pl.BlockSpec(memory_space=pltpu.MemorySpace.SMEM)
    in_specs = [vmem, vmem, vmem, vmem, vmem, smem, vmem, vmem]

    flops = int(2 * B * (L + 1) * H            # fc1
                + 2 * B * H * 3 * H            # input-gate precompute
                + T * (2 * B * H * 3 * H       # fused recurrence matmul
                       + 2 * B * H * O_pad))   # per-step fc3
    transcendentals = int(T * B * 3 * H)
    bytes_accessed = int(sum(int(np.prod(a.shape)) for a in inputs) * 4
                         + B * T * O_pad * 4)

    out = pl.pallas_call(
        _decoder_kernel,
        out_shape=jax.ShapeDtypeStruct((B, T, O_pad), f32),
        in_specs=in_specs,
        out_specs=vmem,
        compiler_params=pltpu.CompilerParams(vmem_limit_bytes=32 * 1024 * 1024),
        cost_estimate=pl.CostEstimate(flops=flops,
                                      transcendentals=transcendentals,
                                      bytes_accessed=bytes_accessed),
    )(*inputs)

    # batch-major already; just drop the zero-padded output lanes.
    return out[:, :, :O]


def reference_forward(z, params, *, seq_len):
    """Pure-JAX replica of the PyTorch forward (training-mode BatchNorm)."""
    B, L = z.shape
    H = params["fc1_w"].shape[0]
    T = seq_len

    zrep = jnp.repeat(z[:, None, :], T, axis=1)                      # (B, T, L)
    x = zrep @ params["fc1_w"].T + params["fc1_b"]
    x = jnp.where(x >= 0.0, x, 0.01 * x)                             # LeakyReLU(0.01)

    w_ih_t, w_hh_t = params["w_ih"].T, params["w_hh"].T              # (H, 3H)
    b_ih, b_hh = params["b_ih"], params["b_hh"]

    def step(h, x_t):
        gi = x_t @ w_ih_t + b_ih
        gh = h @ w_hh_t + b_hh
        r = jax.nn.sigmoid(gi[:, :H] + gh[:, :H])
        zt = jax.nn.sigmoid(gi[:, H:2 * H] + gh[:, H:2 * H])
        n = jnp.tanh(gi[:, 2 * H:] + r * gh[:, 2 * H:])
        h = (1.0 - zt) * n + zt * h
        return h, h

    h0 = jnp.zeros((B, H), jnp.float32)
    _, hs = lax.scan(step, h0, jnp.transpose(x, (1, 0, 2)))          # (T, B, H)
    gru_out = jnp.transpose(hs, (1, 0, 2))                           # (B, T, H)

    # nn.BatchNorm1d(seq_len) on (B, T, H): channel axis = T, train-mode stats.
    mean = jnp.mean(gru_out, axis=(0, 2), keepdims=True)
    var = jnp.mean((gru_out - mean) ** 2, axis=(0, 2), keepdims=True)
    bn = (gru_out - mean) / jnp.sqrt(var + 1e-5)
    bn = bn * params["bn_w"].reshape(1, T, 1) + params["bn_b"].reshape(1, T, 1)

    out = bn @ params["fc3_w"].T + params["fc3_b"]
    return jnp.maximum(out, 0.0)                                     # final ReLU


if __name__ == "__main__":
    latent_dim, hidden_dim = 8, 16
    seq_len, output_size = 12, 200        # output_shape = (seq_len, output_size)
    B = 2

    key = jax.random.PRNGKey(0)
    keys = jax.random.split(key, 12)

    def unif(k, shape, fan_in):
        bound = 1.0 / np.sqrt(fan_in)
        return jax.random.uniform(k, shape, jnp.float32, -bound, bound)

    params = dict(
        fc1_w=unif(keys[0], (hidden_dim, latent_dim), latent_dim),
        fc1_b=unif(keys[1], (hidden_dim,), latent_dim),
        w_ih=unif(keys[2], (3 * hidden_dim, hidden_dim), hidden_dim),   # gates r, z, n
        w_hh=unif(keys[3], (3 * hidden_dim, hidden_dim), hidden_dim),
        b_ih=unif(keys[4], (3 * hidden_dim,), hidden_dim),
        b_hh=unif(keys[5], (3 * hidden_dim,), hidden_dim),
        fc3_w=unif(keys[6], (output_size, hidden_dim), hidden_dim),
        fc3_b=unif(keys[7], (output_size,), hidden_dim),
        # fresh nn.BatchNorm1d has weight=1 / bias=0; use non-trivial values so the
        # affine path is actually exercised (semantics unchanged).
        bn_w=1.0 + 0.1 * jax.random.normal(keys[8], (seq_len,), jnp.float32),
        bn_b=0.1 * jax.random.normal(keys[9], (seq_len,), jnp.float32),
    )

    z = jax.random.normal(keys[10], (B, latent_dim), jnp.float32)

    fwd = jax.jit(timeseries_decoder_forward, static_argnames=("seq_len",))
    out = jax.block_until_ready(fwd(z, params, seq_len=seq_len))
    ref = jax.block_until_ready(reference_forward(z, params, seq_len=seq_len))

    assert out.shape == (B, seq_len, output_size), out.shape
    max_err = float(np.max(np.abs(np.asarray(out) - np.asarray(ref))))
    assert np.allclose(np.asarray(out), np.asarray(ref), rtol=5e-3, atol=5e-3), max_err
    print("KERNEL_OK")
</pallas_src>

<mosaic_0001>
module attributes {stable_mosaic.version = 11 : i64} {
  func.func @_decoder_kernel(%arg0: memref<2x9xf32, #tpu.memory_space<vmem>>, %arg1: memref<9x16xf32, #tpu.memory_space<vmem>>, %arg2: memref<16x48xf32, #tpu.memory_space<vmem>>, %arg3: memref<16x48xf32, #tpu.memory_space<vmem>>, %arg4: memref<2x48xf32, #tpu.memory_space<vmem>>, %arg5: memref<2x12xf32, #tpu.memory_space<smem>>, %arg6: memref<16x256xf32, #tpu.memory_space<vmem>>, %arg7: memref<1x256xf32, #tpu.memory_space<vmem>>, %arg8: memref<2x12x256xf32, #tpu.memory_space<vmem>>) attributes {dimension_semantics = [], scalar_prefetch = 0 : i64, scratch_operands = 0 : i64, tpu.core_type = #tpu.core_type<tc>} {
    %c0 = arith.constant 0 : index
    %c0_0 = arith.constant 0 : index
    %0 = vector.load %arg0[%c0, %c0_0] : memref<2x9xf32, #tpu.memory_space<vmem>>, vector<2x9xf32>
    %c0_1 = arith.constant 0 : index
    %c0_2 = arith.constant 0 : index
    %1 = vector.load %arg1[%c0_1, %c0_2] : memref<9x16xf32, #tpu.memory_space<vmem>>, vector<9x16xf32>
    %cst = arith.constant dense<0.000000e+00> : vector<2x16xf32>
    %2 = tpu.matmul %0, %1, %cst {dimension_numbers = #tpu.dot_dimension_numbers<[1], [0], [0], [1], [0, 0, 1, 1], [], []>} : vector<2x9xf32>, vector<9x16xf32>, vector<2x16xf32> -> vector<2x16xf32>
    %cst_3 = arith.constant 0.000000e+00 : f32
    %3 = vector.broadcast %cst_3 : f32 to vector<2x16xf32>
    %4 = arith.cmpf oge, %2, %3 : vector<2x16xf32>
    %cst_4 = arith.constant 0.00999999977 : f32
    %5 = vector.broadcast %cst_4 : f32 to vector<2x16xf32>
    %6 = arith.mulf %5, %2 : vector<2x16xf32>
    %7 = arith.select %4, %2, %6 : vector<2x16xi1>, vector<2x16xf32>
    %c0_5 = arith.constant 0 : index
    %c0_6 = arith.constant 0 : index
    %8 = vector.load %arg4[%c0_5, %c0_6] : memref<2x48xf32, #tpu.memory_space<vmem>>, vector<2x48xf32>
    %c0_7 = arith.constant 0 : index
    %c0_8 = arith.constant 0 : index
    %9 = vector.load %arg2[%c0_7, %c0_8] : memref<16x48xf32, #tpu.memory_space<vmem>>, vector<16x48xf32>
    %cst_9 = arith.constant dense<0.000000e+00> : vector<2x48xf32>
    %10 = tpu.matmul %7, %9, %cst_9 {dimension_numbers = #tpu.dot_dimension_numbers<[1], [0], [0], [1], [0, 0, 1, 1], [], []>} : vector<2x16xf32>, vector<16x48xf32>, vector<2x48xf32> -> vector<2x48xf32>
    %11 = vector.extract_strided_slice %8 {offsets = [0, 0], sizes = [1, 48], strides = [1, 1]} : vector<2x48xf32> to vector<1x48xf32>
    %12 = vector.broadcast %11 : vector<1x48xf32> to vector<2x48xf32>
    %13 = arith.addf %10, %12 : vector<2x48xf32>
    %14 = vector.extract_strided_slice %8 {offsets = [1, 0], sizes = [1, 48], strides = [1, 1]} : vector<2x48xf32> to vector<1x48xf32>
    %c0_10 = arith.constant 0 : index
    %c0_11 = arith.constant 0 : index
    %15 = vector.load %arg3[%c0_10, %c0_11] : memref<16x48xf32, #tpu.memory_space<vmem>>, vector<16x48xf32>
    %c0_12 = arith.constant 0 : index
    %c0_13 = arith.constant 0 : index
    %16 = vector.load %arg6[%c0_12, %c0_13] : memref<16x256xf32, #tpu.memory_space<vmem>>, vector<16x256xf32>
    %c0_14 = arith.constant 0 : index
    %c0_15 = arith.constant 0 : index
    %17 = vector.load %arg7[%c0_14, %c0_15] : memref<1x256xf32, #tpu.memory_space<vmem>>, vector<1x256xf32>
    %cst_16 = arith.constant 0.000000e+00 : f32
    %18 = vector.broadcast %cst_16 : f32 to vector<2x16xf32>
    %cst_17 = arith.constant dense<0.000000e+00> : vector<2x48xf32>
    %19 = tpu.matmul %18, %15, %cst_17 {dimension_numbers = #tpu.dot_dimension_numbers<[1], [0], [0], [1], [0, 0, 1, 1], [], []>} : vector<2x16xf32>, vector<16x48xf32>, vector<2x48xf32> -> vector<2x48xf32>
    %20 = vector.broadcast %14 : vector<1x48xf32> to vector<2x48xf32>
    %21 = arith.addf %19, %20 : vector<2x48xf32>
    %22 = vector.extract_strided_slice %13 {offsets = [0, 0], sizes = [2, 32], strides = [1, 1]} : vector<2x48xf32> to vector<2x32xf32>
    %23 = vector.extract_strided_slice %21 {offsets = [0, 0], sizes = [2, 32], strides = [1, 1]} : vector<2x48xf32> to vector<2x32xf32>
    %24 = arith.addf %22, %23 : vector<2x32xf32>
    %25 = arith.negf %24 : vector<2x32xf32>
    %26 = math.exp %25 : vector<2x32xf32>
    %cst_18 = arith.constant 1.000000e+00 : f32
    %27 = vector.broadcast %cst_18 : f32 to vector<2x32xf32>
    %28 = arith.addf %27, %26 : vector<2x32xf32>
    %29 = arith.divf %27, %28 : vector<2x32xf32>
    %30 = vector.extract_strided_slice %29 {offsets = [0, 0], sizes = [2, 16], strides = [1, 1]} : vector<2x32xf32> to vector<2x16xf32>
    %31 = vector.extract_strided_slice %29 {offsets = [0, 16], sizes = [2, 16], strides = [1, 1]} : vector<2x32xf32> to vector<2x16xf32>
    %32 = vector.extract_strided_slice %13 {offsets = [0, 32], sizes = [2, 16], strides = [1, 1]} : vector<2x48xf32> to vector<2x16xf32>
    %33 = vector.extract_strided_slice %21 {offsets = [0, 32], sizes = [2, 16], strides = [1, 1]} : vector<2x48xf32> to vector<2x16xf32>
    %34 = arith.mulf %30, %33 : vector<2x16xf32>
    %35 = arith.addf %32, %34 : vector<2x16xf32>
    %36 = math.tanh %35 : vector<2x16xf32>
    %37 = arith.subf %18, %36 : vector<2x16xf32>
    %38 = arith.mulf %31, %37 : vector<2x16xf32>
    %39 = arith.addf %36, %38 : vector<2x16xf32>
    %40 = vector.shape_cast %39 : vector<2x16xf32> to vector<1x2x16xf32>
    %cst_19 = arith.constant dense<0.000000e+00> : vector<1xf32>
    %41 = vector.multi_reduction <add>, %40, %cst_19 [1, 2] : vector<1x2x16xf32> to vector<1xf32>
    %42 = vector.shape_cast %41 : vector<1xf32> to vector<1x1x1xf32>
    %43 = vector.extract %42[0, 0, 0] : f32 from vector<1x1x1xf32>
    %44 = vector.broadcast %43 : f32 to vector<1x1xf32>
    %cst_20 = arith.constant 3.200000e+01 : f32
    %45 = vector.broadcast %cst_20 : f32 to vector<1x1xf32>
    %46 = arith.divf %44, %45 : vector<1x1xf32>
    %47 = vector.broadcast %46 : vector<1x1xf32> to vector<2x16xf32>
    %48 = arith.subf %39, %47 : vector<2x16xf32>
    %49 = arith.mulf %48, %48 : vector<2x16xf32>
    %50 = vector.shape_cast %49 : vector<2x16xf32> to vector<1x2x16xf32>
    %cst_21 = arith.constant dense<0.000000e+00> : vector<1xf32>
    %51 = vector.multi_reduction <add>, %50, %cst_21 [1, 2] : vector<1x2x16xf32> to vector<1xf32>
    %52 = vector.shape_cast %51 : vector<1xf32> to vector<1x1x1xf32>
    %53 = vector.extract %52[0, 0, 0] : f32 from vector<1x1x1xf32>
    %54 = vector.broadcast %53 : f32 to vector<1x1xf32>
    %cst_22 = arith.constant 3.200000e+01 : f32
    %55 = vector.broadcast %cst_22 : f32 to vector<1x1xf32>
    %56 = arith.divf %54, %55 : vector<1x1xf32>
    %cst_23 = arith.constant 9.99999974E-6 : f32
    %57 = vector.broadcast %cst_23 : f32 to vector<1x1xf32>
    %58 = arith.addf %56, %57 : vector<1x1xf32>
    %59 = math.rsqrt %58 : vector<1x1xf32>
    %c0_24 = arith.constant 0 : index
    %c0_25 = arith.constant 0 : index
    %60 = memref.load %arg5[%c0_24, %c0_25] : memref<2x12xf32, #tpu.memory_space<smem>>
    %61 = vector.broadcast %60 : f32 to vector<1x1xf32>
    %62 = arith.mulf %59, %61 : vector<1x1xf32>
    %c1 = arith.constant 1 : index
    %c0_26 = arith.constant 0 : index
    %63 = memref.load %arg5[%c1, %c0_26] : memref<2x12xf32, #tpu.memory_space<smem>>
    %64 = arith.mulf %46, %62 : vector<1x1xf32>
    %65 = vector.broadcast %63 : f32 to vector<1x1xf32>
    %66 = arith.subf %65, %64 : vector<1x1xf32>
    %67 = vector.broadcast %62 : vector<1x1xf32> to vector<2x16xf32>
    %68 = arith.mulf %39, %67 : vector<2x16xf32>
    %69 = vector.broadcast %66 : vector<1x1xf32> to vector<2x16xf32>
    %70 = arith.addf %68, %69 : vector<2x16xf32>
    %cst_27 = arith.constant dense<0.000000e+00> : vector<2x256xf32>
    %71 = tpu.matmul %70, %16, %cst_27 {dimension_numbers = #tpu.dot_dimension_numbers<[1], [0], [0], [1], [0, 0, 1, 1], [], []>} : vector<2x16xf32>, vector<16x256xf32>, vector<2x256xf32> -> vector<2x256xf32>
    %72 = vector.broadcast %17 : vector<1x256xf32> to vector<2x256xf32>
    %73 = arith.addf %71, %72 : vector<2x256xf32>
    %cst_28 = arith.constant 0.000000e+00 : f32
    %74 = vector.broadcast %cst_28 : f32 to vector<2x256xf32>
    %75 = arith.maximumf %73, %74 : vector<2x256xf32>
    %c0_29 = arith.constant 0 : index
    %c0_30 = arith.constant 0 : index
    %c0_31 = arith.constant 0 : index
    %76 = vector.load %arg8[%c0_29, %c0_30, %c0_31] : memref<2x12x256xf32, #tpu.memory_space<vmem>>, vector<2x1x256xf32>
    %77 = vector.shape_cast %76 : vector<2x1x256xf32> to vector<2x256xf32>
    %78 = vector.shape_cast %75 : vector<2x256xf32> to vector<2x1x256xf32>
    tpu.vector_store %arg8[%c0_29, %c0_30, %c0_31], %78 {strides = array<i32>} : memref<2x12x256xf32, #tpu.memory_space<vmem>>, vector<2x1x256xf32>,
    %cst_32 = arith.constant dense<0.000000e+00> : vector<2x48xf32>
    %79 = tpu.matmul %39, %15, %cst_32 {dimension_numbers = #tpu.dot_dimension_numbers<[1], [0], [0], [1], [0, 0, 1, 1], [], []>} : vector<2x16xf32>, vector<16x48xf32>, vector<2x48xf32> -> vector<2x48xf32>
    %80 = vector.broadcast %14 : vector<1x48xf32> to vector<2x48xf32>
    %81 = arith.addf %79, %80 : vector<2x48xf32>
    %82 = vector.extract_strided_slice %13 {offsets = [0, 0], sizes = [2, 32], strides = [1, 1]} : vector<2x48xf32> to vector<2x32xf32>
    %83 = vector.extract_strided_slice %81 {offsets = [0, 0], sizes = [2, 32], strides = [1, 1]} : vector<2x48xf32> to vector<2x32xf32>
    %84 = arith.addf %82, %83 : vector<2x32xf32>
    %85 = arith.negf %84 : vector<2x32xf32>
    %86 = math.exp %85 : vector<2x32xf32>
    %cst_33 = arith.constant 1.000000e+00 : f32
    %87 = vector.broadcast %cst_33 : f32 to vector<2x32xf32>
    %88 = arith.addf %87, %86 : vector<2x32xf32>
    %89 = arith.divf %87, %88 : vector<2x32xf32>
    %90 = vector.extract_strided_slice %89 {offsets = [0, 0], sizes = [2, 16], strides = [1, 1]} : vector<2x32xf32> to vector<2x16xf32>
    %91 = vector.extract_strided_slice %89 {offsets = [0, 16], sizes = [2, 16], strides = [1, 1]} : vector<2x32xf32> to vector<2x16xf32>
    %92 = vector.extract_strided_slice %13 {offsets = [0, 32], sizes = [2, 16], strides = [1, 1]} : vector<2x48xf32> to vector<2x16xf32>
    %93 = vector.extract_strided_slice %81 {offsets = [0, 32], sizes = [2, 16], strides = [1, 1]} : vector<2x48xf32> to vector<2x16xf32>
    %94 = arith.mulf %90, %93 : vector<2x16xf32>
    %95 = arith.addf %92, %94 : vector<2x16xf32>
    %96 = math.tanh %95 : vector<2x16xf32>
    %97 = arith.subf %39, %96 : vector<2x16xf32>
    %98 = arith.mulf %91, %97 : vector<2x16xf32>
    %99 = arith.addf %96, %98 : vector<2x16xf32>
    %100 = vector.shape_cast %99 : vector<2x16xf32> to vector<1x2x16xf32>
    %cst_34 = arith.constant dense<0.000000e+00> : vector<1xf32>
    %101 = vector.multi_reduction <add>, %100, %cst_34 [1, 2] : vector<1x2x16xf32> to vector<1xf32>
    %102 = vector.shape_cast %101 : vector<1xf32> to vector<1x1x1xf32>
    %103 = vector.extract %102[0, 0, 0] : f32 from vector<1x1x1xf32>
    %104 = vector.broadcast %103 : f32 to vector<1x1xf32>
    %cst_35 = arith.constant 3.200000e+01 : f32
    %105 = vector.broadcast %cst_35 : f32 to vector<1x1xf32>
    %106 = arith.divf %104, %105 : vector<1x1xf32>
    %107 = vector.broadcast %106 : vector<1x1xf32> to vector<2x16xf32>
    %108 = arith.subf %99, %107 : vector<2x16xf32>
    %109 = arith.mulf %108, %108 : vector<2x16xf32>
    %110 = vector.shape_cast %109 : vector<2x16xf32> to vector<1x2x16xf32>
    %cst_36 = arith.constant dense<0.000000e+00> : vector<1xf32>
    %111 = vector.multi_reduction <add>, %110, %cst_36 [1, 2] : vector<1x2x16xf32> to vector<1xf32>
    %112 = vector.shape_cast %111 : vector<1xf32> to vector<1x1x1xf32>
    %113 = vector.extract %112[0, 0, 0] : f32 from vector<1x1x1xf32>
    %114 = vector.broadcast %113 : f32 to vector<1x1xf32>
    %cst_37 = arith.constant 3.200000e+01 : f32
    %115 = vector.broadcast %cst_37 : f32 to vector<1x1xf32>
    %116 = arith.divf %114, %115 : vector<1x1xf32>
    %cst_38 = arith.constant 9.99999974E-6 : f32
    %117 = vector.broadcast %cst_38 : f32 to vector<1x1xf32>
    %118 = arith.addf %116, %117 : vector<1x1xf32>
    %119 = math.rsqrt %118 : vector<1x1xf32>
    %c0_39 = arith.constant 0 : index
    %c1_40 = arith.constant 1 : index
    %120 = memref.load %arg5[%c0_39, %c1_40] : memref<2x12xf32, #tpu.memory_space<smem>>
    %121 = vector.broadcast %120 : f32 to vector<1x1xf32>
    %122 = arith.mulf %119, %121 : vector<1x1xf32>
    %c1_41 = arith.constant 1 : index
    %c1_42 = arith.constant 1 : index
    %123 = memref.load %arg5[%c1_41, %c1_42] : memref<2x12xf32, #tpu.memory_space<smem>>
    %124 = arith.mulf %106, %122 : vector<1x1xf32>
    %125 = vector.broadcast %123 : f32 to vector<1x1xf32>
    %126 = arith.subf %125, %124 : vector<1x1xf32>
    %127 = vector.broadcast %122 : vector<1x1xf32> to vector<2x16xf32>
    %128 = arith.mulf %99, %127 : vector<2x16xf32>
    %129 = vector.broadcast %126 : vector<1x1xf32> to vector<2x16xf32>
    %130 = arith.addf %128, %129 : vector<2x16xf32>
    %cst_43 = arith.constant dense<0.000000e+00> : vector<2x256xf32>
    %131 = tpu.matmul %130, %16, %cst_43 {dimension_numbers = #tpu.dot_dimension_numbers<[1], [0], [0], [1], [0, 0, 1, 1], [], []>} : vector<2x16xf32>, vector<16x256xf32>, vector<2x256xf32> -> vector<2x256xf32>
    %132 = vector.broadcast %17 : vector<1x256xf32> to vector<2x256xf32>
    %133 = arith.addf %131, %132 : vector<2x256xf32>
    %cst_44 = arith.constant 0.000000e+00 : f32
    %134 = vector.broadcast %cst_44 : f32 to vector<2x256xf32>
    %135 = arith.maximumf %133, %134 : vector<2x256xf32>
    %c0_45 = arith.constant 0 : index
    %c1_46 = arith.constant 1 : index
    %c0_47 = arith.constant 0 : index
    %136 = vector.load %arg8[%c0_45, %c1_46, %c0_47] : memref<2x12x256xf32, #tpu.memory_space<vmem>>, vector<2x1x256xf32>
    %137 = vector.shape_cast %136 : vector<2x1x256xf32> to vector<2x256xf32>
    %138 = vector.shape_cast %135 : vector<2x256xf32> to vector<2x1x256xf32>
    tpu.vector_store %arg8[%c0_45, %c1_46, %c0_47], %138 {strides = array<i32>} : memref<2x12x256xf32, #tpu.memory_space<vmem>>, vector<2x1x256xf32>,
    %cst_48 = arith.constant dense<0.000000e+00> : vector<2x48xf32>
    %139 = tpu.matmul %99, %15, %cst_48 {dimension_numbers = #tpu.dot_dimension_numbers<[1], [0], [0], [1], [0, 0, 1, 1], [], []>} : vector<2x16xf32>, vector<16x48xf32>, vector<2x48xf32> -> vector<2x48xf32>
    %140 = vector.broadcast %14 : vector<1x48xf32> to vector<2x48xf32>
    %141 = arith.addf %139, %140 : vector<2x48xf32>
    %142 = vector.extract_strided_slice %13 {offsets = [0, 0], sizes = [2, 32], strides = [1, 1]} : vector<2x48xf32> to vector<2x32xf32>
    %143 = vector.extract_strided_slice %141 {offsets = [0, 0], sizes = [2, 32], strides = [1, 1]} : vector<2x48xf32> to vector<2x32xf32>
    %144 = arith.addf %142, %143 : vector<2x32xf32>
    %145 = arith.negf %144 : vector<2x32xf32>
    %146 = math.exp %145 : vector<2x32xf32>
    %cst_49 = arith.constant 1.000000e+00 : f32
    %147 = vector.broadcast %cst_49 : f32 to vector<2x32xf32>
    %148 = arith.addf %147, %146 : vector<2x32xf32>
    %149 = arith.divf %147, %148 : vector<2x32xf32>
    %150 = vector.extract_strided_slice %149 {offsets = [0, 0], sizes = [2, 16], strides = [1, 1]} : vector<2x32xf32> to vector<2x16xf32>
    %151 = vector.extract_strided_slice %149 {offsets = [0, 16], sizes = [2, 16], strides = [1, 1]} : vector<2x32xf32> to vector<2x16xf32>
    %152 = vector.extract_strided_slice %13 {offsets = [0, 32], sizes = [2, 16], strides = [1, 1]} : vector<2x48xf32> to vector<2x16xf32>
    %153 = vector.extract_strided_slice %141 {offsets = [0, 32], sizes = [2, 16], strides = [1, 1]} : vector<2x48xf32> to vector<2x16xf32>
    %154 = arith.mulf %150, %153 : vector<2x16xf32>
    %155 = arith.addf %152, %154 : vector<2x16xf32>
    %156 = math.tanh %155 : vector<2x16xf32>
    %157 = arith.subf %99, %156 : vector<2x16xf32>
    %158 = arith.mulf %151, %157 : vector<2x16xf32>
    %159 = arith.addf %156, %158 : vector<2x16xf32>
    %160 = vector.shape_cast %159 : vector<2x16xf32> to vector<1x2x16xf32>
    %cst_50 = arith.constant dense<0.000000e+00> : vector<1xf32>
    %161 = vector.multi_reduction <add>, %160, %cst_50 [1, 2] : vector<1x2x16xf32> to vector<1xf32>
    %162 = vector.shape_cast %161 : vector<1xf32> to vector<1x1x1xf32>
    %163 = vector.extract %162[0, 0, 0] : f32 from vector<1x1x1xf32>
    %164 = vector.broadcast %163 : f32 to vector<1x1xf32>
    %cst_51 = arith.constant 3.200000e+01 : f32
    %165 = vector.broadcast %cst_51 : f32 to vector<1x1xf32>
    %166 = arith.divf %164, %165 : vector<1x1xf32>
    %167 = vector.broadcast %166 : vector<1x1xf32> to vector<2x16xf32>
    %168 = arith.subf %159, %167 : vector<2x16xf32>
    %169 = arith.mulf %168, %168 : vector<2x16xf32>
    %170 = vector.shape_cast %169 : vector<2x16xf32> to vector<1x2x16xf32>
    %cst_52 = arith.constant dense<0.000000e+00> : vector<1xf32>
    %171 = vector.multi_reduction <add>, %170, %cst_52 [1, 2] : vector<1x2x16xf32> to vector<1xf32>
    %172 = vector.shape_cast %171 : vector<1xf32> to vector<1x1x1xf32>
    %173 = vector.extract %172[0, 0, 0] : f32 from vector<1x1x1xf32>
    %174 = vector.broadcast %173 : f32 to vector<1x1xf32>
    %cst_53 = arith.constant 3.200000e+01 : f32
    %175 = vector.broadcast %cst_53 : f32 to vector<1x1xf32>
    %176 = arith.divf %174, %175 : vector<1x1xf32>
    %cst_54 = arith.constant 9.99999974E-6 : f32
    %177 = vector.broadcast %cst_54 : f32 to vector<1x1xf32>
    %178 = arith.addf %176, %177 : vector<1x1xf32>
    %179 = math.rsqrt %178 : vector<1x1xf32>
    %c0_55 = arith.constant 0 : index
    %c2 = arith.constant 2 : index
    %180 = memref.load %arg5[%c0_55, %c2] : memref<2x12xf32, #tpu.memory_space<smem>>
    %181 = vector.broadcast %180 : f32 to vector<1x1xf32>
    %182 = arith.mulf %179, %181 : vector<1x1xf32>
    %c1_56 = arith.constant 1 : index
    %c2_57 = arith.constant 2 : index
    %183 = memref.load %arg5[%c1_56, %c2_57] : memref<2x12xf32, #tpu.memory_space<smem>>
    %184 = arith.mulf %166, %182 : vector<1x1xf32>
    %185 = vector.broadcast %183 : f32 to vector<1x1xf32>
    %186 = arith.subf %185, %184 : vector<1x1xf32>
    %187 = vector.broadcast %182 : vector<1x1xf32> to vector<2x16xf32>
    %188 = arith.mulf %159, %187 : vector<2x16xf32>
    %189 = vector.broadcast %186 : vector<1x1xf32> to vector<2x16xf32>
    %190 = arith.addf %188, %189 : vector<2x16xf32>
    %cst_58 = arith.constant dense<0.000000e+00> : vector<2x256xf32>
    %191 = tpu.matmul %190, %16, %cst_58 {dimension_numbers = #tpu.dot_dimension_numbers<[1], [0], [0], [1], [0, 0, 1, 1], [], []>} : vector<2x16xf32>, vector<16x256xf32>, vector<2x256xf32> -> vector<2x256xf32>
    %192 = vector.broadcast %17 : vector<1x256xf32> to vector<2x256xf32>
    %193 = arith.addf %191, %192 : vector<2x256xf32>
    %cst_59 = arith.constant 0.000000e+00 : f32
    %194 = vector.broadcast %cst_59 : f32 to vector<2x256xf32>
    %195 = arith.maximumf %193, %194 : vector<2x256xf32>
    %c0_60 = arith.constant 0 : index
    %c2_61 = arith.constant 2 : index
    %c0_62 = arith.constant 0 : index
    %196 = vector.load %arg8[%c0_60, %c2_61, %c0_62] : memref<2x12x256xf32, #tpu.memory_space<vmem>>, vector<2x1x256xf32>
    %197 = vector.shape_cast %196 : vector<2x1x256xf32> to vector<2x256xf32>
    %198 = vector.shape_cast %195 : vector<2x256xf32> to vector<2x1x256xf32>
    tpu.vector_store %arg8[%c0_60, %c2_61, %c0_62], %198 {strides = array<i32>} : memref<2x12x256xf32, #tpu.memory_space<vmem>>, vector<2x1x256xf32>,
    %cst_63 = arith.constant dense<0.000000e+00> : vector<2x48xf32>
    %199 = tpu.matmul %159, %15, %cst_63 {dimension_numbers = #tpu.dot_dimension_numbers<[1], [0], [0], [1], [0, 0, 1, 1], [], []>} : vector<2x16xf32>, vector<16x48xf32>, vector<2x48xf32> -> vector<2x48xf32>
    %200 = vector.broadcast %14 : vector<1x48xf32> to vector<2x48xf32>
    %201 = arith.addf %199, %200 : vector<2x48xf32>
    %202 = vector.extract_strided_slice %13 {offsets = [0, 0], sizes = [2, 32], strides = [1, 1]} : vector<2x48xf32> to vector<2x32xf32>
    %203 = vector.extract_strided_slice %201 {offsets = [0, 0], sizes = [2, 32], strides = [1, 1]} : vector<2x48xf32> to vector<2x32xf32>
    %204 = arith.addf %202, %203 : vector<2x32xf32>
    %205 = arith.negf %204 : vector<2x32xf32>
    %206 = math.exp %205 : vector<2x32xf32>
    %cst_64 = arith.constant 1.000000e+00 : f32
    %207 = vector.broadcast %cst_64 : f32 to vector<2x32xf32>
    %208 = arith.addf %207, %206 : vector<2x32xf32>
    %209 = arith.divf %207, %208 : vector<2x32xf32>
    %210 = vector.extract_strided_slice %209 {offsets = [0, 0], sizes = [2, 16], strides = [1, 1]} : vector<2x32xf32> to vector<2x16xf32>
    %211 = vector.extract_strided_slice %209 {offsets = [0, 16], sizes = [2, 16], strides = [1, 1]} : vector<2x32xf32> to vector<2x16xf32>
    %212 = vector.extract_strided_slice %13 {offsets = [0, 32], sizes = [2, 16], strides = [1, 1]} : vector<2x48xf32> to vector<2x16xf32>
    %213 = vector.extract_strided_slice %201 {offsets = [0, 32], sizes = [2, 16], strides = [1, 1]} : vector<2x48xf32> to vector<2x16xf32>
    %214 = arith.mulf %210, %213 : vector<2x16xf32>
    %215 = arith.addf %212, %214 : vector<2x16xf32>
    %216 = math.tanh %215 : vector<2x16xf32>
    %217 = arith.subf %159, %216 : vector<2x16xf32>
    %218 = arith.mulf %211, %217 : vector<2x16xf32>
    %219 = arith.addf %216, %218 : vector<2x16xf32>
    %220 = vector.shape_cast %219 : vector<2x16xf32> to vector<1x2x16xf32>
    %cst_65 = arith.constant dense<0.000000e+00> : vector<1xf32>
    %221 = vector.multi_reduction <add>, %220, %cst_65 [1, 2] : vector<1x2x16xf32> to vector<1xf32>
    %222 = vector.shape_cast %221 : vector<1xf32> to vector<1x1x1xf32>
    %223 = vector.extract %222[0, 0, 0] : f32 from vector<1x1x1xf32>
    %224 = vector.broadcast %223 : f32 to vector<1x1xf32>
    %cst_66 = arith.constant 3.200000e+01 : f32
    %225 = vector.broadcast %cst_66 : f32 to vector<1x1xf32>
    %226 = arith.divf %224, %225 : vector<1x1xf32>
    %227 = vector.broadcast %226 : vector<1x1xf32> to vector<2x16xf32>
    %228 = arith.subf %219, %227 : vector<2x16xf32>
    %229 = arith.mulf %228, %228 : vector<2x16xf32>
    %230 = vector.shape_cast %229 : vector<2x16xf32> to vector<1x2x16xf32>
    %cst_67 = arith.constant dense<0.000000e+00> : vector<1xf32>
    %231 = vector.multi_reduction <add>, %230, %cst_67 [1, 2] : vector<1x2x16xf32> to vector<1xf32>
    %232 = vector.shape_cast %231 : vector<1xf32> to vector<1x1x1xf32>
    %233 = vector.extract %232[0, 0, 0] : f32 from vector<1x1x1xf32>
    %234 = vector.broadcast %233 : f32 to vector<1x1xf32>
    %cst_68 = arith.constant 3.200000e+01 : f32
    %235 = vector.broadcast %cst_68 : f32 to vector<1x1xf32>
    %236 = arith.divf %234, %235 : vector<1x1xf32>
    %cst_69 = arith.constant 9.99999974E-6 : f32
    %237 = vector.broadcast %cst_69 : f32 to vector<1x1xf32>
    %238 = arith.addf %236, %237 : vector<1x1xf32>
    %239 = math.rsqrt %238 : vector<1x1xf32>
    %c0_70 = arith.constant 0 : index
    %c3 = arith.constant 3 : index
    %240 = memref.load %arg5[%c0_70, %c3] : memref<2x12xf32, #tpu.memory_space<smem>>
    %241 = vector.broadcast %240 : f32 to vector<1x1xf32>
    %242 = arith.mulf %239, %241 : vector<1x1xf32>
    %c1_71 = arith.constant 1 : index
    %c3_72 = arith.constant 3 : index
    %243 = memref.load %arg5[%c1_71, %c3_72] : memref<2x12xf32, #tpu.memory_space<smem>>
    %244 = arith.mulf %226, %242 : vector<1x1xf32>
    %245 = vector.broadcast %243 : f32 to vector<1x1xf32>
    %246 = arith.subf %245, %244 : vector<1x1xf32>
    %247 = vector.broadcast %242 : vector<1x1xf32> to vector<2x16xf32>
    %248 = arith.mulf %219, %247 : vector<2x16xf32>
    %249 = vector.broadcast %246 : vector<1x1xf32> to vector<2x16xf32>
    %250 = arith.addf %248, %249 : vector<2x16xf32>
    %cst_73 = arith.constant dense<0.000000e+00> : vector<2x256xf32>
    %251 = tpu.matmul %250, %16, %cst_73 {dimension_numbers = #tpu.dot_dimension_numbers<[1], [0], [0], [1], [0, 0, 1, 1], [], []>} : vector<2x16xf32>, vector<16x256xf32>, vector<2x256xf32> -> vector<2x256xf32>
    %252 = vector.broadcast %17 : vector<1x256xf32> to vector<2x256xf32>
    %253 = arith.addf %251, %252 : vector<2x256xf32>
    %cst_74 = arith.constant 0.000000e+00 : f32
    %254 = vector.broadcast %cst_74 : f32 to vector<2x256xf32>
    %255 = arith.maximumf %253, %254 : vector<2x256xf32>
    %c0_75 = arith.constant 0 : index
    %c3_76 = arith.constant 3 : index
    %c0_77 = arith.constant 0 : index
    %256 = vector.load %arg8[%c0_75, %c3_76, %c0_77] : memref<2x12x256xf32, #tpu.memory_space<vmem>>, vector<2x1x256xf32>
    %257 = vector.shape_cast %256 : vector<2x1x256xf32> to vector<2x256xf32>
    %258 = vector.shape_cast %255 : vector<2x256xf32> to vector<2x1x256xf32>
    tpu.vector_store %arg8[%c0_75, %c3_76, %c0_77], %258 {strides = array<i32>} : memref<2x12x256xf32, #tpu.memory_space<vmem>>, vector<2x1x256xf32>,
    %cst_78 = arith.constant dense<0.000000e+00> : vector<2x48xf32>
    %259 = tpu.matmul %219, %15, %cst_78 {dimension_numbers = #tpu.dot_dimension_numbers<[1], [0], [0], [1], [0, 0, 1, 1], [], []>} : vector<2x16xf32>, vector<16x48xf32>, vector<2x48xf32> -> vector<2x48xf32>
    %260 = vector.broadcast %14 : vector<1x48xf32> to vector<2x48xf32>
    %261 = arith.addf %259, %260 : vector<2x48xf32>
    %262 = vector.extract_strided_slice %13 {offsets = [0, 0], sizes = [2, 32], strides = [1, 1]} : vector<2x48xf32> to vector<2x32xf32>
    %263 = vector.extract_strided_slice %261 {offsets = [0, 0], sizes = [2, 32], strides = [1, 1]} : vector<2x48xf32> to vector<2x32xf32>
    %264 = arith.addf %262, %263 : vector<2x32xf32>
    %265 = arith.negf %264 : vector<2x32xf32>
    %266 = math.exp %265 : vector<2x32xf32>
    %cst_79 = arith.constant 1.000000e+00 : f32
    %267 = vector.broadcast %cst_79 : f32 to vector<2x32xf32>
    %268 = arith.addf %267, %266 : vector<2x32xf32>
    %269 = arith.divf %267, %268 : vector<2x32xf32>
    %270 = vector.extract_strided_slice %269 {offsets = [0, 0], sizes = [2, 16], strides = [1, 1]} : vector<2x32xf32> to vector<2x16xf32>
    %271 = vector.extract_strided_slice %269 {offsets = [0, 16], sizes = [2, 16], strides = [1, 1]} : vector<2x32xf32> to vector<2x16xf32>
    %272 = vector.extract_strided_slice %13 {offsets = [0, 32], sizes = [2, 16], strides = [1, 1]} : vector<2x48xf32> to vector<2x16xf32>
    %273 = vector.extract_strided_slice %261 {offsets = [0, 32], sizes = [2, 16], strides = [1, 1]} : vector<2x48xf32> to vector<2x16xf32>
    %274 = arith.mulf %270, %273 : vector<2x16xf32>
    %275 = arith.addf %272, %274 : vector<2x16xf32>
    %276 = math.tanh %275 : vector<2x16xf32>
    %277 = arith.subf %219, %276 : vector<2x16xf32>
    %278 = arith.mulf %271, %277 : vector<2x16xf32>
    %279 = arith.addf %276, %278 : vector<2x16xf32>
    %280 = vector.shape_cast %279 : vector<2x16xf32> to vector<1x2x16xf32>
    %cst_80 = arith.constant dense<0.000000e+00> : vector<1xf32>
    %281 = vector.multi_reduction <add>, %280, %cst_80 [1, 2] : vector<1x2x16xf32> to vector<1xf32>
    %282 = vector.shape_cast %281 : vector<1xf32> to vector<1x1x1xf32>
    %283 = vector.extract %282[0, 0, 0] : f32 from vector<1x1x1xf32>
    %284 = vector.broadcast %283 : f32 to vector<1x1xf32>
    %cst_81 = arith.constant 3.200000e+01 : f32
    %285 = vector.broadcast %cst_81 : f32 to vector<1x1xf32>
    %286 = arith.divf %284, %285 : vector<1x1xf32>
    %287 = vector.broadcast %286 : vector<1x1xf32> to vector<2x16xf32>
    %288 = arith.subf %279, %287 : vector<2x16xf32>
    %289 = arith.mulf %288, %288 : vector<2x16xf32>
    %290 = vector.shape_cast %289 : vector<2x16xf32> to vector<1x2x16xf32>
    %cst_82 = arith.constant dense<0.000000e+00> : vector<1xf32>
    %291 = vector.multi_reduction <add>, %290, %cst_82 [1, 2] : vector<1x2x16xf32> to vector<1xf32>
    %292 = vector.shape_cast %291 : vector<1xf32> to vector<1x1x1xf32>
    %293 = vector.extract %292[0, 0, 0] : f32 from vector<1x1x1xf32>
    %294 = vector.broadcast %293 : f32 to vector<1x1xf32>
    %cst_83 = arith.constant 3.200000e+01 : f32
    %295 = vector.broadcast %cst_83 : f32 to vector<1x1xf32>
    %296 = arith.divf %294, %295 : vector<1x1xf32>
    %cst_84 = arith.constant 9.99999974E-6 : f32
    %297 = vector.broadcast %cst_84 : f32 to vector<1x1xf32>
    %298 = arith.addf %296, %297 : vector<1x1xf32>
    %299 = math.rsqrt %298 : vector<1x1xf32>
    %c0_85 = arith.constant 0 : index
    %c4 = arith.constant 4 : index
    %300 = memref.load %arg5[%c0_85, %c4] : memref<2x12xf32, #tpu.memory_space<smem>>
    %301 = vector.broadcast %300 : f32 to vector<1x1xf32>
    %302 = arith.mulf %299, %301 : vector<1x1xf32>
    %c1_86 = arith.constant 1 : index
    %c4_87 = arith.constant 4 : index
    %303 = memref.load %arg5[%c1_86, %c4_87] : memref<2x12xf32, #tpu.memory_space<smem>>
    %304 = arith.mulf %286, %302 : vector<1x1xf32>
    %305 = vector.broadcast %303 : f32 to vector<1x1xf32>
    %306 = arith.subf %305, %304 : vector<1x1xf32>
    %307 = vector.broadcast %302 : vector<1x1xf32> to vector<2x16xf32>
    %308 = arith.mulf %279, %307 : vector<2x16xf32>
    %309 = vector.broadcast %306 : vector<1x1xf32> to vector<2x16xf32>
    %310 = arith.addf %308, %309 : vector<2x16xf32>
    %cst_88 = arith.constant dense<0.000000e+00> : vector<2x256xf32>
    %311 = tpu.matmul %310, %16, %cst_88 {dimension_numbers = #tpu.dot_dimension_numbers<[1], [0], [0], [1], [0, 0, 1, 1], [], []>} : vector<2x16xf32>, vector<16x256xf32>, vector<2x256xf32> -> vector<2x256xf32>
    %312 = vector.broadcast %17 : vector<1x256xf32> to vector<2x256xf32>
    %313 = arith.addf %311, %312 : vector<2x256xf32>
    %cst_89 = arith.constant 0.000000e+00 : f32
    %314 = vector.broadcast %cst_89 : f32 to vector<2x256xf32>
    %315 = arith.maximumf %313, %314 : vector<2x256xf32>
    %c0_90 = arith.constant 0 : index
    %c4_91 = arith.constant 4 : index
    %c0_92 = arith.constant 0 : index
    %316 = vector.load %arg8[%c0_90, %c4_91, %c0_92] : memref<2x12x256xf32, #tpu.memory_space<vmem>>, vector<2x1x256xf32>
    %317 = vector.shape_cast %316 : vector<2x1x256xf32> to vector<2x256xf32>
    %318 = vector.shape_cast %315 : vector<2x256xf32> to vector<2x1x256xf32>
    tpu.vector_store %arg8[%c0_90, %c4_91, %c0_92], %318 {strides = array<i32>} : memref<2x12x256xf32, #tpu.memory_space<vmem>>, vector<2x1x256xf32>,
    %cst_93 = arith.constant dense<0.000000e+00> : vector<2x48xf32>
    %319 = tpu.matmul %279, %15, %cst_93 {dimension_numbers = #tpu.dot_dimension_numbers<[1], [0], [0], [1], [0, 0, 1, 1], [], []>} : vector<2x16xf32>, vector<16x48xf32>, vector<2x48xf32> -> vector<2x48xf32>
    %320 = vector.broadcast %14 : vector<1x48xf32> to vector<2x48xf32>
    %321 = arith.addf %319, %320 : vector<2x48xf32>
    %322 = vector.extract_strided_slice %13 {offsets = [0, 0], sizes = [2, 32], strides = [1, 1]} : vector<2x48xf32> to vector<2x32xf32>
    %323 = vector.extract_strided_slice %321 {offsets = [0, 0], sizes = [2, 32], strides = [1, 1]} : vector<2x48xf32> to vector<2x32xf32>
    %324 = arith.addf %322, %323 : vector<2x32xf32>
    %325 = arith.negf %324 : vector<2x32xf32>
    %326 = math.exp %325 : vector<2x32xf32>
    %cst_94 = arith.constant 1.000000e+00 : f32
    %327 = vector.broadcast %cst_94 : f32 to vector<2x32xf32>
    %328 = arith.addf %327, %326 : vector<2x32xf32>
    %329 = arith.divf %327, %328 : vector<2x32xf32>
    %330 = vector.extract_strided_slice %329 {offsets = [0, 0], sizes = [2, 16], strides = [1, 1]} : vector<2x32xf32> to vector<2x16xf32>
    %331 = vector.extract_strided_slice %329 {offsets = [0, 16], sizes = [2, 16], strides = [1, 1]} : vector<2x32xf32> to vector<2x16xf32>
    %332 = vector.extract_strided_slice %13 {offsets = [0, 32], sizes = [2, 16], strides = [1, 1]} : vector<2x48xf32> to vector<2x16xf32>
    %333 = vector.extract_strided_slice %321 {offsets = [0, 32], sizes = [2, 16], strides = [1, 1]} : vector<2x48xf32> to vector<2x16xf32>
    %334 = arith.mulf %330, %333 : vector<2x16xf32>
    %335 = arith.addf %332, %334 : vector<2x16xf32>
    %336 = math.tanh %335 : vector<2x16xf32>
    %337 = arith.subf %279, %336 : vector<2x16xf32>
    %338 = arith.mulf %331, %337 : vector<2x16xf32>
    %339 = arith.addf %336, %338 : vector<2x16xf32>
    %340 = vector.shape_cast %339 : vector<2x16xf32> to vector<1x2x16xf32>
    %cst_95 = arith.constant dense<0.000000e+00> : vector<1xf32>
    %341 = vector.multi_reduction <add>, %340, %cst_95 [1, 2] : vector<1x2x16xf32> to vector<1xf32>
    %342 = vector.shape_cast %341 : vector<1xf32> to vector<1x1x1xf32>
    %343 = vector.extract %342[0, 0, 0] : f32 from vector<1x1x1xf32>
    %344 = vector.broadcast %343 : f32 to vector<1x1xf32>
    %cst_96 = arith.constant 3.200000e+01 : f32
    %345 = vector.broadcast %cst_96 : f32 to vector<1x1xf32>
    %346 = arith.divf %344, %345 : vector<1x1xf32>
    %347 = vector.broadcast %346 : vector<1x1xf32> to vector<2x16xf32>
    %348 = arith.subf %339, %347 : vector<2x16xf32>
    %349 = arith.mulf %348, %348 : vector<2x16xf32>
    %350 = vector.shape_cast %349 : vector<2x16xf32> to vector<1x2x16xf32>
    %cst_97 = arith.constant dense<0.000000e+00> : vector<1xf32>
    %351 = vector.multi_reduction <add>, %350, %cst_97 [1, 2] : vector<1x2x16xf32> to vector<1xf32>
    %352 = vector.shape_cast %351 : vector<1xf32> to vector<1x1x1xf32>
    %353 = vector.extract %352[0, 0, 0] : f32 from vector<1x1x1xf32>
    %354 = vector.broadcast %353 : f32 to vector<1x1xf32>
    %cst_98 = arith.constant 3.200000e+01 : f32
    %355 = vector.broadcast %cst_98 : f32 to vector<1x1xf32>
    %356 = arith.divf %354, %355 : vector<1x1xf32>
    %cst_99 = arith.constant 9.99999974E-6 : f32
    %357 = vector.broadcast %cst_99 : f32 to vector<1x1xf32>
    %358 = arith.addf %356, %357 : vector<1x1xf32>
    %359 = math.rsqrt %358 : vector<1x1xf32>
    %c0_100 = arith.constant 0 : index
    %c5 = arith.constant 5 : index
    %360 = memref.load %arg5[%c0_100, %c5] : memref<2x12xf32, #tpu.memory_space<smem>>
    %361 = vector.broadcast %360 : f32 to vector<1x1xf32>
    %362 = arith.mulf %359, %361 : vector<1x1xf32>
    %c1_101 = arith.constant 1 : index
    %c5_102 = arith.constant 5 : index
    %363 = memref.load %arg5[%c1_101, %c5_102] : memref<2x12xf32, #tpu.memory_space<smem>>
    %364 = arith.mulf %346, %362 : vector<1x1xf32>
    %365 = vector.broadcast %363 : f32 to vector<1x1xf32>
    %366 = arith.subf %365, %364 : vector<1x1xf32>
    %367 = vector.broadcast %362 : vector<1x1xf32> to vector<2x16xf32>
    %368 = arith.mulf %339, %367 : vector<2x16xf32>
    %369 = vector.broadcast %366 : vector<1x1xf32> to vector<2x16xf32>
    %370 = arith.addf %368, %369 : vector<2x16xf32>
    %cst_103 = arith.constant dense<0.000000e+00> : vector<2x256xf32>
    %371 = tpu.matmul %370, %16, %cst_103 {dimension_numbers = #tpu.dot_dimension_numbers<[1], [0], [0], [1], [0, 0, 1, 1], [], []>} : vector<2x16xf32>, vector<16x256xf32>, vector<2x256xf32> -> vector<2x256xf32>
    %372 = vector.broadcast %17 : vector<1x256xf32> to vector<2x256xf32>
    %373 = arith.addf %371, %372 : vector<2x256xf32>
    %cst_104 = arith.constant 0.000000e+00 : f32
    %374 = vector.broadcast %cst_104 : f32 to vector<2x256xf32>
    %375 = arith.maximumf %373, %374 : vector<2x256xf32>
    %c0_105 = arith.constant 0 : index
    %c5_106 = arith.constant 5 : index
    %c0_107 = arith.constant 0 : index
    %376 = vector.load %arg8[%c0_105, %c5_106, %c0_107] : memref<2x12x256xf32, #tpu.memory_space<vmem>>, vector<2x1x256xf32>
    %377 = vector.shape_cast %376 : vector<2x1x256xf32> to vector<2x256xf32>
    %378 = vector.shape_cast %375 : vector<2x256xf32> to vector<2x1x256xf32>
    tpu.vector_store %arg8[%c0_105, %c5_106, %c0_107], %378 {strides = array<i32>} : memref<2x12x256xf32, #tpu.memory_space<vmem>>, vector<2x1x256xf32>,
    %cst_108 = arith.constant dense<0.000000e+00> : vector<2x48xf32>
    %379 = tpu.matmul %339, %15, %cst_108 {dimension_numbers = #tpu.dot_dimension_numbers<[1], [0], [0], [1], [0, 0, 1, 1], [], []>} : vector<2x16xf32>, vector<16x48xf32>, vector<2x48xf32> -> vector<2x48xf32>
    %380 = vector.broadcast %14 : vector<1x48xf32> to vector<2x48xf32>
    %381 = arith.addf %379, %380 : vector<2x48xf32>
    %382 = vector.extract_strided_slice %13 {offsets = [0, 0], sizes = [2, 32], strides = [1, 1]} : vector<2x48xf32> to vector<2x32xf32>
    %383 = vector.extract_strided_slice %381 {offsets = [0, 0], sizes = [2, 32], strides = [1, 1]} : vector<2x48xf32> to vector<2x32xf32>
    %384 = arith.addf %382, %383 : vector<2x32xf32>
    %385 = arith.negf %384 : vector<2x32xf32>
    %386 = math.exp %385 : vector<2x32xf32>
    %cst_109 = arith.constant 1.000000e+00 : f32
    %387 = vector.broadcast %cst_109 : f32 to vector<2x32xf32>
    %388 = arith.addf %387, %386 : vector<2x32xf32>
    %389 = arith.divf %387, %388 : vector<2x32xf32>
    %390 = vector.extract_strided_slice %389 {offsets = [0, 0], sizes = [2, 16], strides = [1, 1]} : vector<2x32xf32> to vector<2x16xf32>
    %391 = vector.extract_strided_slice %389 {offsets = [0, 16], sizes = [2, 16], strides = [1, 1]} : vector<2x32xf32> to vector<2x16xf32>
    %392 = vector.extract_strided_slice %13 {offsets = [0, 32], sizes = [2, 16], strides = [1, 1]} : vector<2x48xf32> to vector<2x16xf32>
    %393 = vector.extract_strided_slice %381 {offsets = [0, 32], sizes = [2, 16], strides = [1, 1]} : vector<2x48xf32> to vector<2x16xf32>
    %394 = arith.mulf %390, %393 : vector<2x16xf32>
    %395 = arith.addf %392, %394 : vector<2x16xf32>
    %396 = math.tanh %395 : vector<2x16xf32>
    %397 = arith.subf %339, %396 : vector<2x16xf32>
    %398 = arith.mulf %391, %397 : vector<2x16xf32>
    %399 = arith.addf %396, %398 : vector<2x16xf32>
    %400 = vector.shape_cast %399 : vector<2x16xf32> to vector<1x2x16xf32>
    %cst_110 = arith.constant dense<0.000000e+00> : vector<1xf32>
    %401 = vector.multi_reduction <add>, %400, %cst_110 [1, 2] : vector<1x2x16xf32> to vector<1xf32>
    %402 = vector.shape_cast %401 : vector<1xf32> to vector<1x1x1xf32>
    %403 = vector.extract %402[0, 0, 0] : f32 from vector<1x1x1xf32>
    %404 = vector.broadcast %403 : f32 to vector<1x1xf32>
    %cst_111 = arith.constant 3.200000e+01 : f32
    %405 = vector.broadcast %cst_111 : f32 to vector<1x1xf32>
    %406 = arith.divf %404, %405 : vector<1x1xf32>
    %407 = vector.broadcast %406 : vector<1x1xf32> to vector<2x16xf32>
    %408 = arith.subf %399, %407 : vector<2x16xf32>
    %409 = arith.mulf %408, %408 : vector<2x16xf32>
    %410 = vector.shape_cast %409 : vector<2x16xf32> to vector<1x2x16xf32>
    %cst_112 = arith.constant dense<0.000000e+00> : vector<1xf32>
    %411 = vector.multi_reduction <add>, %410, %cst_112 [1, 2] : vector<1x2x16xf32> to vector<1xf32>
    %412 = vector.shape_cast %411 : vector<1xf32> to vector<1x1x1xf32>
    %413 = vector.extract %412[0, 0, 0] : f32 from vector<1x1x1xf32>
    %414 = vector.broadcast %413 : f32 to vector<1x1xf32>
    %cst_113 = arith.constant 3.200000e+01 : f32
    %415 = vector.broadcast %cst_113 : f32 to vector<1x1xf32>
    %416 = arith.divf %414, %415 : vector<1x1xf32>
    %cst_114 = arith.constant 9.99999974E-6 : f32
    %417 = vector.broadcast %cst_114 : f32 to vector<1x1xf32>
    %418 = arith.addf %416, %417 : vector<1x1xf32>
    %419 = math.rsqrt %418 : vector<1x1xf32>
    %c0_115 = arith.constant 0 : index
    %c6 = arith.constant 6 : index
    %420 = memref.load %arg5[%c0_115, %c6] : memref<2x12xf32, #tpu.memory_space<smem>>
    %421 = vector.broadcast %420 : f32 to vector<1x1xf32>
    %422 = arith.mulf %419, %421 : vector<1x1xf32>
    %c1_116 = arith.constant 1 : index
    %c6_117 = arith.constant 6 : index
    %423 = memref.load %arg5[%c1_116, %c6_117] : memref<2x12xf32, #tpu.memory_space<smem>>
    %424 = arith.mulf %406, %422 : vector<1x1xf32>
    %425 = vector.broadcast %423 : f32 to vector<1x1xf32>
    %426 = arith.subf %425, %424 : vector<1x1xf32>
    %427 = vector.broadcast %422 : vector<1x1xf32> to vector<2x16xf32>
    %428 = arith.mulf %399, %427 : vector<2x16xf32>
    %429 = vector.broadcast %426 : vector<1x1xf32> to vector<2x16xf32>
    %430 = arith.addf %428, %429 : vector<2x16xf32>
    %cst_118 = arith.constant dense<0.000000e+00> : vector<2x256xf32>
    %431 = tpu.matmul %430, %16, %cst_118 {dimension_numbers = #tpu.dot_dimension_numbers<[1], [0], [0], [1], [0, 0, 1, 1], [], []>} : vector<2x16xf32>, vector<16x256xf32>, vector<2x256xf32> -> vector<2x256xf32>
    %432 = vector.broadcast %17 : vector<1x256xf32> to vector<2x256xf32>
    %433 = arith.addf %431, %432 : vector<2x256xf32>
    %cst_119 = arith.constant 0.000000e+00 : f32
    %434 = vector.broadcast %cst_119 : f32 to vector<2x256xf32>
    %435 = arith.maximumf %433, %434 : vector<2x256xf32>
    %c0_120 = arith.constant 0 : index
    %c6_121 = arith.constant 6 : index
    %c0_122 = arith.constant 0 : index
    %436 = vector.load %arg8[%c0_120, %c6_121, %c0_122] : memref<2x12x256xf32, #tpu.memory_space<vmem>>, vector<2x1x256xf32>
    %437 = vector.shape_cast %436 : vector<2x1x256xf32> to vector<2x256xf32>
    %438 = vector.shape_cast %435 : vector<2x256xf32> to vector<2x1x256xf32>
    tpu.vector_store %arg8[%c0_120, %c6_121, %c0_122], %438 {strides = array<i32>} : memref<2x12x256xf32, #tpu.memory_space<vmem>>, vector<2x1x256xf32>,
    %cst_123 = arith.constant dense<0.000000e+00> : vector<2x48xf32>
    %439 = tpu.matmul %399, %15, %cst_123 {dimension_numbers = #tpu.dot_dimension_numbers<[1], [0], [0], [1], [0, 0, 1, 1], [], []>} : vector<2x16xf32>, vector<16x48xf32>, vector<2x48xf32> -> vector<2x48xf32>
    %440 = vector.broadcast %14 : vector<1x48xf32> to vector<2x48xf32>
    %441 = arith.addf %439, %440 : vector<2x48xf32>
    %442 = vector.extract_strided_slice %13 {offsets = [0, 0], sizes = [2, 32], strides = [1, 1]} : vector<2x48xf32> to vector<2x32xf32>
    %443 = vector.extract_strided_slice %441 {offsets = [0, 0], sizes = [2, 32], strides = [1, 1]} : vector<2x48xf32> to vector<2x32xf32>
    %444 = arith.addf %442, %443 : vector<2x32xf32>
    %445 = arith.negf %444 : vector<2x32xf32>
    %446 = math.exp %445 : vector<2x32xf32>
    %cst_124 = arith.constant 1.000000e+00 : f32
    %447 = vector.broadcast %cst_124 : f32 to vector<2x32xf32>
    %448 = arith.addf %447, %446 : vector<2x32xf32>
    %449 = arith.divf %447, %448 : vector<2x32xf32>
    %450 = vector.extract_strided_slice %449 {offsets = [0, 0], sizes = [2, 16], strides = [1, 1]} : vector<2x32xf32> to vector<2x16xf32>
    %451 = vector.extract_strided_slice %449 {offsets = [0, 16], sizes = [2, 16], strides = [1, 1]} : vector<2x32xf32> to vector<2x16xf32>
    %452 = vector.extract_strided_slice %13 {offsets = [0, 32], sizes = [2, 16], strides = [1, 1]} : vector<2x48xf32> to vector<2x16xf32>
    %453 = vector.extract_strided_slice %441 {offsets = [0, 32], sizes = [2, 16], strides = [1, 1]} : vector<2x48xf32> to vector<2x16xf32>
    %454 = arith.mulf %450, %453 : vector<2x16xf32>
    %455 = arith.addf %452, %454 : vector<2x16xf32>
    %456 = math.tanh %455 : vector<2x16xf32>
    %457 = arith.subf %399, %456 : vector<2x16xf32>
    %458 = arith.mulf %451, %457 : vector<2x16xf32>
    %459 = arith.addf %456, %458 : vector<2x16xf32>
    %460 = vector.shape_cast %459 : vector<2x16xf32> to vector<1x2x16xf32>
    %cst_125 = arith.constant dense<0.000000e+00> : vector<1xf32>
    %461 = vector.multi_reduction <add>, %460, %cst_125 [1, 2] : vector<1x2x16xf32> to vector<1xf32>
    %462 = vector.shape_cast %461 : vector<1xf32> to vector<1x1x1xf32>
    %463 = vector.extract %462[0, 0, 0] : f32 from vector<1x1x1xf32>
    %464 = vector.broadcast %463 : f32 to vector<1x1xf32>
    %cst_126 = arith.constant 3.200000e+01 : f32
    %465 = vector.broadcast %cst_126 : f32 to vector<1x1xf32>
    %466 = arith.divf %464, %465 : vector<1x1xf32>
    %467 = vector.broadcast %466 : vector<1x1xf32> to vector<2x16xf32>
    %468 = arith.subf %459, %467 : vector<2x16xf32>
    %469 = arith.mulf %468, %468 : vector<2x16xf32>
    %470 = vector.shape_cast %469 : vector<2x16xf32> to vector<1x2x16xf32>
    %cst_127 = arith.constant dense<0.000000e+00> : vector<1xf32>
    %471 = vector.multi_reduction <add>, %470, %cst_127 [1, 2] : vector<1x2x16xf32> to vector<1xf32>
    %472 = vector.shape_cast %471 : vector<1xf32> to vector<1x1x1xf32>
    %473 = vector.extract %472[0, 0, 0] : f32 from vector<1x1x1xf32>
    %474 = vector.broadcast %473 : f32 to vector<1x1xf32>
    %cst_128 = arith.constant 3.200000e+01 : f32
    %475 = vector.broadcast %cst_128 : f32 to vector<1x1xf32>
    %476 = arith.divf %474, %475 : vector<1x1xf32>
    %cst_129 = arith.constant 9.99999974E-6 : f32
    %477 = vector.broadcast %cst_129 : f32 to vector<1x1xf32>
    %478 = arith.addf %476, %477 : vector<1x1xf32>
    %479 = math.rsqrt %478 : vector<1x1xf32>
    %c0_130 = arith.constant 0 : index
    %c7 = arith.constant 7 : index
    %480 = memref.load %arg5[%c0_130, %c7] : memref<2x12xf32, #tpu.memory_space<smem>>
    %481 = vector.broadcast %480 : f32 to vector<1x1xf32>
    %482 = arith.mulf %479, %481 : vector<1x1xf32>
    %c1_131 = arith.constant 1 : index
    %c7_132 = arith.constant 7 : index
    %483 = memref.load %arg5[%c1_131, %c7_132] : memref<2x12xf32, #tpu.memory_space<smem>>
    %484 = arith.mulf %466, %482 : vector<1x1xf32>
    %485 = vector.broadcast %483 : f32 to vector<1x1xf32>
    %486 = arith.subf %485, %484 : vector<1x1xf32>
    %487 = vector.broadcast %482 : vector<1x1xf32> to vector<2x16xf32>
    %488 = arith.mulf %459, %487 : vector<2x16xf32>
    %489 = vector.broadcast %486 : vector<1x1xf32> to vector<2x16xf32>
    %490 = arith.addf %488, %489 : vector<2x16xf32>
    %cst_133 = arith.constant dense<0.000000e+00> : vector<2x256xf32>
    %491 = tpu.matmul %490, %16, %cst_133 {dimension_numbers = #tpu.dot_dimension_numbers<[1], [0], [0], [1], [0, 0, 1, 1], [], []>} : vector<2x16xf32>, vector<16x256xf32>, vector<2x256xf32> -> vector<2x256xf32>
    %492 = vector.broadcast %17 : vector<1x256xf32> to vector<2x256xf32>
    %493 = arith.addf %491, %492 : vector<2x256xf32>
    %cst_134 = arith.constant 0.000000e+00 : f32
    %494 = vector.broadcast %cst_134 : f32 to vector<2x256xf32>
    %495 = arith.maximumf %493, %494 : vector<2x256xf32>
    %c0_135 = arith.constant 0 : index
    %c7_136 = arith.constant 7 : index
    %c0_137 = arith.constant 0 : index
    %496 = vector.load %arg8[%c0_135, %c7_136, %c0_137] : memref<2x12x256xf32, #tpu.memory_space<vmem>>, vector<2x1x256xf32>
    %497 = vector.shape_cast %496 : vector<2x1x256xf32> to vector<2x256xf32>
    %498 = vector.shape_cast %495 : vector<2x256xf32> to vector<2x1x256xf32>
    tpu.vector_store %arg8[%c0_135, %c7_136, %c0_137], %498 {strides = array<i32>} : memref<2x12x256xf32, #tpu.memory_space<vmem>>, vector<2x1x256xf32>,
    %cst_138 = arith.constant dense<0.000000e+00> : vector<2x48xf32>
    %499 = tpu.matmul %459, %15, %cst_138 {dimension_numbers = #tpu.dot_dimension_numbers<[1], [0], [0], [1], [0, 0, 1, 1], [], []>} : vector<2x16xf32>, vector<16x48xf32>, vector<2x48xf32> -> vector<2x48xf32>
    %500 = vector.broadcast %14 : vector<1x48xf32> to vector<2x48xf32>
    %501 = arith.addf %499, %500 : vector<2x48xf32>
    %502 = vector.extract_strided_slice %13 {offsets = [0, 0], sizes = [2, 32], strides = [1, 1]} : vector<2x48xf32> to vector<2x32xf32>
    %503 = vector.extract_strided_slice %501 {offsets = [0, 0], sizes = [2, 32], strides = [1, 1]} : vector<2x48xf32> to vector<2x32xf32>
    %504 = arith.addf %502, %503 : vector<2x32xf32>
    %505 = arith.negf %504 : vector<2x32xf32>
    %506 = math.exp %505 : vector<2x32xf32>
    %cst_139 = arith.constant 1.000000e+00 : f32
    %507 = vector.broadcast %cst_139 : f32 to vector<2x32xf32>
    %508 = arith.addf %507, %506 : vector<2x32xf32>
    %509 = arith.divf %507, %508 : vector<2x32xf32>
    %510 = vector.extract_strided_slice %509 {offsets = [0, 0], sizes = [2, 16], strides = [1, 1]} : vector<2x32xf32> to vector<2x16xf32>
    %511 = vector.extract_strided_slice %509 {offsets = [0, 16], sizes = [2, 16], strides = [1, 1]} : vector<2x32xf32> to vector<2x16xf32>
    %512 = vector.extract_strided_slice %13 {offsets = [0, 32], sizes = [2, 16], strides = [1, 1]} : vector<2x48xf32> to vector<2x16xf32>
    %513 = vector.extract_strided_slice %501 {offsets = [0, 32], sizes = [2, 16], strides = [1, 1]} : vector<2x48xf32> to vector<2x16xf32>
    %514 = arith.mulf %510, %513 : vector<2x16xf32>
    %515 = arith.addf %512, %514 : vector<2x16xf32>
    %516 = math.tanh %515 : vector<2x16xf32>
    %517 = arith.subf %459, %516 : vector<2x16xf32>
    %518 = arith.mulf %511, %517 : vector<2x16xf32>
    %519 = arith.addf %516, %518 : vector<2x16xf32>
    %520 = vector.shape_cast %519 : vector<2x16xf32> to vector<1x2x16xf32>
    %cst_140 = arith.constant dense<0.000000e+00> : vector<1xf32>
    %521 = vector.multi_reduction <add>, %520, %cst_140 [1, 2] : vector<1x2x16xf32> to vector<1xf32>
    %522 = vector.shape_cast %521 : vector<1xf32> to vector<1x1x1xf32>
    %523 = vector.extract %522[0, 0, 0] : f32 from vector<1x1x1xf32>
    %524 = vector.broadcast %523 : f32 to vector<1x1xf32>
    %cst_141 = arith.constant 3.200000e+01 : f32
    %525 = vector.broadcast %cst_141 : f32 to vector<1x1xf32>
    %526 = arith.divf %524, %525 : vector<1x1xf32>
    %527 = vector.broadcast %526 : vector<1x1xf32> to vector<2x16xf32>
    %528 = arith.subf %519, %527 : vector<2x16xf32>
    %529 = arith.mulf %528, %528 : vector<2x16xf32>
    %530 = vector.shape_cast %529 : vector<2x16xf32> to vector<1x2x16xf32>
    %cst_142 = arith.constant dense<0.000000e+00> : vector<1xf32>
    %531 = vector.multi_reduction <add>, %530, %cst_142 [1, 2] : vector<1x2x16xf32> to vector<1xf32>
    %532 = vector.shape_cast %531 : vector<1xf32> to vector<1x1x1xf32>
    %533 = vector.extract %532[0, 0, 0] : f32 from vector<1x1x1xf32>
    %534 = vector.broadcast %533 : f32 to vector<1x1xf32>
    %cst_143 = arith.constant 3.200000e+01 : f32
    %535 = vector.broadcast %cst_143 : f32 to vector<1x1xf32>
    %536 = arith.divf %534, %535 : vector<1x1xf32>
    %cst_144 = arith.constant 9.99999974E-6 : f32
    %537 = vector.broadcast %cst_144 : f32 to vector<1x1xf32>
    %538 = arith.addf %536, %537 : vector<1x1xf32>
    %539 = math.rsqrt %538 : vector<1x1xf32>
    %c0_145 = arith.constant 0 : index
    %c8 = arith.constant 8 : index
    %540 = memref.load %arg5[%c0_145, %c8] : memref<2x12xf32, #tpu.memory_space<smem>>
    %541 = vector.broadcast %540 : f32 to vector<1x1xf32>
    %542 = arith.mulf %539, %541 : vector<1x1xf32>
    %c1_146 = arith.constant 1 : index
    %c8_147 = arith.constant 8 : index
    %543 = memref.load %arg5[%c1_146, %c8_147] : memref<2x12xf32, #tpu.memory_space<smem>>
    %544 = arith.mulf %526, %542 : vector<1x1xf32>
    %545 = vector.broadcast %543 : f32 to vector<1x1xf32>
    %546 = arith.subf %545, %544 : vector<1x1xf32>
    %547 = vector.broadcast %542 : vector<1x1xf32> to vector<2x16xf32>
    %548 = arith.mulf %519, %547 : vector<2x16xf32>
    %549 = vector.broadcast %546 : vector<1x1xf32> to vector<2x16xf32>
    %550 = arith.addf %548, %549 : vector<2x16xf32>
    %cst_148 = arith.constant dense<0.000000e+00> : vector<2x256xf32>
    %551 = tpu.matmul %550, %16, %cst_148 {dimension_numbers = #tpu.dot_dimension_numbers<[1], [0], [0], [1], [0, 0, 1, 1], [], []>} : vector<2x16xf32>, vector<16x256xf32>, vector<2x256xf32> -> vector<2x256xf32>
    %552 = vector.broadcast %17 : vector<1x256xf32> to vector<2x256xf32>
    %553 = arith.addf %551, %552 : vector<2x256xf32>
    %cst_149 = arith.constant 0.000000e+00 : f32
    %554 = vector.broadcast %cst_149 : f32 to vector<2x256xf32>
    %555 = arith.maximumf %553, %554 : vector<2x256xf32>
    %c0_150 = arith.constant 0 : index
    %c8_151 = arith.constant 8 : index
    %c0_152 = arith.constant 0 : index
    %556 = vector.load %arg8[%c0_150, %c8_151, %c0_152] : memref<2x12x256xf32, #tpu.memory_space<vmem>>, vector<2x1x256xf32>
    %557 = vector.shape_cast %556 : vector<2x1x256xf32> to vector<2x256xf32>
    %558 = vector.shape_cast %555 : vector<2x256xf32> to vector<2x1x256xf32>
    tpu.vector_store %arg8[%c0_150, %c8_151, %c0_152], %558 {strides = array<i32>} : memref<2x12x256xf32, #tpu.memory_space<vmem>>, vector<2x1x256xf32>,
    %cst_153 = arith.constant dense<0.000000e+00> : vector<2x48xf32>
    %559 = tpu.matmul %519, %15, %cst_153 {dimension_numbers = #tpu.dot_dimension_numbers<[1], [0], [0], [1], [0, 0, 1, 1], [], []>} : vector<2x16xf32>, vector<16x48xf32>, vector<2x48xf32> -> vector<2x48xf32>
    %560 = vector.broadcast %14 : vector<1x48xf32> to vector<2x48xf32>
    %561 = arith.addf %559, %560 : vector<2x48xf32>
    %562 = vector.extract_strided_slice %13 {offsets = [0, 0], sizes = [2, 32], strides = [1, 1]} : vector<2x48xf32> to vector<2x32xf32>
    %563 = vector.extract_strided_slice %561 {offsets = [0, 0], sizes = [2, 32], strides = [1, 1]} : vector<2x48xf32> to vector<2x32xf32>
    %564 = arith.addf %562, %563 : vector<2x32xf32>
    %565 = arith.negf %564 : vector<2x32xf32>
    %566 = math.exp %565 : vector<2x32xf32>
    %cst_154 = arith.constant 1.000000e+00 : f32
    %567 = vector.broadcast %cst_154 : f32 to vector<2x32xf32>
    %568 = arith.addf %567, %566 : vector<2x32xf32>
    %569 = arith.divf %567, %568 : vector<2x32xf32>
    %570 = vector.extract_strided_slice %569 {offsets = [0, 0], sizes = [2, 16], strides = [1, 1]} : vector<2x32xf32> to vector<2x16xf32>
    %571 = vector.extract_strided_slice %569 {offsets = [0, 16], sizes = [2, 16], strides = [1, 1]} : vector<2x32xf32> to vector<2x16xf32>
    %572 = vector.extract_strided_slice %13 {offsets = [0, 32], sizes = [2, 16], strides = [1, 1]} : vector<2x48xf32> to vector<2x16xf32>
    %573 = vector.extract_strided_slice %561 {offsets = [0, 32], sizes = [2, 16], strides = [1, 1]} : vector<2x48xf32> to vector<2x16xf32>
    %574 = arith.mulf %570, %573 : vector<2x16xf32>
    %575 = arith.addf %572, %574 : vector<2x16xf32>
    %576 = math.tanh %575 : vector<2x16xf32>
    %577 = arith.subf %519, %576 : vector<2x16xf32>
    %578 = arith.mulf %571, %577 : vector<2x16xf32>
    %579 = arith.addf %576, %578 : vector<2x16xf32>
    %580 = vector.shape_cast %579 : vector<2x16xf32> to vector<1x2x16xf32>
    %cst_155 = arith.constant dense<0.000000e+00> : vector<1xf32>
    %581 = vector.multi_reduction <add>, %580, %cst_155 [1, 2] : vector<1x2x16xf32> to vector<1xf32>
    %582 = vector.shape_cast %581 : vector<1xf32> to vector<1x1x1xf32>
    %583 = vector.extract %582[0, 0, 0] : f32 from vector<1x1x1xf32>
    %584 = vector.broadcast %583 : f32 to vector<1x1xf32>
    %cst_156 = arith.constant 3.200000e+01 : f32
    %585 = vector.broadcast %cst_156 : f32 to vector<1x1xf32>
    %586 = arith.divf %584, %585 : vector<1x1xf32>
    %587 = vector.broadcast %586 : vector<1x1xf32> to vector<2x16xf32>
    %588 = arith.subf %579, %587 : vector<2x16xf32>
    %589 = arith.mulf %588, %588 : vector<2x16xf32>
    %590 = vector.shape_cast %589 : vector<2x16xf32> to vector<1x2x16xf32>
    %cst_157 = arith.constant dense<0.000000e+00> : vector<1xf32>
    %591 = vector.multi_reduction <add>, %590, %cst_157 [1, 2] : vector<1x2x16xf32> to vector<1xf32>
    %592 = vector.shape_cast %591 : vector<1xf32> to vector<1x1x1xf32>
    %593 = vector.extract %592[0, 0, 0] : f32 from vector<1x1x1xf32>
    %594 = vector.broadcast %593 : f32 to vector<1x1xf32>
    %cst_158 = arith.constant 3.200000e+01 : f32
    %595 = vector.broadcast %cst_158 : f32 to vector<1x1xf32>
    %596 = arith.divf %594, %595 : vector<1x1xf32>
    %cst_159 = arith.constant 9.99999974E-6 : f32
    %597 = vector.broadcast %cst_159 : f32 to vector<1x1xf32>
    %598 = arith.addf %596, %597 : vector<1x1xf32>
    %599 = math.rsqrt %598 : vector<1x1xf32>
    %c0_160 = arith.constant 0 : index
    %c9 = arith.constant 9 : index
    %600 = memref.load %arg5[%c0_160, %c9] : memref<2x12xf32, #tpu.memory_space<smem>>
    %601 = vector.broadcast %600 : f32 to vector<1x1xf32>
    %602 = arith.mulf %599, %601 : vector<1x1xf32>
    %c1_161 = arith.constant 1 : index
    %c9_162 = arith.constant 9 : index
    %603 = memref.load %arg5[%c1_161, %c9_162] : memref<2x12xf32, #tpu.memory_space<smem>>
    %604 = arith.mulf %586, %602 : vector<1x1xf32>
    %605 = vector.broadcast %603 : f32 to vector<1x1xf32>
    %606 = arith.subf %605, %604 : vector<1x1xf32>
    %607 = vector.broadcast %602 : vector<1x1xf32> to vector<2x16xf32>
    %608 = arith.mulf %579, %607 : vector<2x16xf32>
    %609 = vector.broadcast %606 : vector<1x1xf32> to vector<2x16xf32>
    %610 = arith.addf %608, %609 : vector<2x16xf32>
    %cst_163 = arith.constant dense<0.000000e+00> : vector<2x256xf32>
    %611 = tpu.matmul %610, %16, %cst_163 {dimension_numbers = #tpu.dot_dimension_numbers<[1], [0], [0], [1], [0, 0, 1, 1], [], []>} : vector<2x16xf32>, vector<16x256xf32>, vector<2x256xf32> -> vector<2x256xf32>
    %612 = vector.broadcast %17 : vector<1x256xf32> to vector<2x256xf32>
    %613 = arith.addf %611, %612 : vector<2x256xf32>
    %cst_164 = arith.constant 0.000000e+00 : f32
    %614 = vector.broadcast %cst_164 : f32 to vector<2x256xf32>
    %615 = arith.maximumf %613, %614 : vector<2x256xf32>
    %c0_165 = arith.constant 0 : index
    %c9_166 = arith.constant 9 : index
    %c0_167 = arith.constant 0 : index
    %616 = vector.load %arg8[%c0_165, %c9_166, %c0_167] : memref<2x12x256xf32, #tpu.memory_space<vmem>>, vector<2x1x256xf32>
    %617 = vector.shape_cast %616 : vector<2x1x256xf32> to vector<2x256xf32>
    %618 = vector.shape_cast %615 : vector<2x256xf32> to vector<2x1x256xf32>
    tpu.vector_store %arg8[%c0_165, %c9_166, %c0_167], %618 {strides = array<i32>} : memref<2x12x256xf32, #tpu.memory_space<vmem>>, vector<2x1x256xf32>,
    %cst_168 = arith.constant dense<0.000000e+00> : vector<2x48xf32>
    %619 = tpu.matmul %579, %15, %cst_168 {dimension_numbers = #tpu.dot_dimension_numbers<[1], [0], [0], [1], [0, 0, 1, 1], [], []>} : vector<2x16xf32>, vector<16x48xf32>, vector<2x48xf32> -> vector<2x48xf32>
    %620 = vector.broadcast %14 : vector<1x48xf32> to vector<2x48xf32>
    %621 = arith.addf %619, %620 : vector<2x48xf32>
    %622 = vector.extract_strided_slice %13 {offsets = [0, 0], sizes = [2, 32], strides = [1, 1]} : vector<2x48xf32> to vector<2x32xf32>
    %623 = vector.extract_strided_slice %621 {offsets = [0, 0], sizes = [2, 32], strides = [1, 1]} : vector<2x48xf32> to vector<2x32xf32>
    %624 = arith.addf %622, %623 : vector<2x32xf32>
    %625 = arith.negf %624 : vector<2x32xf32>
    %626 = math.exp %625 : vector<2x32xf32>
    %cst_169 = arith.constant 1.000000e+00 : f32
    %627 = vector.broadcast %cst_169 : f32 to vector<2x32xf32>
    %628 = arith.addf %627, %626 : vector<2x32xf32>
    %629 = arith.divf %627, %628 : vector<2x32xf32>
    %630 = vector.extract_strided_slice %629 {offsets = [0, 0], sizes = [2, 16], strides = [1, 1]} : vector<2x32xf32> to vector<2x16xf32>
    %631 = vector.extract_strided_slice %629 {offsets = [0, 16], sizes = [2, 16], strides = [1, 1]} : vector<2x32xf32> to vector<2x16xf32>
    %632 = vector.extract_strided_slice %13 {offsets = [0, 32], sizes = [2, 16], strides = [1, 1]} : vector<2x48xf32> to vector<2x16xf32>
    %633 = vector.extract_strided_slice %621 {offsets = [0, 32], sizes = [2, 16], strides = [1, 1]} : vector<2x48xf32> to vector<2x16xf32>
    %634 = arith.mulf %630, %633 : vector<2x16xf32>
    %635 = arith.addf %632, %634 : vector<2x16xf32>
    %636 = math.tanh %635 : vector<2x16xf32>
    %637 = arith.subf %579, %636 : vector<2x16xf32>
    %638 = arith.mulf %631, %637 : vector<2x16xf32>
    %639 = arith.addf %636, %638 : vector<2x16xf32>
    %640 = vector.shape_cast %639 : vector<2x16xf32> to vector<1x2x16xf32>
    %cst_170 = arith.constant dense<0.000000e+00> : vector<1xf32>
    %641 = vector.multi_reduction <add>, %640, %cst_170 [1, 2] : vector<1x2x16xf32> to vector<1xf32>
    %642 = vector.shape_cast %641 : vector<1xf32> to vector<1x1x1xf32>
    %643 = vector.extract %642[0, 0, 0] : f32 from vector<1x1x1xf32>
    %644 = vector.broadcast %643 : f32 to vector<1x1xf32>
    %cst_171 = arith.constant 3.200000e+01 : f32
    %645 = vector.broadcast %cst_171 : f32 to vector<1x1xf32>
    %646 = arith.divf %644, %645 : vector<1x1xf32>
    %647 = vector.broadcast %646 : vector<1x1xf32> to vector<2x16xf32>
    %648 = arith.subf %639, %647 : vector<2x16xf32>
    %649 = arith.mulf %648, %648 : vector<2x16xf32>
    %650 = vector.shape_cast %649 : vector<2x16xf32> to vector<1x2x16xf32>
    %cst_172 = arith.constant dense<0.000000e+00> : vector<1xf32>
    %651 = vector.multi_reduction <add>, %650, %cst_172 [1, 2] : vector<1x2x16xf32> to vector<1xf32>
    %652 = vector.shape_cast %651 : vector<1xf32> to vector<1x1x1xf32>
    %653 = vector.extract %652[0, 0, 0] : f32 from vector<1x1x1xf32>
    %654 = vector.broadcast %653 : f32 to vector<1x1xf32>
    %cst_173 = arith.constant 3.200000e+01 : f32
    %655 = vector.broadcast %cst_173 : f32 to vector<1x1xf32>
    %656 = arith.divf %654, %655 : vector<1x1xf32>
    %cst_174 = arith.constant 9.99999974E-6 : f32
    %657 = vector.broadcast %cst_174 : f32 to vector<1x1xf32>
    %658 = arith.addf %656, %657 : vector<1x1xf32>
    %659 = math.rsqrt %658 : vector<1x1xf32>
    %c0_175 = arith.constant 0 : index
    %c10 = arith.constant 10 : index
    %660 = memref.load %arg5[%c0_175, %c10] : memref<2x12xf32, #tpu.memory_space<smem>>
    %661 = vector.broadcast %660 : f32 to vector<1x1xf32>
    %662 = arith.mulf %659, %661 : vector<1x1xf32>
    %c1_176 = arith.constant 1 : index
    %c10_177 = arith.constant 10 : index
    %663 = memref.load %arg5[%c1_176, %c10_177] : memref<2x12xf32, #tpu.memory_space<smem>>
    %664 = arith.mulf %646, %662 : vector<1x1xf32>
    %665 = vector.broadcast %663 : f32 to vector<1x1xf32>
    %666 = arith.subf %665, %664 : vector<1x1xf32>
    %667 = vector.broadcast %662 : vector<1x1xf32> to vector<2x16xf32>
    %668 = arith.mulf %639, %667 : vector<2x16xf32>
    %669 = vector.broadcast %666 : vector<1x1xf32> to vector<2x16xf32>
    %670 = arith.addf %668, %669 : vector<2x16xf32>
    %cst_178 = arith.constant dense<0.000000e+00> : vector<2x256xf32>
    %671 = tpu.matmul %670, %16, %cst_178 {dimension_numbers = #tpu.dot_dimension_numbers<[1], [0], [0], [1], [0, 0, 1, 1], [], []>} : vector<2x16xf32>, vector<16x256xf32>, vector<2x256xf32> -> vector<2x256xf32>
    %672 = vector.broadcast %17 : vector<1x256xf32> to vector<2x256xf32>
    %673 = arith.addf %671, %672 : vector<2x256xf32>
    %cst_179 = arith.constant 0.000000e+00 : f32
    %674 = vector.broadcast %cst_179 : f32 to vector<2x256xf32>
    %675 = arith.maximumf %673, %674 : vector<2x256xf32>
    %c0_180 = arith.constant 0 : index
    %c10_181 = arith.constant 10 : index
    %c0_182 = arith.constant 0 : index
    %676 = vector.load %arg8[%c0_180, %c10_181, %c0_182] : memref<2x12x256xf32, #tpu.memory_space<vmem>>, vector<2x1x256xf32>
    %677 = vector.shape_cast %676 : vector<2x1x256xf32> to vector<2x256xf32>
    %678 = vector.shape_cast %675 : vector<2x256xf32> to vector<2x1x256xf32>
    tpu.vector_store %arg8[%c0_180, %c10_181, %c0_182], %678 {strides = array<i32>} : memref<2x12x256xf32, #tpu.memory_space<vmem>>, vector<2x1x256xf32>,
    %cst_183 = arith.constant dense<0.000000e+00> : vector<2x48xf32>
    %679 = tpu.matmul %639, %15, %cst_183 {dimension_numbers = #tpu.dot_dimension_numbers<[1], [0], [0], [1], [0, 0, 1, 1], [], []>} : vector<2x16xf32>, vector<16x48xf32>, vector<2x48xf32> -> vector<2x48xf32>
    %680 = vector.broadcast %14 : vector<1x48xf32> to vector<2x48xf32>
    %681 = arith.addf %679, %680 : vector<2x48xf32>
    %682 = vector.extract_strided_slice %13 {offsets = [0, 0], sizes = [2, 32], strides = [1, 1]} : vector<2x48xf32> to vector<2x32xf32>
    %683 = vector.extract_strided_slice %681 {offsets = [0, 0], sizes = [2, 32], strides = [1, 1]} : vector<2x48xf32> to vector<2x32xf32>
    %684 = arith.addf %682, %683 : vector<2x32xf32>
    %685 = arith.negf %684 : vector<2x32xf32>
    %686 = math.exp %685 : vector<2x32xf32>
    %cst_184 = arith.constant 1.000000e+00 : f32
    %687 = vector.broadcast %cst_184 : f32 to vector<2x32xf32>
    %688 = arith.addf %687, %686 : vector<2x32xf32>
    %689 = arith.divf %687, %688 : vector<2x32xf32>
    %690 = vector.extract_strided_slice %689 {offsets = [0, 0], sizes = [2, 16], strides = [1, 1]} : vector<2x32xf32> to vector<2x16xf32>
    %691 = vector.extract_strided_slice %689 {offsets = [0, 16], sizes = [2, 16], strides = [1, 1]} : vector<2x32xf32> to vector<2x16xf32>
    %692 = vector.extract_strided_slice %13 {offsets = [0, 32], sizes = [2, 16], strides = [1, 1]} : vector<2x48xf32> to vector<2x16xf32>
    %693 = vector.extract_strided_slice %681 {offsets = [0, 32], sizes = [2, 16], strides = [1, 1]} : vector<2x48xf32> to vector<2x16xf32>
    %694 = arith.mulf %690, %693 : vector<2x16xf32>
    %695 = arith.addf %692, %694 : vector<2x16xf32>
    %696 = math.tanh %695 : vector<2x16xf32>
    %697 = arith.subf %639, %696 : vector<2x16xf32>
    %698 = arith.mulf %691, %697 : vector<2x16xf32>
    %699 = arith.addf %696, %698 : vector<2x16xf32>
    %700 = vector.shape_cast %699 : vector<2x16xf32> to vector<1x2x16xf32>
    %cst_185 = arith.constant dense<0.000000e+00> : vector<1xf32>
    %701 = vector.multi_reduction <add>, %700, %cst_185 [1, 2] : vector<1x2x16xf32> to vector<1xf32>
    %702 = vector.shape_cast %701 : vector<1xf32> to vector<1x1x1xf32>
    %703 = vector.extract %702[0, 0, 0] : f32 from vector<1x1x1xf32>
    %704 = vector.broadcast %703 : f32 to vector<1x1xf32>
    %cst_186 = arith.constant 3.200000e+01 : f32
    %705 = vector.broadcast %cst_186 : f32 to vector<1x1xf32>
    %706 = arith.divf %704, %705 : vector<1x1xf32>
    %707 = vector.broadcast %706 : vector<1x1xf32> to vector<2x16xf32>
    %708 = arith.subf %699, %707 : vector<2x16xf32>
    %709 = arith.mulf %708, %708 : vector<2x16xf32>
    %710 = vector.shape_cast %709 : vector<2x16xf32> to vector<1x2x16xf32>
    %cst_187 = arith.constant dense<0.000000e+00> : vector<1xf32>
    %711 = vector.multi_reduction <add>, %710, %cst_187 [1, 2] : vector<1x2x16xf32> to vector<1xf32>
    %712 = vector.shape_cast %711 : vector<1xf32> to vector<1x1x1xf32>
    %713 = vector.extract %712[0, 0, 0] : f32 from vector<1x1x1xf32>
    %714 = vector.broadcast %713 : f32 to vector<1x1xf32>
    %cst_188 = arith.constant 3.200000e+01 : f32
    %715 = vector.broadcast %cst_188 : f32 to vector<1x1xf32>
    %716 = arith.divf %714, %715 : vector<1x1xf32>
    %cst_189 = arith.constant 9.99999974E-6 : f32
    %717 = vector.broadcast %cst_189 : f32 to vector<1x1xf32>
    %718 = arith.addf %716, %717 : vector<1x1xf32>
    %719 = math.rsqrt %718 : vector<1x1xf32>
    %c0_190 = arith.constant 0 : index
    %c11 = arith.constant 11 : index
    %720 = memref.load %arg5[%c0_190, %c11] : memref<2x12xf32, #tpu.memory_space<smem>>
    %721 = vector.broadcast %720 : f32 to vector<1x1xf32>
    %722 = arith.mulf %719, %721 : vector<1x1xf32>
    %c1_191 = arith.constant 1 : index
    %c11_192 = arith.constant 11 : index
    %723 = memref.load %arg5[%c1_191, %c11_192] : memref<2x12xf32, #tpu.memory_space<smem>>
    %724 = arith.mulf %706, %722 : vector<1x1xf32>
    %725 = vector.broadcast %723 : f32 to vector<1x1xf32>
    %726 = arith.subf %725, %724 : vector<1x1xf32>
    %727 = vector.broadcast %722 : vector<1x1xf32> to vector<2x16xf32>
    %728 = arith.mulf %699, %727 : vector<2x16xf32>
    %729 = vector.broadcast %726 : vector<1x1xf32> to vector<2x16xf32>
    %730 = arith.addf %728, %729 : vector<2x16xf32>
    %cst_193 = arith.constant dense<0.000000e+00> : vector<2x256xf32>
    %731 = tpu.matmul %730, %16, %cst_193 {dimension_numbers = #tpu.dot_dimension_numbers<[1], [0], [0], [1], [0, 0, 1, 1], [], []>} : vector<2x16xf32>, vector<16x256xf32>, vector<2x256xf32> -> vector<2x256xf32>
    %732 = vector.broadcast %17 : vector<1x256xf32> to vector<2x256xf32>
    %733 = arith.addf %731, %732 : vector<2x256xf32>
    %cst_194 = arith.constant 0.000000e+00 : f32
    %734 = vector.broadcast %cst_194 : f32 to vector<2x256xf32>
    %735 = arith.maximumf %733, %734 : vector<2x256xf32>
    %c0_195 = arith.constant 0 : index
    %c11_196 = arith.constant 11 : index
    %c0_197 = arith.constant 0 : index
    %736 = vector.load %arg8[%c0_195, %c11_196, %c0_197] : memref<2x12x256xf32, #tpu.memory_space<vmem>>, vector<2x1x256xf32>
    %737 = vector.shape_cast %736 : vector<2x1x256xf32> to vector<2x256xf32>
    %738 = vector.shape_cast %735 : vector<2x256xf32> to vector<2x1x256xf32>
    tpu.vector_store %arg8[%c0_195, %c11_196, %c0_197], %738 {strides = array<i32>} : memref<2x12x256xf32, #tpu.memory_space<vmem>>, vector<2x1x256xf32>,
    return
  }
}

</mosaic_0001>

<llo_original>
// kernel: timeseries_decoder_forward.1
$region0: #{timeseries_decoder_forward.1}
  #allocation0 [shape = 'u32[]', space=smem, size = 0x4, offset = 0x4, fixed_abs, tag = 'smem constant byte address 0x4 - core index']
  #allocation1 [shape = 'u32[144,128]{1,0:T(1,128)}', space=vmem, size = 0x12000, scoped, tag = 'internal scratch']
  %s0 = inlined_call_operand.vmem [shape: f32[2,9], index: 0, kind: input, shape index: {}]
  %s1 = inlined_call_operand.vmem [shape: f32[9,16], index: 1, kind: input, shape index: {}]
  %s2 = inlined_call_operand.vmem [shape: f32[16,48], index: 2, kind: input, shape index: {}]
  %s3 = inlined_call_operand.vmem [shape: f32[16,48], index: 3, kind: input, shape index: {}]
  %s4 = inlined_call_operand.vmem [shape: f32[2,48], index: 4, kind: input, shape index: {}]
  %s5 = inlined_call_operand.vmem [shape: f32[2,12], index: 5, kind: input, shape index: {}]
  %s6 = inlined_call_operand.vmem [shape: f32[16,256], index: 6, kind: input, shape index: {}]
  %s7 = inlined_call_operand.vmem [shape: f32[1,256], index: 7, kind: input, shape index: {}]
  %s8 = inlined_call_operand.vmem [shape: f32[2,12,256], index: 8, kind: output, shape index: {}]
  %s9 = sld [smem:[#allocation0]]
  $region46: #{timeseries_decoder_forward.1} parent=0
    _
  %s11 = ssub.s32 1, %s9
  %s12 = scalar_select 0, %s11, %s9
  $region1: #{timeseries_decoder_forward.1} parent=0
    #allocation2 [shape = 'u8[1024]{0}', space=smem, size = 0x400, scoped, tag = 'input window, operand 5, single buffered']
    #allocation3 [shape = 's32[1]{0}', space=sflag, size = 0x4, scoped, tag = 'scoped memory for timeseries_decoder_forward.1']
    %13 = vsyncpa [#allocation3], 0
    // Predicated region
    $region2: #{timeseries_decoder_forward.1} parent=1 // pred_check
      _
    $region3: #{timeseries_decoder_forward.1} parent=1 // pred_check_branch
      %15 = sbr.rel (0) target = $region5
    $region4: #{timeseries_decoder_forward.1} parent=1 // pred_region
      _
    $region5: #{timeseries_decoder_forward.1} parent=1 // pred_fallthru
      _
    // Predicated region
    $region6: #{timeseries_decoder_forward.1} parent=1 // pred_check
      _
    $region7: #{timeseries_decoder_forward.1} parent=1 // pred_check_branch
      %17 = sbr.rel (0) target = $region9
    $region8: #{timeseries_decoder_forward.1} parent=1 // pred_region
      _
    $region9: #{timeseries_decoder_forward.1} parent=1 // pred_fallthru
      _
    // Predicated region
    $region10: #{timeseries_decoder_forward.1} parent=1 // pred_check
      _
    $region11: #{timeseries_decoder_forward.1} parent=1 // pred_check_branch
      %19 = sbr.rel (0) target = $region13
    $region12: #{timeseries_decoder_forward.1} parent=1 // pred_region
      _
    $region13: #{timeseries_decoder_forward.1} parent=1 // pred_fallthru
      _
    // Predicated region
    $region14: #{timeseries_decoder_forward.1} parent=1 // pred_check
      _
    $region15: #{timeseries_decoder_forward.1} parent=1 // pred_check_branch
      %21 = sbr.rel (0) target = $region17
    $region16: #{timeseries_decoder_forward.1} parent=1 // pred_region
      _
    $region17: #{timeseries_decoder_forward.1} parent=1 // pred_fallthru
      _
    // Predicated region
    $region18: #{timeseries_decoder_forward.1} parent=1 // pred_check
      _
    $region19: #{timeseries_decoder_forward.1} parent=1 // pred_check_branch
      %23 = sbr.rel (0) target = $region21
    $region20: #{timeseries_decoder_forward.1} parent=1 // pred_region
      _
    $region21: #{timeseries_decoder_forward.1} parent=1 // pred_fallthru
      _
    // Predicated region
    $region22: #{timeseries_decoder_forward.1} parent=1 // pred_check
      _
    $region23: #{timeseries_decoder_forward.1} parent=1 // pred_check_branch
      %25 = sbr.rel (0) target = $region25
    $region24: #{timeseries_decoder_forward.1} parent=1 // pred_region
      %s27 = ssub.s32 32, 32
      %28 = vsyncadd [#allocation3], %s27
      %s30 = sshll.u32 %s5, 4
      %s31 = int_to_ptr.vmem [resolvable:$true] %s30
      %33 = dma.vmem_to_smem %s31, 32, [#allocation2], [#allocation3]
    $region25: #{timeseries_decoder_forward.1} parent=1 // pred_fallthru
      _
    // Predicated region
    $region26: #{timeseries_decoder_forward.1} parent=1 // pred_check
      _
    $region27: #{timeseries_decoder_forward.1} parent=1 // pred_check_branch
      %35 = sbr.rel (0) target = $region29
    $region28: #{timeseries_decoder_forward.1} parent=1 // pred_region
      _
    $region29: #{timeseries_decoder_forward.1} parent=1 // pred_fallthru
      _
    // Predicated region
    $region30: #{timeseries_decoder_forward.1} parent=1 // pred_check
      _
    $region31: #{timeseries_decoder_forward.1} parent=1 // pred_check_branch
      %37 = sbr.rel (0) target = $region33
    $region32: #{timeseries_decoder_forward.1} parent=1 // pred_region
      _
    $region33: #{timeseries_decoder_forward.1} parent=1 // pred_fallthru
      _
    // Predicated region
    $region34: #{timeseries_decoder_forward.1} parent=1 // pred_check
      _
    $region35: #{timeseries_decoder_forward.1} parent=1 // pred_check_branch
      %39 = sbr.rel (0) target = $region37
    $region36: #{timeseries_decoder_forward.1} parent=1 // pred_region
      %40 = dma.done [#allocation3], 32
    $region37: #{timeseries_decoder_forward.1} parent=1 // pred_fallthru
      _
    %41 = sfence
    %v42 = vld [vmem:[%s0] sm:$0x3]
    %v43 = vld [vmem:[%s1] sm:$0xff]
    %v44 = vld [vmem:[%s1 + $0x8] sm:$0x1]
    %vm45 = vcmask 72704
    %v47 = vsel %vm45, %v42, 0
    %vm49 = vcmask 1040384
    %v51 = vsel %vm49, %v44, 0
    %53 = vmatprep.subr.mxu0 0.0
    %54 = vmatpush1.msra.mxu0 0.0
    %55 = vmatprep.subr.mxu0 0.0
    %56 = vmatpush1.msra.mxu0 0.0
    %57 = vmatprep.subr.mxu0 0.0
    %58 = vmatpush1.msra.mxu0 0.0
    %59 = vmatprep.subr.mxu0 0.0
    %60 = vmatpush1.msra.mxu0 0.0
    %61 = vmatprep.subr.mxu0 0.0
    %62 = vmatpush1.msra.mxu0 0.0
    %63 = vmatprep.subr.mxu0 0.0
    %64 = vmatpush1.msra.mxu0 0.0
    %65 = vmatprep.subr.mxu0 0.0
    %66 = vmatpush1.msra.mxu0 0.0
    %67 = vmatprep.subr.mxu0 0.0
    %68 = vmatpush1.msra.mxu0 0.0
    %69 = vmatprep.subr.mxu0 0.0
    %70 = vmatpush1.msra.mxu0 0.0
    %71 = vmatprep.subr.mxu0 0.0
    %72 = vmatpush1.msra.mxu0 0.0
    %73 = vmatprep.subr.mxu0 0.0
    %74 = vmatpush1.msra.mxu0 0.0
    %75 = vmatprep.subr.mxu0 0.0
    %76 = vmatpush1.msra.mxu0 0.0
    %77 = vmatprep.subr.mxu0 0.0
    %78 = vmatpush1.msra.mxu0 0.0
    %79 = vmatprep.subr.mxu0 0.0
    %80 = vmatpush1.msra.mxu0 0.0
    %81 = vmatprep.subr.mxu0 0.0
    %82 = vmatpush1.msra.mxu0 %v51
    %83 = vmatprep.subr.mxu0 0.0
    %84 = vmatpush1.msra.mxu0 %v43
    %85 = vmatprep.subr.mxu0 0.0
    %86 = vmatpush2.msra.mxu0 0.0
    %87 = vmatprep.subr.mxu0 0.0
    %88 = vmatpush2.msra.mxu0 0.0
    %89 = vmatprep.subr.mxu0 0.0
    %90 = vmatpush2.msra.mxu0 0.0
    %91 = vmatprep.subr.mxu0 0.0
    %92 = vmatpush2.msra.mxu0 0.0
    %93 = vmatprep.subr.mxu0 0.0
    %94 = vmatpush2.msra.mxu0 0.0
    %95 = vmatprep.subr.mxu0 0.0
    %96 = vmatpush2.msra.mxu0 0.0
    %97 = vmatprep.subr.mxu0 0.0
    %98 = vmatpush2.msra.mxu0 0.0
    %99 = vmatprep.subr.mxu0 0.0
    %100 = vmatpush2.msra.mxu0 0.0
    %101 = vmatprep.subr.mxu0 0.0
    %102 = vmatpush2.msra.mxu0 0.0
    %103 = vmatprep.subr.mxu0 0.0
    %104 = vmatpush2.msra.mxu0 0.0
    %105 = vmatprep.subr.mxu0 0.0
    %106 = vmatpush2.msra.mxu0 0.0
    %107 = vmatprep.subr.mxu0 0.0
    %108 = vmatpush2.msra.mxu0 0.0
    %109 = vmatprep.subr.mxu0 0.0
    %110 = vmatpush2.msra.mxu0 0.0
    %111 = vmatprep.subr.mxu0 0.0
    %112 = vmatpush2.msra.mxu0 0.0
    %113 = vmatprep.subr.mxu0 0.0
    %114 = vmatpush2.msra.mxu0 0.0
    %115 = vmatprep.subr.mxu0 0.0
    %116 = vmatpush2.msra.mxu0 0.0
    %117 = vmatprep.mubr.f32.mxu0 0.0
    %118 = vmatmul.mubr.f32.gmra.mxu0 %v47
    %v119 = vpop.f32.mrf.mxu0
    %v120 = vadd.f32 0.0, %v119
    %v121 = vpop.f32.mrf.mxu0
    %122 = vdwg.mxu0
    %vm123 = vcmp.ge.f32.partialorder %v120, 0.0
    %v124 = vmul.f32 %v120, 0.01
    %v125 = vsel %vm123, %v120, %v124
    %v126 = vld [vmem:[%s4] sm:$0x3]
    %v127 = vld [vmem:[%s2] sm:$0xff]
    %v128 = vld [vmem:[%s2 + $0x8] sm:$0xff]
    %v129 = vlaneseq
    %v130 = vshrl.u32 %v129, 7
    %v131 = vsub.s32 0, %v130
    %v132 = vrot.slane %v126, %v131
    %vm133 = vcmask 130048
    %v135 = vsel %vm133, %v125, 0
    %137 = vmatprep.subr.mxu0 0.0
    %138 = vmatpush1.msra.mxu0 0.0
    %139 = vmatprep.subr.mxu0 0.0
    %140 = vmatpush1.msra.mxu0 0.0
    %141 = vmatprep.subr.mxu0 0.0
    %142 = vmatpush1.msra.mxu0 0.0
    %143 = vmatprep.subr.mxu0 0.0
    %144 = vmatpush1.msra.mxu0 0.0
    %145 = vmatprep.subr.mxu0 0.0
    %146 = vmatpush1.msra.mxu0 0.0
    %147 = vmatprep.subr.mxu0 0.0
    %148 = vmatpush1.msra.mxu0 0.0
    %149 = vmatprep.subr.mxu0 0.0
    %150 = vmatpush1.msra.mxu0 0.0
    %151 = vmatprep.subr.mxu0 0.0
    %152 = vmatpush1.msra.mxu0 0.0
    %153 = vmatprep.subr.mxu0 0.0
    %154 = vmatpush1.msra.mxu0 0.0
    %155 = vmatprep.subr.mxu0 0.0
    %156 = vmatpush1.msra.mxu0 0.0
    %157 = vmatprep.subr.mxu0 0.0
    %158 = vmatpush1.msra.mxu0 0.0
    %159 = vmatprep.subr.mxu0 0.0
    %160 = vmatpush1.msra.mxu0 0.0
    %161 = vmatprep.subr.mxu0 0.0
    %162 = vmatpush1.msra.mxu0 0.0
    %163 = vmatprep.subr.mxu0 0.0
    %164 = vmatpush1.msra.mxu0 0.0
    %165 = vmatprep.subr.mxu0 0.0
    %166 = vmatpush1.msra.mxu0 %v128
    %167 = vmatprep.subr.mxu0 0.0
    %168 = vmatpush1.msra.mxu0 %v127
    %169 = vmatprep.subr.mxu0 0.0
    %170 = vmatpush2.msra.mxu0 0.0
    %171 = vmatprep.subr.mxu0 0.0
    %172 = vmatpush2.msra.mxu0 0.0
    %173 = vmatprep.subr.mxu0 0.0
    %174 = vmatpush2.msra.mxu0 0.0
    %175 = vmatprep.subr.mxu0 0.0
    %176 = vmatpush2.msra.mxu0 0.0
    %177 = vmatprep.subr.mxu0 0.0
    %178 = vmatpush2.msra.mxu0 0.0
    %179 = vmatprep.subr.mxu0 0.0
    %180 = vmatpush2.msra.mxu0 0.0
    %181 = vmatprep.subr.mxu0 0.0
    %182 = vmatpush2.msra.mxu0 0.0
    %183 = vmatprep.subr.mxu0 0.0
    %184 = vmatpush2.msra.mxu0 0.0
    %185 = vmatprep.subr.mxu0 0.0
    %186 = vmatpush2.msra.mxu0 0.0
    %187 = vmatprep.subr.mxu0 0.0
    %188 = vmatpush2.msra.mxu0 0.0
    %189 = vmatprep.subr.mxu0 0.0
    %190 = vmatpush2.msra.mxu0 0.0
    %191 = vmatprep.subr.mxu0 0.0
    %192 = vmatpush2.msra.mxu0 0.0
    %193 = vmatprep.subr.mxu0 0.0
    %194 = vmatpush2.msra.mxu0 0.0
    %195 = vmatprep.subr.mxu0 0.0
    %196 = vmatpush2.msra.mxu0 0.0
    %197 = vmatprep.subr.mxu0 0.0
    %198 = vmatpush2.msra.mxu0 0.0
    %199 = vmatprep.subr.mxu0 0.0
    %200 = vmatpush2.msra.mxu0 0.0
    %201 = vmatprep.mubr.f32.mxu0 0.0
    %202 = vmatmul.mubr.f32.gmra.mxu0 %v135
    %v203 = vpop.f32.mrf.mxu0
    %v204 = vadd.f32 %v132, %v203
    %v205 = vpop.f32.mrf.mxu0
    %206 = vdwg.mxu0
    %v207 = vld [vmem:[%s3] sm:$0xff]
    %v208 = vld [vmem:[%s3 + $0x8] sm:$0xff]
    %v209 = vld [vmem:[%s6] sm:$0xff]
    %v210 = vld [vmem:[%s6 + $0x8] sm:$0xff]
    %v211 = vld [vmem:[%s6 + $0x10] sm:$0xff]
    %v212 = vld [vmem:[%s6 + $0x18] sm:$0xff]
    %v213 = vld [vmem:[%s7] sm:$0x3]
    %v214 = vlaneseq
    %v215 = vshrl.u32 %v214, 7
    %v216 = vsub.s32 1, %v215
    %v217 = vrot.slane %v126, %v216
    %v219 = vsel %vm133, 0.0, 0
    %221 = vmatprep.subr.mxu0 0.0
    %222 = vmatpush1.msra.mxu0 0.0
    %223 = vmatprep.subr.mxu0 0.0
    %224 = vmatpush1.msra.mxu0 0.0
    %225 = vmatprep.subr.mxu0 0.0
    %226 = vmatpush1.msra.mxu0 0.0
    %227 = vmatprep.subr.mxu0 0.0
    %228 = vmatpush1.msra.mxu0 0.0
    %229 = vmatprep.subr.mxu0 0.0
    %230 = vmatpush1.msra.mxu0 0.0
    %231 = vmatprep.subr.mxu0 0.0
    %232 = vmatpush1.msra.mxu0 0.0
    %233 = vmatprep.subr.mxu0 0.0
    %234 = vmatpush1.msra.mxu0 0.0
    %235 = vmatprep.subr.mxu0 0.0
    %236 = vmatpush1.msra.mxu0 0.0
    %237 = vmatprep.subr.mxu0 0.0
    %238 = vmatpush1.msra.mxu0 0.0
    %239 = vmatprep.subr.mxu0 0.0
    %240 = vmatpush1.msra.mxu0 0.0
    %241 = vmatprep.subr.mxu0 0.0
    %242 = vmatpush1.msra.mxu0 0.0
    %243 = vmatprep.subr.mxu0 0.0
    %244 = vmatpush1.msra.mxu0 0.0
    %245 = vmatprep.subr.mxu0 0.0
    %246 = vmatpush1.msra.mxu0 0.0
    %247 = vmatprep.subr.mxu0 0.0
    %248 = vmatpush1.msra.mxu0 0.0
    %249 = vmatprep.subr.mxu0 0.0
    %250 = vmatpush1.msra.mxu0 %v208
    %251 = vmatprep.subr.mxu0 0.0
    %252 = vmatpush1.msra.mxu0 %v207
    %253 = vmatprep.subr.mxu0 0.0
    %254 = vmatpush2.msra.mxu0 0.0
    %255 = vmatprep.subr.mxu0 0.0
    %256 = vmatpush2.msra.mxu0 0.0
    %257 = vmatprep.subr.mxu0 0.0
    %258 = vmatpush2.msra.mxu0 0.0
    %259 = vmatprep.subr.mxu0 0.0
    %260 = vmatpush2.msra.mxu0 0.0
    %261 = vmatprep.subr.mxu0 0.0
    %262 = vmatpush2.msra.mxu0 0.0
    %263 = vmatprep.subr.mxu0 0.0
    %264 = vmatpush2.msra.mxu0 0.0
    %265 = vmatprep.subr.mxu0 0.0
    %266 = vmatpush2.msra.mxu0 0.0
    %267 = vmatprep.subr.mxu0 0.0
    %268 = vmatpush2.msra.mxu0 0.0
    %269 = vmatprep.subr.mxu0 0.0
    %270 = vmatpush2.msra.mxu0 0.0
    %271 = vmatprep.subr.mxu0 0.0
    %272 = vmatpush2.msra.mxu0 0.0
    %273 = vmatprep.subr.mxu0 0.0
    %274 = vmatpush2.msra.mxu0 0.0
    %275 = vmatprep.subr.mxu0 0.0
    %276 = vmatpush2.msra.mxu0 0.0
    %277 = vmatprep.subr.mxu0 0.0
    %278 = vmatpush2.msra.mxu0 0.0
    %279 = vmatprep.subr.mxu0 0.0
    %280 = vmatpush2.msra.mxu0 0.0
    %281 = vmatprep.subr.mxu0 0.0
    %282 = vmatpush2.msra.mxu0 0.0
    %283 = vmatprep.subr.mxu0 0.0
    %284 = vmatpush2.msra.mxu0 0.0
    %285 = vmatprep.mubr.f32.mxu0 0.0
    %286 = vmatmul.mubr.f32.gmra.mxu0 %v219
    %v287 = vpop.f32.mrf.mxu0
    %v288 = vadd.f32 %v217, %v287
    %v289 = vpop.f32.mrf.mxu0
    %290 = vdwg.mxu0
    %v291 = vadd.f32 %v204, %v288
    %v292 = vxor.u32 %v291, 2147483648
    %v293 = vmul.f32 %v292, 1.442695
    %v294 = vpow.pop %v293
    %v295 = vadd.f32 %v294, 1.0
    %v296 = vrcp.pop %v295
    %v297 = vmul.f32 1.0, %v296
    %299 = vrot.lane.b32.xlu0 %v288, 96
    %v300 = vpop.permute.xlu0 %299
    %v302 = vmul.f32 %v297, %v300
    %304 = vrot.lane.b32.xlu0 %v302, 32
    %v305 = vpop.permute.xlu0 %304
    %v307 = vadd.f32 %v204, %v305
    %v308 = vtanh.pop %v307
    %v309 = vsub.f32 0.0, %v308
    %311 = vrot.lane.b32.xlu0 %v309, 112
    %v312 = vpop.permute.xlu0 %311
    %v314 = vmul.f32 %v297, %v312
    %316 = vrot.lane.b32.xlu0 %v314, 16
    %v317 = vpop.permute.xlu0 %316
    %v319 = vadd.f32 %v308, %v317
    %321 = vrot.lane.b32.xlu0 %v319, 96
    %v322 = vpop.permute.xlu0 %321
    %vm324 = vcmask 123904
    %v325 = vsel %vm324, %v322, 0.0
    %326 = vadd.xlane.f32.xlu0 %v325
    %v327 = vpop.xlane.xlu0 %326
    %v328 = vrot.slane %v327, 4
    %v329 = vadd.f32 %v327, %v328
    %v330 = vrot.slane %v329, 2
    %v331 = vadd.f32 %v329, %v330
    %v332 = vrot.slane %v331, 1
    %v333 = vadd.f32 %v331, %v332
    %s334 = vtos %v333
    %v335 = vstv %s334
    %v336 = vrcp.pop 32.0
    %v337 = vmul.f32 %v335, %v336
    %v338 = vsub.f32 %v319, %v337
    %v339 = vmul.f32 %v338, %v338
    %341 = vrot.lane.b32.xlu0 %v339, 96
    %v342 = vpop.permute.xlu0 %341
    %v344 = vsel %vm324, %v342, 0.0
    %345 = vadd.xlane.f32.xlu0 %v344
    %v346 = vpop.xlane.xlu0 %345
    %v347 = vrot.slane %v346, 4
    %v348 = vadd.f32 %v346, %v347
    %v349 = vrot.slane %v348, 2
    %v350 = vadd.f32 %v348, %v349
    %v351 = vrot.slane %v350, 1
    %v352 = vadd.f32 %v350, %v351
    %s353 = vtos %v352
    %v354 = vstv %s353
    %v355 = vmul.f32 %v354, %v336
    %v356 = vadd.f32 %v355, 1e-05
    %v357 = vrsqrt.pop %v356
    %s358 = sld [smem:[#allocation2]]
    %v359 = vstv %s358
    %v360 = vmul.f32 %v357, %v359
    %s361 = sld [smem:[#allocation2 + $0x80]]
    %v362 = vmul.f32 %v337, %v360
    %v363 = vstv %s361
    %v364 = vsub.f32 %v363, %v362
    %v365 = vmul.f32 %v319, %v360
    %v366 = vadd.f32 %v365, %v364
    %v368 = vlaneseq
    %v369 = vshrl.u32 %v368, 7
    %v370 = vsub.s32 0, %v369
    %v371 = vrot.slane %v213, %v370
    %v372 = vlaneseq
    %v373 = vshrl.u32 %v372, 7
    %v374 = vsub.s32 1, %v373
    %v375 = vrot.slane %v213, %v374
    %379 = vrot.lane.b32.xlu0 %v366, 96
    %v380 = vpop.permute.xlu0 %379
    %v381 = vsel %vm133, %v380, 0
    %383 = vmatprep.subr.mxu0 0.0
    %384 = vmatpush1.msra.mxu0 0.0
    %385 = vmatprep.subr.mxu0 0.0
    %386 = vmatpush1.msra.mxu0 0.0
    %387 = vmatprep.subr.mxu0 0.0
    %388 = vmatpush1.msra.mxu0 0.0
    %389 = vmatprep.subr.mxu0 0.0
    %390 = vmatpush1.msra.mxu0 0.0
    %391 = vmatprep.subr.mxu0 0.0
    %392 = vmatpush1.msra.mxu0 0.0
    %393 = vmatprep.subr.mxu0 0.0
    %394 = vmatpush1.msra.mxu0 0.0
    %395 = vmatprep.subr.mxu0 0.0
    %396 = vmatpush1.msra.mxu0 0.0
    %397 = vmatprep.subr.mxu0 0.0
    %398 = vmatpush1.msra.mxu0 0.0
    %399 = vmatprep.subr.mxu0 0.0
    %400 = vmatpush1.msra.mxu0 0.0
    %401 = vmatprep.subr.mxu0 0.0
    %402 = vmatpush1.msra.mxu0 0.0
    %403 = vmatprep.subr.mxu0 0.0
    %404 = vmatpush1.msra.mxu0 0.0
    %405 = vmatprep.subr.mxu0 0.0
    %406 = vmatpush1.msra.mxu0 0.0
    %407 = vmatprep.subr.mxu0 0.0
    %408 = vmatpush1.msra.mxu0 0.0
    %409 = vmatprep.subr.mxu0 0.0
    %410 = vmatpush1.msra.mxu0 0.0
    %411 = vmatprep.subr.mxu0 %v212
    %412 = vmatpush1.msra.mxu0 %v211
    %413 = vmatprep.subr.mxu0 %v210
    %414 = vmatpush1.msra.mxu0 %v209
    %415 = vmatprep.subr.mxu0 0.0
    %416 = vmatpush2.msra.mxu0 0.0
    %417 = vmatprep.subr.mxu0 0.0
    %418 = vmatpush2.msra.mxu0 0.0
    %419 = vmatprep.subr.mxu0 0.0
    %420 = vmatpush2.msra.mxu0 0.0
    %421 = vmatprep.subr.mxu0 0.0
    %422 = vmatpush2.msra.mxu0 0.0
    %423 = vmatprep.subr.mxu0 0.0
    %424 = vmatpush2.msra.mxu0 0.0
    %425 = vmatprep.subr.mxu0 0.0
    %426 = vmatpush2.msra.mxu0 0.0
    %427 = vmatprep.subr.mxu0 0.0
    %428 = vmatpush2.msra.mxu0 0.0
    %429 = vmatprep.subr.mxu0 0.0
    %430 = vmatpush2.msra.mxu0 0.0
    %431 = vmatprep.subr.mxu0 0.0
    %432 = vmatpush2.msra.mxu0 0.0
    %433 = vmatprep.subr.mxu0 0.0
    %434 = vmatpush2.msra.mxu0 0.0
    %435 = vmatprep.subr.mxu0 0.0
    %436 = vmatpush2.msra.mxu0 0.0
    %437 = vmatprep.subr.mxu0 0.0
    %438 = vmatpush2.msra.mxu0 0.0
    %439 = vmatprep.subr.mxu0 0.0
    %440 = vmatpush2.msra.mxu0 0.0
    %441 = vmatprep.subr.mxu0 0.0
    %442 = vmatpush2.msra.mxu0 0.0
    %443 = vmatprep.subr.mxu0 0.0
    %444 = vmatpush2.msra.mxu0 0.0
    %445 = vmatprep.subr.mxu0 0.0
    %446 = vmatpush2.msra.mxu0 0.0
    %447 = vmatprep.mubr.f32.mxu0 0.0
    %448 = vmatmul.mubr.f32.gmra.mxu0 %v381
    %v449 = vpop.f32.mrf.mxu0
    %v450 = vadd.f32 %v371, %v449
    %v451 = vpop.f32.mrf.mxu0
    %v452 = vadd.f32 %v375, %v451
    %453 = vdwg.mxu0
    %v454 = vmax.f32 %v450, 0.0
    %v455 = vmax.f32 %v452, 0.0
    %v458 = vcombine.low %v454, %v455
    %v460 = vunpack.c.l.s4 1966171168
    %v461 = vunpack.c.0.s8 %v460
    %v462 = vlaneseq
    %v463 = vshrl.u32 %v462, 7
    %v464 = vsub.s32 %v461, %v463
    %v465 = vrot.slane %v458, %v464
    %v466 = vcombine.high %v465, %v465
    %v468 = vunpack.c.l.s4 1966171168
    %v469 = vunpack.c.0.s8 %v468
    %v470 = vlaneseq
    %v471 = vshrl.u32 %v470, 7
    %v472 = vsub.s32 %v469, %v471
    %v473 = vrot.slane %v465, %v472
    %v475 = vunpack.c.l.s4 1966171168
    %v476 = vunpack.c.0.s8 %v475
    %v477 = vlaneseq
    %v478 = vshrl.u32 %v477, 7
    %v479 = vsub.s32 %v476, %v478
    %v480 = vrot.slane %v466, %v479
    %v483 = vlaneseq
    %vm484 = vcmp.ge.s32.totalorder %v483, 0
    %vm485 = vcmp.lt.s32.totalorder %v483, 256
    %vm486 = vmand %vm484, %vm485
    %487 = vst.msk [vmem:[%s8] ss:$8 sm:$0x3] %vm486, %v473
    %488 = vst.msk [vmem:[%s8] ss:$8 sm:$0x0] %vm486, %v473
    %s489 = scalar_lea.vmem %s8, 32
    %490 = vst.msk [vmem:[%s489] ss:$8 sm:$0x3] %vm486, %v480
    %491 = vst.msk [vmem:[%s489] ss:$8 sm:$0x0] %vm486, %v480
    %v492 = vsel %vm133, %v322, 0
    %494 = vmatprep.subr.mxu0 0.0
    %495 = vmatpush1.msra.mxu0 0.0
    %496 = vmatprep.subr.mxu0 0.0
    %497 = vmatpush1.msra.mxu0 0.0
    %498 = vmatprep.subr.mxu0 0.0
    %499 = vmatpush1.msra.mxu0 0.0
    %500 = vmatprep.subr.mxu0 0.0
    %501 = vmatpush1.msra.mxu0 0.0
    %502 = vmatprep.subr.mxu0 0.0
    %503 = vmatpush1.msra.mxu0 0.0
    %504 = vmatprep.subr.mxu0 0.0
    %505 = vmatpush1.msra.mxu0 0.0
    %506 = vmatprep.subr.mxu0 0.0
    %507 = vmatpush1.msra.mxu0 0.0
    %508 = vmatprep.subr.mxu0 0.0
    %509 = vmatpush1.msra.mxu0 0.0
    %510 = vmatprep.subr.mxu0 0.0
    %511 = vmatpush1.msra.mxu0 0.0
    %512 = vmatprep.subr.mxu0 0.0
    %513 = vmatpush1.msra.mxu0 0.0
    %514 = vmatprep.subr.mxu0 0.0
    %515 = vmatpush1.msra.mxu0 0.0
    %516 = vmatprep.subr.mxu0 0.0
    %517 = vmatpush1.msra.mxu0 0.0
    %518 = vmatprep.subr.mxu0 0.0
    %519 = vmatpush1.msra.mxu0 0.0
    %520 = vmatprep.subr.mxu0 0.0
    %521 = vmatpush1.msra.mxu0 0.0
    %522 = vmatprep.subr.mxu0 0.0
    %523 = vmatpush1.msra.mxu0 %v208
    %524 = vmatprep.subr.mxu0 0.0
    %525 = vmatpush1.msra.mxu0 %v207
    %526 = vmatprep.subr.mxu0 0.0
    %527 = vmatpush2.msra.mxu0 0.0
    %528 = vmatprep.subr.mxu0 0.0
    %529 = vmatpush2.msra.mxu0 0.0
    %530 = vmatprep.subr.mxu0 0.0
    %531 = vmatpush2.msra.mxu0 0.0
    %532 = vmatprep.subr.mxu0 0.0
    %533 = vmatpush2.msra.mxu0 0.0
    %534 = vmatprep.subr.mxu0 0.0
    %535 = vmatpush2.msra.mxu0 0.0
    %536 = vmatprep.subr.mxu0 0.0
    %537 = vmatpush2.msra.mxu0 0.0
    %538 = vmatprep.subr.mxu0 0.0
    %539 = vmatpush2.msra.mxu0 0.0
    %540 = vmatprep.subr.mxu0 0.0
    %541 = vmatpush2.msra.mxu0 0.0
    %542 = vmatprep.subr.mxu0 0.0
    %543 = vmatpush2.msra.mxu0 0.0
    %544 = vmatprep.subr.mxu0 0.0
    %545 = vmatpush2.msra.mxu0 0.0
    %546 = vmatprep.subr.mxu0 0.0
    %547 = vmatpush2.msra.mxu0 0.0
    %548 = vmatprep.subr.mxu0 0.0
    %549 = vmatpush2.msra.mxu0 0.0
    %550 = vmatprep.subr.mxu0 0.0
    %551 = vmatpush2.msra.mxu0 0.0
    %552 = vmatprep.subr.mxu0 0.0
    %553 = vmatpush2.msra.mxu0 0.0
    %554 = vmatprep.subr.mxu0 0.0
    %555 = vmatpush2.msra.mxu0 0.0
    %556 = vmatprep.subr.mxu0 0.0
    %557 = vmatpush2.msra.mxu0 0.0
    %558 = vmatprep.mubr.f32.mxu0 0.0
    %559 = vmatmul.mubr.f32.gmra.mxu0 %v492
    %v560 = vpop.f32.mrf.mxu0
    %v561 = vadd.f32 %v217, %v560
    %v562 = vpop.f32.mrf.mxu0
    %563 = vdwg.mxu0
    %v564 = vadd.f32 %v204, %v561
    %v565 = vxor.u32 %v564, 2147483648
    %v566 = vmul.f32 %v565, 1.442695
    %v567 = vpow.pop %v566
    %v568 = vadd.f32 %v567, 1.0
    %v569 = vrcp.pop %v568
    %v570 = vmul.f32 1.0, %v569
    %572 = vrot.lane.b32.xlu0 %v561, 96
    %v573 = vpop.permute.xlu0 %572
    %v575 = vmul.f32 %v570, %v573
    %577 = vrot.lane.b32.xlu0 %v575, 32
    %v578 = vpop.permute.xlu0 %577
    %v580 = vadd.f32 %v204, %v578
    %v581 = vtanh.pop %v580
    %v582 = vsub.f32 %v319, %v581
    %584 = vrot.lane.b32.xlu0 %v582, 112
    %v585 = vpop.permute.xlu0 %584
    %v587 = vmul.f32 %v570, %v585
    %589 = vrot.lane.b32.xlu0 %v587, 16
    %v590 = vpop.permute.xlu0 %589
    %v592 = vadd.f32 %v581, %v590
    %594 = vrot.lane.b32.xlu0 %v592, 96
    %v595 = vpop.permute.xlu0 %594
    %v597 = vsel %vm324, %v595, 0.0
    %598 = vadd.xlane.f32.xlu0 %v597
    %v599 = vpop.xlane.xlu0 %598
    %v600 = vrot.slane %v599, 4
    %v601 = vadd.f32 %v599, %v600
    %v602 = vrot.slane %v601, 2
    %v603 = vadd.f32 %v601, %v602
    %v604 = vrot.slane %v603, 1
    %v605 = vadd.f32 %v603, %v604
    %s606 = vtos %v605
    %v607 = vstv %s606
    %v608 = vmul.f32 %v607, %v336
    %v609 = vsub.f32 %v592, %v608
    %v610 = vmul.f32 %v609, %v609
    %612 = vrot.lane.b32.xlu0 %v610, 96
    %v613 = vpop.permute.xlu0 %612
    %v615 = vsel %vm324, %v613, 0.0
    %616 = vadd.xlane.f32.xlu0 %v615
    %v617 = vpop.xlane.xlu0 %616
    %v618 = vrot.slane %v617, 4
    %v619 = vadd.f32 %v617, %v618
    %v620 = vrot.slane %v619, 2
    %v621 = vadd.f32 %v619, %v620
    %v622 = vrot.slane %v621, 1
    %v623 = vadd.f32 %v621, %v622
    %s624 = vtos %v623
    %v625 = vstv %s624
    %v626 = vmul.f32 %v625, %v336
    %v627 = vadd.f32 %v626, 1e-05
    %v628 = vrsqrt.pop %v627
    %s629 = sld [smem:[#allocation2 + $0x1]]
    %v630 = vstv %s629
    %v631 = vmul.f32 %v628, %v630
    %s632 = sld [smem:[#allocation2 + $0x81]]
    %v633 = vmul.f32 %v608, %v631
    %v634 = vstv %s632
    %v635 = vsub.f32 %v634, %v633
    %v636 = vmul.f32 %v592, %v631
    %v637 = vadd.f32 %v636, %v635
    %639 = vrot.lane.b32.xlu0 %v637, 96
    %v640 = vpop.permute.xlu0 %639
    %v641 = vsel %vm133, %v640, 0
    %643 = vmatprep.subr.mxu0 0.0
    %644 = vmatpush1.msra.mxu0 0.0
    %645 = vmatprep.subr.mxu0 0.0
    %646 = vmatpush1.msra.mxu0 0.0
    %647 = vmatprep.subr.mxu0 0.0
    %648 = vmatpush1.msra.mxu0 0.0
    %649 = vmatprep.subr.mxu0 0.0
    %650 = vmatpush1.msra.mxu0 0.0
    %651 = vmatprep.subr.mxu0 0.0
    %652 = vmatpush1.msra.mxu0 0.0
    %653 = vmatprep.subr.mxu0 0.0
    %654 = vmatpush1.msra.mxu0 0.0
    %655 = vmatprep.subr.mxu0 0.0
    %656 = vmatpush1.msra.mxu0 0.0
    %657 = vmatprep.subr.mxu0 0.0
    %658 = vmatpush1.msra.mxu0 0.0
    %659 = vmatprep.subr.mxu0 0.0
    %660 = vmatpush1.msra.mxu0 0.0
    %661 = vmatprep.subr.mxu0 0.0
    %662 = vmatpush1.msra.mxu0 0.0
    %663 = vmatprep.subr.mxu0 0.0
    %664 = vmatpush1.msra.mxu0 0.0
    %665 = vmatprep.subr.mxu0 0.0
    %666 = vmatpush1.msra.mxu0 0.0
    %667 = vmatprep.subr.mxu0 0.0
    %668 = vmatpush1.msra.mxu0 0.0
    %669 = vmatprep.subr.mxu0 0.0
    %670 = vmatpush1.msra.mxu0 0.0
    %671 = vmatprep.subr.mxu0 %v212
    %672 = vmatpush1.msra.mxu0 %v211
    %673 = vmatprep.subr.mxu0 %v210
    %674 = vmatpush1.msra.mxu0 %v209
    %675 = vmatprep.subr.mxu0 0.0
    %676 = vmatpush2.msra.mxu0 0.0
    %677 = vmatprep.subr.mxu0 0.0
    %678 = vmatpush2.msra.mxu0 0.0
    %679 = vmatprep.subr.mxu0 0.0
    %680 = vmatpush2.msra.mxu0 0.0
    %681 = vmatprep.subr.mxu0 0.0
    %682 = vmatpush2.msra.mxu0 0.0
    %683 = vmatprep.subr.mxu0 0.0
    %684 = vmatpush2.msra.mxu0 0.0
    %685 = vmatprep.subr.mxu0 0.0
    %686 = vmatpush2.msra.mxu0 0.0
    %687 = vmatprep.subr.mxu0 0.0
    %688 = vmatpush2.msra.mxu0 0.0
    %689 = vmatprep.subr.mxu0 0.0
    %690 = vmatpush2.msra.mxu0 0.0
    %691 = vmatprep.subr.mxu0 0.0
    %692 = vmatpush2.msra.mxu0 0.0
    %693 = vmatprep.subr.mxu0 0.0
    %694 = vmatpush2.msra.mxu0 0.0
    %695 = vmatprep.subr.mxu0 0.0
    %696 = vmatpush2.msra.mxu0 0.0
    %697 = vmatprep.subr.mxu0 0.0
    %698 = vmatpush2.msra.mxu0 0.0
    %699 = vmatprep.subr.mxu0 0.0
    %700 = vmatpush2.msra.mxu0 0.0
    %701 = vmatprep.subr.mxu0 0.0
    %702 = vmatpush2.msra.mxu0 0.0
    %703 = vmatprep.subr.mxu0 0.0
    %704 = vmatpush2.msra.mxu0 0.0
    %705 = vmatprep.subr.mxu0 0.0
    %706 = vmatpush2.msra.mxu0 0.0
    %707 = vmatprep.mubr.f32.mxu0 0.0
    %708 = vmatmul.mubr.f32.gmra.mxu0 %v641
    %v709 = vpop.f32.mrf.mxu0
    %v710 = vadd.f32 %v371, %v709
    %v711 = vpop.f32.mrf.mxu0
    %v712 = vadd.f32 %v375, %v711
    %713 = vdwg.mxu0
    %v714 = vmax.f32 %v710, 0.0
    %v715 = vmax.f32 %v712, 0.0
    %v718 = vcombine.low %v714, %v715
    %v720 = vunpack.c.l.s4 1966171168
    %v721 = vunpack.c.0.s8 %v720
    %v722 = vlaneseq
    %v723 = vshrl.u32 %v722, 7
    %v724 = vsub.s32 %v721, %v723
    %v725 = vrot.slane %v718, %v724
    %v726 = vcombine.high %v725, %v725
    %v728 = vunpack.c.l.s4 1966171168
    %v729 = vunpack.c.0.s8 %v728
    %v730 = vlaneseq
    %v731 = vshrl.u32 %v730, 7
    %v732 = vsub.s32 %v729, %v731
    %v733 = vrot.slane %v725, %v732
    %v735 = vunpack.c.l.s4 1966171168
    %v736 = vunpack.c.0.s8 %v735
    %v737 = vlaneseq
    %v738 = vshrl.u32 %v737, 7
    %v739 = vsub.s32 %v736, %v738
    %v740 = vrot.slane %v726, %v739
    %s743 = scalar_lea.vmem %s8, 1
    %744 = vst.msk [vmem:[%s743] ss:$8 sm:$0x3] %vm486, %v733
    %745 = vst.msk [vmem:[%s743] ss:$8 sm:$0x0] %vm486, %v733
    %s746 = scalar_lea.vmem %s8, 33
    %747 = vst.msk [vmem:[%s746] ss:$8 sm:$0x3] %vm486, %v740
    %748 = vst.msk [vmem:[%s746] ss:$8 sm:$0x0] %vm486, %v740
    %v749 = vsel %vm133, %v595, 0
    %751 = vmatprep.subr.mxu0 0.0
    %752 = vmatpush1.msra.mxu0 0.0
    %753 = vmatprep.subr.mxu0 0.0
    %754 = vmatpush1.msra.mxu0 0.0
    %755 = vmatprep.subr.mxu0 0.0
    %756 = vmatpush1.msra.mxu0 0.0
    %757 = vmatprep.subr.mxu0 0.0
    %758 = vmatpush1.msra.mxu0 0.0
    %759 = vmatprep.subr.mxu0 0.0
    %760 = vmatpush1.msra.mxu0 0.0
    %761 = vmatprep.subr.mxu0 0.0
    %762 = vmatpush1.msra.mxu0 0.0
    %763 = vmatprep.subr.mxu0 0.0
    %764 = vmatpush1.msra.mxu0 0.0
    %765 = vmatprep.subr.mxu0 0.0
    %766 = vmatpush1.msra.mxu0 0.0
    %767 = vmatprep.subr.mxu0 0.0
    %768 = vmatpush1.msra.mxu0 0.0
    %769 = vmatprep.subr.mxu0 0.0
    %770 = vmatpush1.msra.mxu0 0.0
    %771 = vmatprep.subr.mxu0 0.0
    %772 = vmatpush1.msra.mxu0 0.0
    %773 = vmatprep.subr.mxu0 0.0
    %774 = vmatpush1.msra.mxu0 0.0
    %775 = vmatprep.subr.mxu0 0.0
    %776 = vmatpush1.msra.mxu0 0.0
    %777 = vmatprep.subr.mxu0 0.0
    %778 = vmatpush1.msra.mxu0 0.0
    %779 = vmatprep.subr.mxu0 0.0
    %780 = vmatpush1.msra.mxu0 %v208
    %781 = vmatprep.subr.mxu0 0.0
    %782 = vmatpush1.msra.mxu0 %v207
    %783 = vmatprep.subr.mxu0 0.0
    %784 = vmatpush2.msra.mxu0 0.0
    %785 = vmatprep.subr.mxu0 0.0
    %786 = vmatpush2.msra.mxu0 0.0
    %787 = vmatprep.subr.mxu0 0.0
    %788 = vmatpush2.msra.mxu0 0.0
    %789 = vmatprep.subr.mxu0 0.0
    %790 = vmatpush2.msra.mxu0 0.0
    %791 = vmatprep.subr.mxu0 0.0
    %792 = vmatpush2.msra.mxu0 0.0
    %793 = vmatprep.subr.mxu0 0.0
    %794 = vmatpush2.msra.mxu0 0.0
    %795 = vmatprep.subr.mxu0 0.0
    %796 = vmatpush2.msra.mxu0 0.0
    %797 = vmatprep.subr.mxu0 0.0
    %798 = vmatpush2.msra.mxu0 0.0
    %799 = vmatprep.subr.mxu0 0.0
    %800 = vmatpush2.msra.mxu0 0.0
    %801 = vmatprep.subr.mxu0 0.0
    %802 = vmatpush2.msra.mxu0 0.0
    %803 = vmatprep.subr.mxu0 0.0
    %804 = vmatpush2.msra.mxu0 0.0
    %805 = vmatprep.subr.mxu0 0.0
    %806 = vmatpush2.msra.mxu0 0.0
    %807 = vmatprep.subr.mxu0 0.0
    %808 = vmatpush2.msra.mxu0 0.0
    %809 = vmatprep.subr.mxu0 0.0
    %810 = vmatpush2.msra.mxu0 0.0
    %811 = vmatprep.subr.mxu0 0.0
    %812 = vmatpush2.msra.mxu0 0.0
    %813 = vmatprep.subr.mxu0 0.0
    %814 = vmatpush2.msra.mxu0 0.0
    %815 = vmatprep.mubr.f32.mxu0 0.0
    %816 = vmatmul.mubr.f32.gmra.mxu0 %v749
    %v817 = vpop.f32.mrf.mxu0
    %v818 = vadd.f32 %v217, %v817
    %v819 = vpop.f32.mrf.mxu0
    %820 = vdwg.mxu0
    %v821 = vadd.f32 %v204, %v818
    %v822 = vxor.u32 %v821, 2147483648
    %v823 = vmul.f32 %v822, 1.442695
    %v824 = vpow.pop %v823
    %v825 = vadd.f32 %v824, 1.0
    %v826 = vrcp.pop %v825
    %v827 = vmul.f32 1.0, %v826
    %829 = vrot.lane.b32.xlu0 %v818, 96
    %v830 = vpop.permute.xlu0 %829
    %v832 = vmul.f32 %v827, %v830
    %834 = vrot.lane.b32.xlu0 %v832, 32
    %v835 = vpop.permute.xlu0 %834
    %v837 = vadd.f32 %v204, %v835
    %v838 = vtanh.pop %v837
    %v839 = vsub.f32 %v592, %v838
    %841 = vrot.lane.b32.xlu0 %v839, 112
    %v842 = vpop.permute.xlu0 %841
    %v844 = vmul.f32 %v827, %v842
    %846 = vrot.lane.b32.xlu0 %v844, 16
    %v847 = vpop.permute.xlu0 %846
    %v849 = vadd.f32 %v838, %v847
    %851 = vrot.lane.b32.xlu0 %v849, 96
    %v852 = vpop.permute.xlu0 %851
    %v854 = vsel %vm324, %v852, 0.0
    %855 = vadd.xlane.f32.xlu0 %v854
    %v856 = vpop.xlane.xlu0 %855
    %v857 = vrot.slane %v856, 4
    %v858 = vadd.f32 %v856, %v857
    %v859 = vrot.slane %v858, 2
    %v860 = vadd.f32 %v858, %v859
    %v861 = vrot.slane %v860, 1
    %v862 = vadd.f32 %v860, %v861
    %s863 = vtos %v862
    %v864 = vstv %s863
    %v865 = vmul.f32 %v864, %v336
    %v866 = vsub.f32 %v849, %v865
    %v867 = vmul.f32 %v866, %v866
    %869 = vrot.lane.b32.xlu0 %v867, 96
    %v870 = vpop.permute.xlu0 %869
    %v872 = vsel %vm324, %v870, 0.0
    %873 = vadd.xlane.f32.xlu0 %v872
    %v874 = vpop.xlane.xlu0 %873
    %v875 = vrot.slane %v874, 4
    %v876 = vadd.f32 %v874, %v875
    %v877 = vrot.slane %v876, 2
    %v878 = vadd.f32 %v876, %v877
    %v879 = vrot.slane %v878, 1
    %v880 = vadd.f32 %v878, %v879
    %s881 = vtos %v880
    %v882 = vstv %s881
    %v883 = vmul.f32 %v882, %v336
    %v884 = vadd.f32 %v883, 1e-05
    %v885 = vrsqrt.pop %v884
    %s886 = sld [smem:[#allocation2 + $0x2]]
    %v887 = vstv %s886
    %v888 = vmul.f32 %v885, %v887
    %s889 = sld [smem:[#allocation2 + $0x82]]
    %v890 = vmul.f32 %v865, %v888
    %v891 = vstv %s889
    %v892 = vsub.f32 %v891, %v890
    %v893 = vmul.f32 %v849, %v888
    %v894 = vadd.f32 %v893, %v892
    %896 = vrot.lane.b32.xlu0 %v894, 96
    %v897 = vpop.permute.xlu0 %896
    %v898 = vsel %vm133, %v897, 0
    %900 = vmatprep.subr.mxu0 0.0
    %901 = vmatpush1.msra.mxu0 0.0
    %902 = vmatprep.subr.mxu0 0.0
    %903 = vmatpush1.msra.mxu0 0.0
    %904 = vmatprep.subr.mxu0 0.0
    %905 = vmatpush1.msra.mxu0 0.0
    %906 = vmatprep.subr.mxu0 0.0
    %907 = vmatpush1.msra.mxu0 0.0
    %908 = vmatprep.subr.mxu0 0.0
    %909 = vmatpush1.msra.mxu0 0.0
    %910 = vmatprep.subr.mxu0 0.0
    %911 = vmatpush1.msra.mxu0 0.0
    %912 = vmatprep.subr.mxu0 0.0
    %913 = vmatpush1.msra.mxu0 0.0
    %914 = vmatprep.subr.mxu0 0.0
    %915 = vmatpush1.msra.mxu0 0.0
    %916 = vmatprep.subr.mxu0 0.0
    %917 = vmatpush1.msra.mxu0 0.0
    %918 = vmatprep.subr.mxu0 0.0
    %919 = vmatpush1.msra.mxu0 0.0
    %920 = vmatprep.subr.mxu0 0.0
    %921 = vmatpush1.msra.mxu0 0.0
    %922 = vmatprep.subr.mxu0 0.0
    %923 = vmatpush1.msra.mxu0 0.0
    %924 = vmatprep.subr.mxu0 0.0
    %925 = vmatpush1.msra.mxu0 0.0
    %926 = vmatprep.subr.mxu0 0.0
    %927 = vmatpush1.msra.mxu0 0.0
    %928 = vmatprep.subr.mxu0 %v212
    %929 = vmatpush1.msra.mxu0 %v211
    %930 = vmatprep.subr.mxu0 %v210
    %931 = vmatpush1.msra.mxu0 %v209
    %932 = vmatprep.subr.mxu0 0.0
    %933 = vmatpush2.msra.mxu0 0.0
    %934 = vmatprep.subr.mxu0 0.0
    %935 = vmatpush2.msra.mxu0 0.0
    %936 = vmatprep.subr.mxu0 0.0
    %937 = vmatpush2.msra.mxu0 0.0
    %938 = vmatprep.subr.mxu0 0.0
    %939 = vmatpush2.msra.mxu0 0.0
    %940 = vmatprep.subr.mxu0 0.0
    %941 = vmatpush2.msra.mxu0 0.0
    %942 = vmatprep.subr.mxu0 0.0
    %943 = vmatpush2.msra.mxu0 0.0
    %944 = vmatprep.subr.mxu0 0.0
    %945 = vmatpush2.msra.mxu0 0.0
    %946 = vmatprep.subr.mxu0 0.0
    %947 = vmatpush2.msra.mxu0 0.0
    %948 = vmatprep.subr.mxu0 0.0
    %949 = vmatpush2.msra.mxu0 0.0
    %950 = vmatprep.subr.mxu0 0.0
    %951 = vmatpush2.msra.mxu0 0.0
    %952 = vmatprep.subr.mxu0 0.0
    %953 = vmatpush2.msra.mxu0 0.0
    %954 = vmatprep.subr.mxu0 0.0
    %955 = vmatpush2.msra.mxu0 0.0
    %956 = vmatprep.subr.mxu0 0.0
    %957 = vmatpush2.msra.mxu0 0.0
    %958 = vmatprep.subr.mxu0 0.0
    %959 = vmatpush2.msra.mxu0 0.0
    %960 = vmatprep.subr.mxu0 0.0
    %961 = vmatpush2.msra.mxu0 0.0
    %962 = vmatprep.subr.mxu0 0.0
    %963 = vmatpush2.msra.mxu0 0.0
    %964 = vmatprep.mubr.f32.mxu0 0.0
    %965 = vmatmul.mubr.f32.gmra.mxu0 %v898
    %v966 = vpop.f32.mrf.mxu0
    %v967 = vadd.f32 %v371, %v966
    %v968 = vpop.f32.mrf.mxu0
    %v969 = vadd.f32 %v375, %v968
    %970 = vdwg.mxu0
    %v971 = vmax.f32 %v967, 0.0
    %v972 = vmax.f32 %v969, 0.0
    %v975 = vcombine.low %v971, %v972
    %v977 = vunpack.c.l.s4 1966171168
    %v978 = vunpack.c.0.s8 %v977
    %v979 = vlaneseq
    %v980 = vshrl.u32 %v979, 7
    %v981 = vsub.s32 %v978, %v980
    %v982 = vrot.slane %v975, %v981
    %v983 = vcombine.high %v982, %v982
    %v985 = vunpack.c.l.s4 1966171168
    %v986 = vunpack.c.0.s8 %v985
    %v987 = vlaneseq
    %v988 = vshrl.u32 %v987, 7
    %v989 = vsub.s32 %v986, %v988
    %v990 = vrot.slane %v982, %v989
    %v992 = vunpack.c.l.s4 1966171168
    %v993 = vunpack.c.0.s8 %v992
    %v994 = vlaneseq
    %v995 = vshrl.u32 %v994, 7
    %v996 = vsub.s32 %v993, %v995
    %v997 = vrot.slane %v983, %v996
    %s1000 = scalar_lea.vmem %s8, 2
    %1001 = vst.msk [vmem:[%s1000] ss:$8 sm:$0x3] %vm486, %v990
    %1002 = vst.msk [vmem:[%s1000] ss:$8 sm:$0x0] %vm486, %v990
    %s1003 = scalar_lea.vmem %s8, 34
    %1004 = vst.msk [vmem:[%s1003] ss:$8 sm:$0x3] %vm486, %v997
    %1005 = vst.msk [vmem:[%s1003] ss:$8 sm:$0x0] %vm486, %v997
    %v1006 = vsel %vm133, %v852, 0
    %1008 = vmatprep.subr.mxu0 0.0
    %1009 = vmatpush1.msra.mxu0 0.0
    %1010 = vmatprep.subr.mxu0 0.0
    %1011 = vmatpush1.msra.mxu0 0.0
    %1012 = vmatprep.subr.mxu0 0.0
    %1013 = vmatpush1.msra.mxu0 0.0
    %1014 = vmatprep.subr.mxu0 0.0
    %1015 = vmatpush1.msra.mxu0 0.0
    %1016 = vmatprep.subr.mxu0 0.0
    %1017 = vmatpush1.msra.mxu0 0.0
    %1018 = vmatprep.subr.mxu0 0.0
    %1019 = vmatpush1.msra.mxu0 0.0
    %1020 = vmatprep.subr.mxu0 0.0
    %1021 = vmatpush1.msra.mxu0 0.0
    %1022 = vmatprep.subr.mxu0 0.0
    %1023 = vmatpush1.msra.mxu0 0.0
    %1024 = vmatprep.subr.mxu0 0.0
    %1025 = vmatpush1.msra.mxu0 0.0
    %1026 = vmatprep.subr.mxu0 0.0
    %1027 = vmatpush1.msra.mxu0 0.0
    %1028 = vmatprep.subr.mxu0 0.0
    %1029 = vmatpush1.msra.mxu0 0.0
    %1030 = vmatprep.subr.mxu0 0.0
    %1031 = vmatpush1.msra.mxu0 0.0
    %1032 = vmatprep.subr.mxu0 0.0
    %1033 = vmatpush1.msra.mxu0 0.0
    %1034 = vmatprep.subr.mxu0 0.0
    %1035 = vmatpush1.msra.mxu0 0.0
    %1036 = vmatprep.subr.mxu0 0.0
    %1037 = vmatpush1.msra.mxu0 %v208
    %1038 = vmatprep.subr.mxu0 0.0
    %1039 = vmatpush1.msra.mxu0 %v207
    %1040 = vmatprep.subr.mxu0 0.0
    %1041 = vmatpush2.msra.mxu0 0.0
    %1042 = vmatprep.subr.mxu0 0.0
    %1043 = vmatpush2.msra.mxu0 0.0
    %1044 = vmatprep.subr.mxu0 0.0
    %1045 = vmatpush2.msra.mxu0 0.0
    %1046 = vmatprep.subr.mxu0 0.0
    %1047 = vmatpush2.msra.mxu0 0.0
    %1048 = vmatprep.subr.mxu0 0.0
    %1049 = vmatpush2.msra.mxu0 0.0
    %1050 = vmatprep.subr.mxu0 0.0
    %1051 = vmatpush2.msra.mxu0 0.0
    %1052 = vmatprep.subr.mxu0 0.0
    %1053 = vmatpush2.msra.mxu0 0.0
    %1054 = vmatprep.subr.mxu0 0.0
    %1055 = vmatpush2.msra.mxu0 0.0
    %1056 = vmatprep.subr.mxu0 0.0
    %1057 = vmatpush2.msra.mxu0 0.0
    %1058 = vmatprep.subr.mxu0 0.0
    %1059 = vmatpush2.msra.mxu0 0.0
    %1060 = vmatprep.subr.mxu0 0.0
    %1061 = vmatpush2.msra.mxu0 0.0
    %1062 = vmatprep.subr.mxu0 0.0
    %1063 = vmatpush2.msra.mxu0 0.0
    %1064 = vmatprep.subr.mxu0 0.0
    %1065 = vmatpush2.msra.mxu0 0.0
    %1066 = vmatprep.subr.mxu0 0.0
    %1067 = vmatpush2.msra.mxu0 0.0
    %1068 = vmatprep.subr.mxu0 0.0
    %1069 = vmatpush2.msra.mxu0 0.0
    %1070 = vmatprep.subr.mxu0 0.0
    %1071 = vmatpush2.msra.mxu0 0.0
    %1072 = vmatprep.mubr.f32.mxu0 0.0
    %1073 = vmatmul.mubr.f32.gmra.mxu0 %v1006
    %v1074 = vpop.f32.mrf.mxu0
    %v1075 = vadd.f32 %v217, %v1074
    %v1076 = vpop.f32.mrf.mxu0
    %1077 = vdwg.mxu0
    %v1078 = vadd.f32 %v204, %v1075
    %v1079 = vxor.u32 %v1078, 2147483648
    %v1080 = vmul.f32 %v1079, 1.442695
    %v1081 = vpow.pop %v1080
    %v1082 = vadd.f32 %v1081, 1.0
    %v1083 = vrcp.pop %v1082
    %v1084 = vmul.f32 1.0, %v1083
    %1086 = vrot.lane.b32.xlu0 %v1075, 96
    %v1087 = vpop.permute.xlu0 %1086
    %v1089 = vmul.f32 %v1084, %v1087
    %1091 = vrot.lane.b32.xlu0 %v1089, 32
    %v1092 = vpop.permute.xlu0 %1091
    %v1094 = vadd.f32 %v204, %v1092
    %v1095 = vtanh.pop %v1094
    %v1096 = vsub.f32 %v849, %v1095
    %1098 = vrot.lane.b32.xlu0 %v1096, 112
    %v1099 = vpop.permute.xlu0 %1098
    %v1101 = vmul.f32 %v1084, %v1099
    %1103 = vrot.lane.b32.xlu0 %v1101, 16
    %v1104 = vpop.permute.xlu0 %1103
    %v1106 = vadd.f32 %v1095, %v1104
    %1108 = vrot.lane.b32.xlu0 %v1106, 96
    %v1109 = vpop.permute.xlu0 %1108
    %v1111 = vsel %vm324, %v1109, 0.0
    %1112 = vadd.xlane.f32.xlu0 %v1111
    %v1113 = vpop.xlane.xlu0 %1112
    %v1114 = vrot.slane %v1113, 4
    %v1115 = vadd.f32 %v1113, %v1114
    %v1116 = vrot.slane %v1115, 2
    %v1117 = vadd.f32 %v1115, %v1116
    %v1118 = vrot.slane %v1117, 1
    %v1119 = vadd.f32 %v1117, %v1118
    %s1120 = vtos %v1119
    %v1121 = vstv %s1120
    %v1122 = vmul.f32 %v1121, %v336
    %v1123 = vsub.f32 %v1106, %v1122
    %v1124 = vmul.f32 %v1123, %v1123
    %1126 = vrot.lane.b32.xlu0 %v1124, 96
    %v1127 = vpop.permute.xlu0 %1126
    %v1129 = vsel %vm324, %v1127, 0.0
    %1130 = vadd.xlane.f32.xlu0 %v1129
    %v1131 = vpop.xlane.xlu0 %1130
    %v1132 = vrot.slane %v1131, 4
    %v1133 = vadd.f32 %v1131, %v1132
    %v1134 = vrot.slane %v1133, 2
    %v1135 = vadd.f32 %v1133, %v1134
    %v1136 = vrot.slane %v1135, 1
    %v1137 = vadd.f32 %v1135, %v1136
    %s1138 = vtos %v1137
    %v1139 = vstv %s1138
    %v1140 = vmul.f32 %v1139, %v336
    %v1141 = vadd.f32 %v1140, 1e-05
    %v1142 = vrsqrt.pop %v1141
    %s1143 = sld [smem:[#allocation2 + $0x3]]
    %v1144 = vstv %s1143
    %v1145 = vmul.f32 %v1142, %v1144
    %s1146 = sld [smem:[#allocation2 + $0x83]]
    %v1147 = vmul.f32 %v1122, %v1145
    %v1148 = vstv %s1146
    %v1149 = vsub.f32 %v1148, %v1147
    %v1150 = vmul.f32 %v1106, %v1145
    %v1151 = vadd.f32 %v1150, %v1149
    %1153 = vrot.lane.b32.xlu0 %v1151, 96
    %v1154 = vpop.permute.xlu0 %1153
    %v1155 = vsel %vm133, %v1154, 0
    %1157 = vmatprep.subr.mxu0 0.0
    %1158 = vmatpush1.msra.mxu0 0.0
    %1159 = vmatprep.subr.mxu0 0.0
    %1160 = vmatpush1.msra.mxu0 0.0
    %1161 = vmatprep.subr.mxu0 0.0
    %1162 = vmatpush1.msra.mxu0 0.0
    %1163 = vmatprep.subr.mxu0 0.0
    %1164 = vmatpush1.msra.mxu0 0.0
    %1165 = vmatprep.subr.mxu0 0.0
    %1166 = vmatpush1.msra.mxu0 0.0
    %1167 = vmatprep.subr.mxu0 0.0
    %1168 = vmatpush1.msra.mxu0 0.0
    %1169 = vmatprep.subr.mxu0 0.0
    %1170 = vmatpush1.msra.mxu0 0.0
    %1171 = vmatprep.subr.mxu0 0.0
    %1172 = vmatpush1.msra.mxu0 0.0
    %1173 = vmatprep.subr.mxu0 0.0
    %1174 = vmatpush1.msra.mxu0 0.0
    %1175 = vmatprep.subr.mxu0 0.0
    %1176 = vmatpush1.msra.mxu0 0.0
    %1177 = vmatprep.subr.mxu0 0.0
    %1178 = vmatpush1.msra.mxu0 0.0
    %1179 = vmatprep.subr.mxu0 0.0
    %1180 = vmatpush1.msra.mxu0 0.0
    %1181 = vmatprep.subr.mxu0 0.0
    %1182 = vmatpush1.msra.mxu0 0.0
    %1183 = vmatprep.subr.mxu0 0.0
    %1184 = vmatpush1.msra.mxu0 0.0
    %1185 = vmatprep.subr.mxu0 %v212
    %1186 = vmatpush1.msra.mxu0 %v211
    %1187 = vmatprep.subr.mxu0 %v210
    %1188 = vmatpush1.msra.mxu0 %v209
    %1189 = vmatprep.subr.mxu0 0.0
    %1190 = vmatpush2.msra.mxu0 0.0
    %1191 = vmatprep.subr.mxu0 0.0
    %1192 = vmatpush2.msra.mxu0 0.0
    %1193 = vmatprep.subr.mxu0 0.0
    %1194 = vmatpush2.msra.mxu0 0.0
    %1195 = vmatprep.subr.mxu0 0.0
    %1196 = vmatpush2.msra.mxu0 0.0
    %1197 = vmatprep.subr.mxu0 0.0
    %1198 = vmatpush2.msra.mxu0 0.0
    %1199 = vmatprep.subr.mxu0 0.0
    %1200 = vmatpush2.msra.mxu0 0.0
    %1201 = vmatprep.subr.mxu0 0.0
    %1202 = vmatpush2.msra.mxu0 0.0
    %1203 = vmatprep.subr.mxu0 0.0
    %1204 = vmatpush2.msra.mxu0 0.0
    %1205 = vmatprep.subr.mxu0 0.0
    %1206 = vmatpush2.msra.mxu0 0.0
    %1207 = vmatprep.subr.mxu0 0.0
    %1208 = vmatpush2.msra.mxu0 0.0
    %1209 = vmatprep.subr.mxu0 0.0
    %1210 = vmatpush2.msra.mxu0 0.0
    %1211 = vmatprep.subr.mxu0 0.0
    %1212 = vmatpush2.msra.mxu0 0.0
    %1213 = vmatprep.subr.mxu0 0.0
    %1214 = vmatpush2.msra.mxu0 0.0
    %1215 = vmatprep.subr.mxu0 0.0
    %1216 = vmatpush2.msra.mxu0 0.0
    %1217 = vmatprep.subr.mxu0 0.0
    %1218 = vmatpush2.msra.mxu0 0.0
    %1219 = vmatprep.subr.mxu0 0.0
    %1220 = vmatpush2.msra.mxu0 0.0
    %1221 = vmatprep.mubr.f32.mxu0 0.0
    %1222 = vmatmul.mubr.f32.gmra.mxu0 %v1155
    %v1223 = vpop.f32.mrf.mxu0
    %v1224 = vadd.f32 %v371, %v1223
    %v1225 = vpop.f32.mrf.mxu0
    %v1226 = vadd.f32 %v375, %v1225
    %1227 = vdwg.mxu0
    %v1228 = vmax.f32 %v1224, 0.0
    %v1229 = vmax.f32 %v1226, 0.0
    %v1232 = vcombine.low %v1228, %v1229
    %v1234 = vunpack.c.l.s4 1966171168
    %v1235 = vunpack.c.0.s8 %v1234
    %v1236 = vlaneseq
    %v1237 = vshrl.u32 %v1236, 7
    %v1238 = vsub.s32 %v1235, %v1237
    %v1239 = vrot.slane %v1232, %v1238
    %v1240 = vcombine.high %v1239, %v1239
    %v1242 = vunpack.c.l.s4 1966171168
    %v1243 = vunpack.c.0.s8 %v1242
    %v1244 = vlaneseq
    %v1245 = vshrl.u32 %v1244, 7
    %v1246 = vsub.s32 %v1243, %v1245
    %v1247 = vrot.slane %v1239, %v1246
    %v1249 = vunpack.c.l.s4 1966171168
    %v1250 = vunpack.c.0.s8 %v1249
    %v1251 = vlaneseq
    %v1252 = vshrl.u32 %v1251, 7
    %v1253 = vsub.s32 %v1250, %v1252
    %v1254 = vrot.slane %v1240, %v1253
    %s1257 = scalar_lea.vmem %s8, 3
    %1258 = vst.msk [vmem:[%s1257] ss:$8 sm:$0x3] %vm486, %v1247
    %1259 = vst.msk [vmem:[%s1257] ss:$8 sm:$0x0] %vm486, %v1247
    %s1260 = scalar_lea.vmem %s8, 35
    %1261 = vst.msk [vmem:[%s1260] ss:$8 sm:$0x3] %vm486, %v1254
    %1262 = vst.msk [vmem:[%s1260] ss:$8 sm:$0x0] %vm486, %v1254
    %v1263 = vsel %vm133, %v1109, 0
    %1265 = vmatprep.subr.mxu0 0.0
    %1266 = vmatpush1.msra.mxu0 0.0
    %1267 = vmatprep.subr.mxu0 0.0
    %1268 = vmatpush1.msra.mxu0 0.0
    %1269 = vmatprep.subr.mxu0 0.0
    %1270 = vmatpush1.msra.mxu0 0.0
    %1271 = vmatprep.subr.mxu0 0.0
    %1272 = vmatpush1.msra.mxu0 0.0
    %1273 = vmatprep.subr.mxu0 0.0
    %1274 = vmatpush1.msra.mxu0 0.0
    %1275 = vmatprep.subr.mxu0 0.0
    %1276 = vmatpush1.msra.mxu0 0.0
    %1277 = vmatprep.subr.mxu0 0.0
    %1278 = vmatpush1.msra.mxu0 0.0
    %1279 = vmatprep.subr.mxu0 0.0
    %1280 = vmatpush1.msra.mxu0 0.0
    %1281 = vmatprep.subr.mxu0 0.0
    %1282 = vmatpush1.msra.mxu0 0.0
    %1283 = vmatprep.subr.mxu0 0.0
    %1284 = vmatpush1.msra.mxu0 0.0
    %1285 = vmatprep.subr.mxu0 0.0
    %1286 = vmatpush1.msra.mxu0 0.0
    %1287 = vmatprep.subr.mxu0 0.0
    %1288 = vmatpush1.msra.mxu0 0.0
    %1289 = vmatprep.subr.mxu0 0.0
    %1290 = vmatpush1.msra.mxu0 0.0
    %1291 = vmatprep.subr.mxu0 0.0
    %1292 = vmatpush1.msra.mxu0 0.0
    %1293 = vmatprep.subr.mxu0 0.0
    %1294 = vmatpush1.msra.mxu0 %v208
    %1295 = vmatprep.subr.mxu0 0.0
    %1296 = vmatpush1.msra.mxu0 %v207
    %1297 = vmatprep.subr.mxu0 0.0
    %1298 = vmatpush2.msra.mxu0 0.0
    %1299 = vmatprep.subr.mxu0 0.0
    %1300 = vmatpush2.msra.mxu0 0.0
    %1301 = vmatprep.subr.mxu0 0.0
    %1302 = vmatpush2.msra.mxu0 0.0
    %1303 = vmatprep.subr.mxu0 0.0
    %1304 = vmatpush2.msra.mxu0 0.0
    %1305 = vmatprep.subr.mxu0 0.0
    %1306 = vmatpush2.msra.mxu0 0.0
    %1307 = vmatprep.subr.mxu0 0.0
    %1308 = vmatpush2.msra.mxu0 0.0
    %1309 = vmatprep.subr.mxu0 0.0
    %1310 = vmatpush2.msra.mxu0 0.0
    %1311 = vmatprep.subr.mxu0 0.0
    %1312 = vmatpush2.msra.mxu0 0.0
    %1313 = vmatprep.subr.mxu0 0.0
    %1314 = vmatpush2.msra.mxu0 0.0
    %1315 = vmatprep.subr.mxu0 0.0
    %1316 = vmatpush2.msra.mxu0 0.0
    %1317 = vmatprep.subr.mxu0 0.0
    %1318 = vmatpush2.msra.mxu0 0.0
    %1319 = vmatprep.subr.mxu0 0.0
    %1320 = vmatpush2.msra.mxu0 0.0
    %1321 = vmatprep.subr.mxu0 0.0
    %1322 = vmatpush2.msra.mxu0 0.0
    %1323 = vmatprep.subr.mxu0 0.0
    %1324 = vmatpush2.msra.mxu0 0.0
    %1325 = vmatprep.subr.mxu0 0.0
    %1326 = vmatpush2.msra.mxu0 0.0
    %1327 = vmatprep.subr.mxu0 0.0
    %1328 = vmatpush2.msra.mxu0 0.0
    %1329 = vmatprep.mubr.f32.mxu0 0.0
    %1330 = vmatmul.mubr.f32.gmra.mxu0 %v1263
    %v1331 = vpop.f32.mrf.mxu0
    %v1332 = vadd.f32 %v217, %v1331
    %v1333 = vpop.f32.mrf.mxu0
    %1334 = vdwg.mxu0
    %v1335 = vadd.f32 %v204, %v1332
    %v1336 = vxor.u32 %v1335, 2147483648
    %v1337 = vmul.f32 %v1336, 1.442695
    %v1338 = vpow.pop %v1337
    %v1339 = vadd.f32 %v1338, 1.0
    %v1340 = vrcp.pop %v1339
    %v1341 = vmul.f32 1.0, %v1340
    %1343 = vrot.lane.b32.xlu0 %v1332, 96
    %v1344 = vpop.permute.xlu0 %1343
    %v1346 = vmul.f32 %v1341, %v1344
    %1348 = vrot.lane.b32.xlu0 %v1346, 32
    %v1349 = vpop.permute.xlu0 %1348
    %v1351 = vadd.f32 %v204, %v1349
    %v1352 = vtanh.pop %v1351
    %v1353 = vsub.f32 %v1106, %v1352
    %1355 = vrot.lane.b32.xlu0 %v1353, 112
    %v1356 = vpop.permute.xlu0 %1355
    %v1358 = vmul.f32 %v1341, %v1356
    %1360 = vrot.lane.b32.xlu0 %v1358, 16
    %v1361 = vpop.permute.xlu0 %1360
    %v1363 = vadd.f32 %v1352, %v1361
    %1365 = vrot.lane.b32.xlu0 %v1363, 96
    %v1366 = vpop.permute.xlu0 %1365
    %v1368 = vsel %vm324, %v1366, 0.0
    %1369 = vadd.xlane.f32.xlu0 %v1368
    %v1370 = vpop.xlane.xlu0 %1369
    %v1371 = vrot.slane %v1370, 4
    %v1372 = vadd.f32 %v1370, %v1371
    %v1373 = vrot.slane %v1372, 2
    %v1374 = vadd.f32 %v1372, %v1373
    %v1375 = vrot.slane %v1374, 1
    %v1376 = vadd.f32 %v1374, %v1375
    %s1377 = vtos %v1376
    %v1378 = vstv %s1377
    %v1379 = vmul.f32 %v1378, %v336
    %v1380 = vsub.f32 %v1363, %v1379
    %v1381 = vmul.f32 %v1380, %v1380
    %1383 = vrot.lane.b32.xlu0 %v1381, 96
    %v1384 = vpop.permute.xlu0 %1383
    %v1386 = vsel %vm324, %v1384, 0.0
    %1387 = vadd.xlane.f32.xlu0 %v1386
    %v1388 = vpop.xlane.xlu0 %1387
    %v1389 = vrot.slane %v1388, 4
    %v1390 = vadd.f32 %v1388, %v1389
    %v1391 = vrot.slane %v1390, 2
    %v1392 = vadd.f32 %v1390, %v1391
    %v1393 = vrot.slane %v1392, 1
    %v1394 = vadd.f32 %v1392, %v1393
    %s1395 = vtos %v1394
    %v1396 = vstv %s1395
    %v1397 = vmul.f32 %v1396, %v336
    %v1398 = vadd.f32 %v1397, 1e-05
    %v1399 = vrsqrt.pop %v1398
    %s1400 = sld [smem:[#allocation2 + $0x4]]
    %v1401 = vstv %s1400
    %v1402 = vmul.f32 %v1399, %v1401
    %s1403 = sld [smem:[#allocation2 + $0x84]]
    %v1404 = vmul.f32 %v1379, %v1402
    %v1405 = vstv %s1403
    %v1406 = vsub.f32 %v1405, %v1404
    %v1407 = vmul.f32 %v1363, %v1402
    %v1408 = vadd.f32 %v1407, %v1406
    %1410 = vrot.lane.b32.xlu0 %v1408, 96
    %v1411 = vpop.permute.xlu0 %1410
    %v1412 = vsel %vm133, %v1411, 0
    %1414 = vmatprep.subr.mxu0 0.0
    %1415 = vmatpush1.msra.mxu0 0.0
    %1416 = vmatprep.subr.mxu0 0.0
    %1417 = vmatpush1.msra.mxu0 0.0
    %1418 = vmatprep.subr.mxu0 0.0
    %1419 = vmatpush1.msra.mxu0 0.0
    %1420 = vmatprep.subr.mxu0 0.0
    %1421 = vmatpush1.msra.mxu0 0.0
    %1422 = vmatprep.subr.mxu0 0.0
    %1423 = vmatpush1.msra.mxu0 0.0
    %1424 = vmatprep.subr.mxu0 0.0
    %1425 = vmatpush1.msra.mxu0 0.0
    %1426 = vmatprep.subr.mxu0 0.0
    %1427 = vmatpush1.msra.mxu0 0.0
    %1428 = vmatprep.subr.mxu0 0.0
    %1429 = vmatpush1.msra.mxu0 0.0
    %1430 = vmatprep.subr.mxu0 0.0
    %1431 = vmatpush1.msra.mxu0 0.0
    %1432 = vmatprep.subr.mxu0 0.0
    %1433 = vmatpush1.msra.mxu0 0.0
    %1434 = vmatprep.subr.mxu0 0.0
    %1435 = vmatpush1.msra.mxu0 0.0
    %1436 = vmatprep.subr.mxu0 0.0
    %1437 = vmatpush1.msra.mxu0 0.0
    %1438 = vmatprep.subr.mxu0 0.0
    %1439 = vmatpush1.msra.mxu0 0.0
    %1440 = vmatprep.subr.mxu0 0.0
    %1441 = vmatpush1.msra.mxu0 0.0
    %1442 = vmatprep.subr.mxu0 %v212
    %1443 = vmatpush1.msra.mxu0 %v211
    %1444 = vmatprep.subr.mxu0 %v210
    %1445 = vmatpush1.msra.mxu0 %v209
    %1446 = vmatprep.subr.mxu0 0.0
    %1447 = vmatpush2.msra.mxu0 0.0
    %1448 = vmatprep.subr.mxu0 0.0
    %1449 = vmatpush2.msra.mxu0 0.0
    %1450 = vmatprep.subr.mxu0 0.0
    %1451 = vmatpush2.msra.mxu0 0.0
    %1452 = vmatprep.subr.mxu0 0.0
    %1453 = vmatpush2.msra.mxu0 0.0
    %1454 = vmatprep.subr.mxu0 0.0
    %1455 = vmatpush2.msra.mxu0 0.0
    %1456 = vmatprep.subr.mxu0 0.0
    %1457 = vmatpush2.msra.mxu0 0.0
    %1458 = vmatprep.subr.mxu0 0.0
    %1459 = vmatpush2.msra.mxu0 0.0
    %1460 = vmatprep.subr.mxu0 0.0
    %1461 = vmatpush2.msra.mxu0 0.0
    %1462 = vmatprep.subr.mxu0 0.0
    %1463 = vmatpush2.msra.mxu0 0.0
    %1464 = vmatprep.subr.mxu0 0.0
    %1465 = vmatpush2.msra.mxu0 0.0
    %1466 = vmatprep.subr.mxu0 0.0
    %1467 = vmatpush2.msra.mxu0 0.0
    %1468 = vmatprep.subr.mxu0 0.0
    %1469 = vmatpush2.msra.mxu0 0.0
    %1470 = vmatprep.subr.mxu0 0.0
    %1471 = vmatpush2.msra.mxu0 0.0
    %1472 = vmatprep.subr.mxu0 0.0
    %1473 = vmatpush2.msra.mxu0 0.0
    %1474 = vmatprep.subr.mxu0 0.0
    %1475 = vmatpush2.msra.mxu0 0.0
    %1476 = vmatprep.subr.mxu0 0.0
    %1477 = vmatpush2.msra.mxu0 0.0
    %1478 = vmatprep.mubr.f32.mxu0 0.0
    %1479 = vmatmul.mubr.f32.gmra.mxu0 %v1412
    %v1480 = vpop.f32.mrf.mxu0
    %v1481 = vadd.f32 %v371, %v1480
    %v1482 = vpop.f32.mrf.mxu0
    %v1483 = vadd.f32 %v375, %v1482
    %1484 = vdwg.mxu0
    %v1485 = vmax.f32 %v1481, 0.0
    %v1486 = vmax.f32 %v1483, 0.0
    %v1489 = vcombine.low %v1485, %v1486
    %v1491 = vunpack.c.l.s4 1966171168
    %v1492 = vunpack.c.0.s8 %v1491
    %v1493 = vlaneseq
    %v1494 = vshrl.u32 %v1493, 7
    %v1495 = vsub.s32 %v1492, %v1494
    %v1496 = vrot.slane %v1489, %v1495
    %v1497 = vcombine.high %v1496, %v1496
    %v1499 = vunpack.c.l.s4 1966171168
    %v1500 = vunpack.c.0.s8 %v1499
    %v1501 = vlaneseq
    %v1502 = vshrl.u32 %v1501, 7
    %v1503 = vsub.s32 %v1500, %v1502
    %v1504 = vrot.slane %v1496, %v1503
    %v1506 = vunpack.c.l.s4 1966171168
    %v1507 = vunpack.c.0.s8 %v1506
    %v1508 = vlaneseq
    %v1509 = vshrl.u32 %v1508, 7
    %v1510 = vsub.s32 %v1507, %v1509
    %v1511 = vrot.slane %v1497, %v1510
    %s1514 = scalar_lea.vmem %s8, 4
    %1515 = vst.msk [vmem:[%s1514] ss:$8 sm:$0x3] %vm486, %v1504
    %1516 = vst.msk [vmem:[%s1514] ss:$8 sm:$0x0] %vm486, %v1504
    %s1517 = scalar_lea.vmem %s8, 36
    %1518 = vst.msk [vmem:[%s1517] ss:$8 sm:$0x3] %vm486, %v1511
    %1519 = vst.msk [vmem:[%s1517] ss:$8 sm:$0x0] %vm486, %v1511
    %v1520 = vsel %vm133, %v1366, 0
    %1522 = vmatprep.subr.mxu0 0.0
    %1523 = vmatpush1.msra.mxu0 0.0
    %1524 = vmatprep.subr.mxu0 0.0
    %1525 = vmatpush1.msra.mxu0 0.0
    %1526 = vmatprep.subr.mxu0 0.0
    %1527 = vmatpush1.msra.mxu0 0.0
    %1528 = vmatprep.subr.mxu0 0.0
    %1529 = vmatpush1.msra.mxu0 0.0
    %1530 = vmatprep.subr.mxu0 0.0
    %1531 = vmatpush1.msra.mxu0 0.0
    %1532 = vmatprep.subr.mxu0 0.0
    %1533 = vmatpush1.msra.mxu0 0.0
    %1534 = vmatprep.subr.mxu0 0.0
    %1535 = vmatpush1.msra.mxu0 0.0
    %1536 = vmatprep.subr.mxu0 0.0
    %1537 = vmatpush1.msra.mxu0 0.0
    %1538 = vmatprep.subr.mxu0 0.0
    %1539 = vmatpush1.msra.mxu0 0.0
    %1540 = vmatprep.subr.mxu0 0.0
    %1541 = vmatpush1.msra.mxu0 0.0
    %1542 = vmatprep.subr.mxu0 0.0
    %1543 = vmatpush1.msra.mxu0 0.0
    %1544 = vmatprep.subr.mxu0 0.0
    %1545 = vmatpush1.msra.mxu0 0.0
    %1546 = vmatprep.subr.mxu0 0.0
    %1547 = vmatpush1.msra.mxu0 0.0
    %1548 = vmatprep.subr.mxu0 0.0
    %1549 = vmatpush1.msra.mxu0 0.0
    %1550 = vmatprep.subr.mxu0 0.0
    %1551 = vmatpush1.msra.mxu0 %v208
    %1552 = vmatprep.subr.mxu0 0.0
    %1553 = vmatpush1.msra.mxu0 %v207
    %1554 = vmatprep.subr.mxu0 0.0
    %1555 = vmatpush2.msra.mxu0 0.0
    %1556 = vmatprep.subr.mxu0 0.0
    %1557 = vmatpush2.msra.mxu0 0.0
    %1558 = vmatprep.subr.mxu0 0.0
    %1559 = vmatpush2.msra.mxu0 0.0
    %1560 = vmatprep.subr.mxu0 0.0
    %1561 = vmatpush2.msra.mxu0 0.0
    %1562 = vmatprep.subr.mxu0 0.0
    %1563 = vmatpush2.msra.mxu0 0.0
    %1564 = vmatprep.subr.mxu0 0.0
    %1565 = vmatpush2.msra.mxu0 0.0
    %1566 = vmatprep.subr.mxu0 0.0
    %1567 = vmatpush2.msra.mxu0 0.0
    %1568 = vmatprep.subr.mxu0 0.0
    %1569 = vmatpush2.msra.mxu0 0.0
    %1570 = vmatprep.subr.mxu0 0.0
    %1571 = vmatpush2.msra.mxu0 0.0
    %1572 = vmatprep.subr.mxu0 0.0
    %1573 = vmatpush2.msra.mxu0 0.0
    %1574 = vmatprep.subr.mxu0 0.0
    %1575 = vmatpush2.msra.mxu0 0.0
    %1576 = vmatprep.subr.mxu0 0.0
    %1577 = vmatpush2.msra.mxu0 0.0
    %1578 = vmatprep.subr.mxu0 0.0
    %1579 = vmatpush2.msra.mxu0 0.0
    %1580 = vmatprep.subr.mxu0 0.0
    %1581 = vmatpush2.msra.mxu0 0.0
    %1582 = vmatprep.subr.mxu0 0.0
    %1583 = vmatpush2.msra.mxu0 0.0
    %1584 = vmatprep.subr.mxu0 0.0
    %1585 = vmatpush2.msra.mxu0 0.0
    %1586 = vmatprep.mubr.f32.mxu0 0.0
    %1587 = vmatmul.mubr.f32.gmra.mxu0 %v1520
    %v1588 = vpop.f32.mrf.mxu0
    %v1589 = vadd.f32 %v217, %v1588
    %v1590 = vpop.f32.mrf.mxu0
    %1591 = vdwg.mxu0
    %v1592 = vadd.f32 %v204, %v1589
    %v1593 = vxor.u32 %v1592, 2147483648
    %v1594 = vmul.f32 %v1593, 1.442695
    %v1595 = vpow.pop %v1594
    %v1596 = vadd.f32 %v1595, 1.0
    %v1597 = vrcp.pop %v1596
    %v1598 = vmul.f32 1.0, %v1597
    %1600 = vrot.lane.b32.xlu0 %v1589, 96
    %v1601 = vpop.permute.xlu0 %1600
    %v1603 = vmul.f32 %v1598, %v1601
    %1605 = vrot.lane.b32.xlu0 %v1603, 32
    %v1606 = vpop.permute.xlu0 %1605
    %v1608 = vadd.f32 %v204, %v1606
    %v1609 = vtanh.pop %v1608
    %v1610 = vsub.f32 %v1363, %v1609
    %1612 = vrot.lane.b32.xlu0 %v1610, 112
    %v1613 = vpop.permute.xlu0 %1612
    %v1615 = vmul.f32 %v1598, %v1613
    %1617 = vrot.lane.b32.xlu0 %v1615, 16
    %v1618 = vpop.permute.xlu0 %1617
    %v1620 = vadd.f32 %v1609, %v1618
    %1622 = vrot.lane.b32.xlu0 %v1620, 96
    %v1623 = vpop.permute.xlu0 %1622
    %v1625 = vsel %vm324, %v1623, 0.0
    %1626 = vadd.xlane.f32.xlu0 %v1625
    %v1627 = vpop.xlane.xlu0 %1626
    %v1628 = vrot.slane %v1627, 4
    %v1629 = vadd.f32 %v1627, %v1628
    %v1630 = vrot.slane %v1629, 2
    %v1631 = vadd.f32 %v1629, %v1630
    %v1632 = vrot.slane %v1631, 1
    %v1633 = vadd.f32 %v1631, %v1632
    %s1634 = vtos %v1633
    %v1635 = vstv %s1634
    %v1636 = vmul.f32 %v1635, %v336
    %v1637 = vsub.f32 %v1620, %v1636
    %v1638 = vmul.f32 %v1637, %v1637
    %1640 = vrot.lane.b32.xlu0 %v1638, 96
    %v1641 = vpop.permute.xlu0 %1640
    %v1643 = vsel %vm324, %v1641, 0.0
    %1644 = vadd.xlane.f32.xlu0 %v1643
    %v1645 = vpop.xlane.xlu0 %1644
    %v1646 = vrot.slane %v1645, 4
    %v1647 = vadd.f32 %v1645, %v1646
    %v1648 = vrot.slane %v1647, 2
    %v1649 = vadd.f32 %v1647, %v1648
    %v1650 = vrot.slane %v1649, 1
    %v1651 = vadd.f32 %v1649, %v1650
    %s1652 = vtos %v1651
    %v1653 = vstv %s1652
    %v1654 = vmul.f32 %v1653, %v336
    %v1655 = vadd.f32 %v1654, 1e-05
    %v1656 = vrsqrt.pop %v1655
    %s1657 = sld [smem:[#allocation2 + $0x5]]
    %v1658 = vstv %s1657
    %v1659 = vmul.f32 %v1656, %v1658
    %s1660 = sld [smem:[#allocation2 + $0x85]]
    %v1661 = vmul.f32 %v1636, %v1659
    %v1662 = vstv %s1660
    %v1663 = vsub.f32 %v1662, %v1661
    %v1664 = vmul.f32 %v1620, %v1659
    %v1665 = vadd.f32 %v1664, %v1663
    %1667 = vrot.lane.b32.xlu0 %v1665, 96
    %v1668 = vpop.permute.xlu0 %1667
    %v1669 = vsel %vm133, %v1668, 0
    %1671 = vmatprep.subr.mxu0 0.0
    %1672 = vmatpush1.msra.mxu0 0.0
    %1673 = vmatprep.subr.mxu0 0.0
    %1674 = vmatpush1.msra.mxu0 0.0
    %1675 = vmatprep.subr.mxu0 0.0
    %1676 = vmatpush1.msra.mxu0 0.0
    %1677 = vmatprep.subr.mxu0 0.0
    %1678 = vmatpush1.msra.mxu0 0.0
    %1679 = vmatprep.subr.mxu0 0.0
    %1680 = vmatpush1.msra.mxu0 0.0
    %1681 = vmatprep.subr.mxu0 0.0
    %1682 = vmatpush1.msra.mxu0 0.0
    %1683 = vmatprep.subr.mxu0 0.0
    %1684 = vmatpush1.msra.mxu0 0.0
    %1685 = vmatprep.subr.mxu0 0.0
    %1686 = vmatpush1.msra.mxu0 0.0
    %1687 = vmatprep.subr.mxu0 0.0
    %1688 = vmatpush1.msra.mxu0 0.0
    %1689 = vmatprep.subr.mxu0 0.0
    %1690 = vmatpush1.msra.mxu0 0.0
    %1691 = vmatprep.subr.mxu0 0.0
    %1692 = vmatpush1.msra.mxu0 0.0
    %1693 = vmatprep.subr.mxu0 0.0
    %1694 = vmatpush1.msra.mxu0 0.0
    %1695 = vmatprep.subr.mxu0 0.0
    %1696 = vmatpush1.msra.mxu0 0.0
    %1697 = vmatprep.subr.mxu0 0.0
    %1698 = vmatpush1.msra.mxu0 0.0
    %1699 = vmatprep.subr.mxu0 %v212
    %1700 = vmatpush1.msra.mxu0 %v211
    %1701 = vmatprep.subr.mxu0 %v210
    %1702 = vmatpush1.msra.mxu0 %v209
    %1703 = vmatprep.subr.mxu0 0.0
    %1704 = vmatpush2.msra.mxu0 0.0
    %1705 = vmatprep.subr.mxu0 0.0
    %1706 = vmatpush2.msra.mxu0 0.0
    %1707 = vmatprep.subr.mxu0 0.0
    %1708 = vmatpush2.msra.mxu0 0.0
    %1709 = vmatprep.subr.mxu0 0.0
    %1710 = vmatpush2.msra.mxu0 0.0
    %1711 = vmatprep.subr.mxu0 0.0
    %1712 = vmatpush2.msra.mxu0 0.0
    %1713 = vmatprep.subr.mxu0 0.0
    %1714 = vmatpush2.msra.mxu0 0.0
    %1715 = vmatprep.subr.mxu0 0.0
    %1716 = vmatpush2.msra.mxu0 0.0
    %1717 = vmatprep.subr.mxu0 0.0
    %1718 = vmatpush2.msra.mxu0 0.0
    %1719 = vmatprep.subr.mxu0 0.0
    %1720 = vmatpush2.msra.mxu0 0.0
    %1721 = vmatprep.subr.mxu0 0.0
    %1722 = vmatpush2.msra.mxu0 0.0
    %1723 = vmatprep.subr.mxu0 0.0
    %1724 = vmatpush2.msra.mxu0 0.0
    %1725 = vmatprep.subr.mxu0 0.0
    %1726 = vmatpush2.msra.mxu0 0.0
    %1727 = vmatprep.subr.mxu0 0.0
    %1728 = vmatpush2.msra.mxu0 0.0
    %1729 = vmatprep.subr.mxu0 0.0
    %1730 = vmatpush2.msra.mxu0 0.0
    %1731 = vmatprep.subr.mxu0 0.0
    %1732 = vmatpush2.msra.mxu0 0.0
    %1733 = vmatprep.subr.mxu0 0.0
    %1734 = vmatpush2.msra.mxu0 0.0
    %1735 = vmatprep.mubr.f32.mxu0 0.0
    %1736 = vmatmul.mubr.f32.gmra.mxu0 %v1669
    %v1737 = vpop.f32.mrf.mxu0
    %v1738 = vadd.f32 %v371, %v1737
    %v1739 = vpop.f32.mrf.mxu0
    %v1740 = vadd.f32 %v375, %v1739
    %1741 = vdwg.mxu0
    %v1742 = vmax.f32 %v1738, 0.0
    %v1743 = vmax.f32 %v1740, 0.0
    %v1746 = vcombine.low %v1742, %v1743
    %v1748 = vunpack.c.l.s4 1966171168
    %v1749 = vunpack.c.0.s8 %v1748
    %v1750 = vlaneseq
    %v1751 = vshrl.u32 %v1750, 7
    %v1752 = vsub.s32 %v1749, %v1751
    %v1753 = vrot.slane %v1746, %v1752
    %v1754 = vcombine.high %v1753, %v1753
    %v1756 = vunpack.c.l.s4 1966171168
    %v1757 = vunpack.c.0.s8 %v1756
    %v1758 = vlaneseq
    %v1759 = vshrl.u32 %v1758, 7
    %v1760 = vsub.s32 %v1757, %v1759
    %v1761 = vrot.slane %v1753, %v1760
    %v1763 = vunpack.c.l.s4 1966171168
    %v1764 = vunpack.c.0.s8 %v1763
    %v1765 = vlaneseq
    %v1766 = vshrl.u32 %v1765, 7
    %v1767 = vsub.s32 %v1764, %v1766
    %v1768 = vrot.slane %v1754, %v1767
    %s1771 = scalar_lea.vmem %s8, 5
    %1772 = vst.msk [vmem:[%s1771] ss:$8 sm:$0x3] %vm486, %v1761
    %1773 = vst.msk [vmem:[%s1771] ss:$8 sm:$0x0] %vm486, %v1761
    %s1774 = scalar_lea.vmem %s8, 37
    %1775 = vst.msk [vmem:[%s1774] ss:$8 sm:$0x3] %vm486, %v1768
    %1776 = vst.msk [vmem:[%s1774] ss:$8 sm:$0x0] %vm486, %v1768
    %v1777 = vsel %vm133, %v1623, 0
    %1779 = vmatprep.subr.mxu0 0.0
    %1780 = vmatpush1.msra.mxu0 0.0
    %1781 = vmatprep.subr.mxu0 0.0
    %1782 = vmatpush1.msra.mxu0 0.0
    %1783 = vmatprep.subr.mxu0 0.0
    %1784 = vmatpush1.msra.mxu0 0.0
    %1785 = vmatprep.subr.mxu0 0.0
    %1786 = vmatpush1.msra.mxu0 0.0
    %1787 = vmatprep.subr.mxu0 0.0
    %1788 = vmatpush1.msra.mxu0 0.0
    %1789 = vmatprep.subr.mxu0 0.0
    %1790 = vmatpush1.msra.mxu0 0.0
    %1791 = vmatprep.subr.mxu0 0.0
    %1792 = vmatpush1.msra.mxu0 0.0
    %1793 = vmatprep.subr.mxu0 0.0
    %1794 = vmatpush1.msra.mxu0 0.0
    %1795 = vmatprep.subr.mxu0 0.0
    %1796 = vmatpush1.msra.mxu0 0.0
    %1797 = vmatprep.subr.mxu0 0.0
    %1798 = vmatpush1.msra.mxu0 0.0
    %1799 = vmatprep.subr.mxu0 0.0
    %1800 = vmatpush1.msra.mxu0 0.0
    %1801 = vmatprep.subr.mxu0 0.0
    %1802 = vmatpush1.msra.mxu0 0.0
    %1803 = vmatprep.subr.mxu0 0.0
    %1804 = vmatpush1.msra.mxu0 0.0
    %1805 = vmatprep.subr.mxu0 0.0
    %1806 = vmatpush1.msra.mxu0 0.0
    %1807 = vmatprep.subr.mxu0 0.0
    %1808 = vmatpush1.msra.mxu0 %v208
    %1809 = vmatprep.subr.mxu0 0.0
    %1810 = vmatpush1.msra.mxu0 %v207
    %1811 = vmatprep.subr.mxu0 0.0
    %1812 = vmatpush2.msra.mxu0 0.0
    %1813 = vmatprep.subr.mxu0 0.0
    %1814 = vmatpush2.msra.mxu0 0.0
    %1815 = vmatprep.subr.mxu0 0.0
    %1816 = vmatpush2.msra.mxu0 0.0
    %1817 = vmatprep.subr.mxu0 0.0
    %1818 = vmatpush2.msra.mxu0 0.0
    %1819 = vmatprep.subr.mxu0 0.0
    %1820 = vmatpush2.msra.mxu0 0.0
    %1821 = vmatprep.subr.mxu0 0.0
    %1822 = vmatpush2.msra.mxu0 0.0
    %1823 = vmatprep.subr.mxu0 0.0
    %1824 = vmatpush2.msra.mxu0 0.0
    %1825 = vmatprep.subr.mxu0 0.0
    %1826 = vmatpush2.msra.mxu0 0.0
    %1827 = vmatprep.subr.mxu0 0.0
    %1828 = vmatpush2.msra.mxu0 0.0
    %1829 = vmatprep.subr.mxu0 0.0
    %1830 = vmatpush2.msra.mxu0 0.0
    %1831 = vmatprep.subr.mxu0 0.0
    %1832 = vmatpush2.msra.mxu0 0.0
    %1833 = vmatprep.subr.mxu0 0.0
    %1834 = vmatpush2.msra.mxu0 0.0
    %1835 = vmatprep.subr.mxu0 0.0
    %1836 = vmatpush2.msra.mxu0 0.0
    %1837 = vmatprep.subr.mxu0 0.0
    %1838 = vmatpush2.msra.mxu0 0.0
    %1839 = vmatprep.subr.mxu0 0.0
    %1840 = vmatpush2.msra.mxu0 0.0
    %1841 = vmatprep.subr.mxu0 0.0
    %1842 = vmatpush2.msra.mxu0 0.0
    %1843 = vmatprep.mubr.f32.mxu0 0.0
    %1844 = vmatmul.mubr.f32.gmra.mxu0 %v1777
    %v1845 = vpop.f32.mrf.mxu0
    %v1846 = vadd.f32 %v217, %v1845
    %v1847 = vpop.f32.mrf.mxu0
    %1848 = vdwg.mxu0
    %v1849 = vadd.f32 %v204, %v1846
    %v1850 = vxor.u32 %v1849, 2147483648
    %v1851 = vmul.f32 %v1850, 1.442695
    %v1852 = vpow.pop %v1851
    %v1853 = vadd.f32 %v1852, 1.0
    %v1854 = vrcp.pop %v1853
    %v1855 = vmul.f32 1.0, %v1854
    %1857 = vrot.lane.b32.xlu0 %v1846, 96
    %v1858 = vpop.permute.xlu0 %1857
    %v1860 = vmul.f32 %v1855, %v1858
    %1862 = vrot.lane.b32.xlu0 %v1860, 32
    %v1863 = vpop.permute.xlu0 %1862
    %v1865 = vadd.f32 %v204, %v1863
    %v1866 = vtanh.pop %v1865
    %v1867 = vsub.f32 %v1620, %v1866
    %1869 = vrot.lane.b32.xlu0 %v1867, 112
    %v1870 = vpop.permute.xlu0 %1869
    %v1872 = vmul.f32 %v1855, %v1870
    %1874 = vrot.lane.b32.xlu0 %v1872, 16
    %v1875 = vpop.permute.xlu0 %1874
    %v1877 = vadd.f32 %v1866, %v1875
    %1879 = vrot.lane.b32.xlu0 %v1877, 96
    %v1880 = vpop.permute.xlu0 %1879
    %v1882 = vsel %vm324, %v1880, 0.0
    %1883 = vadd.xlane.f32.xlu0 %v1882
    %v1884 = vpop.xlane.xlu0 %1883
    %v1885 = vrot.slane %v1884, 4
    %v1886 = vadd.f32 %v1884, %v1885
    %v1887 = vrot.slane %v1886, 2
    %v1888 = vadd.f32 %v1886, %v1887
    %v1889 = vrot.slane %v1888, 1
    %v1890 = vadd.f32 %v1888, %v1889
    %s1891 = vtos %v1890
    %v1892 = vstv %s1891
    %v1893 = vmul.f32 %v1892, %v336
    %v1894 = vsub.f32 %v1877, %v1893
    %v1895 = vmul.f32 %v1894, %v1894
    %1897 = vrot.lane.b32.xlu0 %v1895, 96
    %v1898 = vpop.permute.xlu0 %1897
    %v1900 = vsel %vm324, %v1898, 0.0
    %1901 = vadd.xlane.f32.xlu0 %v1900
    %v1902 = vpop.xlane.xlu0 %1901
    %v1903 = vrot.slane %v1902, 4
    %v1904 = vadd.f32 %v1902, %v1903
    %v1905 = vrot.slane %v1904, 2
    %v1906 = vadd.f32 %v1904, %v1905
    %v1907 = vrot.slane %v1906, 1
    %v1908 = vadd.f32 %v1906, %v1907
    %s1909 = vtos %v1908
    %v1910 = vstv %s1909
    %v1911 = vmul.f32 %v1910, %v336
    %v1912 = vadd.f32 %v1911, 1e-05
    %v1913 = vrsqrt.pop %v1912
    %s1914 = sld [smem:[#allocation2 + $0x6]]
    %v1915 = vstv %s1914
    %v1916 = vmul.f32 %v1913, %v1915
    %s1917 = sld [smem:[#allocation2 + $0x86]]
    %v1918 = vmul.f32 %v1893, %v1916
    %v1919 = vstv %s1917
    %v1920 = vsub.f32 %v1919, %v1918
    %v1921 = vmul.f32 %v1877, %v1916
    %v1922 = vadd.f32 %v1921, %v1920
    %1924 = vrot.lane.b32.xlu0 %v1922, 96
    %v1925 = vpop.permute.xlu0 %1924
    %v1926 = vsel %vm133, %v1925, 0
    %1928 = vmatprep.subr.mxu0 0.0
    %1929 = vmatpush1.msra.mxu0 0.0
    %1930 = vmatprep.subr.mxu0 0.0
    %1931 = vmatpush1.msra.mxu0 0.0
    %1932 = vmatprep.subr.mxu0 0.0
    %1933 = vmatpush1.msra.mxu0 0.0
    %1934 = vmatprep.subr.mxu0 0.0
    %1935 = vmatpush1.msra.mxu0 0.0
    %1936 = vmatprep.subr.mxu0 0.0
    %1937 = vmatpush1.msra.mxu0 0.0
    %1938 = vmatprep.subr.mxu0 0.0
    %1939 = vmatpush1.msra.mxu0 0.0
    %1940 = vmatprep.subr.mxu0 0.0
    %1941 = vmatpush1.msra.mxu0 0.0
    %1942 = vmatprep.subr.mxu0 0.0
    %1943 = vmatpush1.msra.mxu0 0.0
    %1944 = vmatprep.subr.mxu0 0.0
    %1945 = vmatpush1.msra.mxu0 0.0
    %1946 = vmatprep.subr.mxu0 0.0
    %1947 = vmatpush1.msra.mxu0 0.0
    %1948 = vmatprep.subr.mxu0 0.0
    %1949 = vmatpush1.msra.mxu0 0.0
    %1950 = vmatprep.subr.mxu0 0.0
    %1951 = vmatpush1.msra.mxu0 0.0
    %1952 = vmatprep.subr.mxu0 0.0
    %1953 = vmatpush1.msra.mxu0 0.0
    %1954 = vmatprep.subr.mxu0 0.0
    %1955 = vmatpush1.msra.mxu0 0.0
    %1956 = vmatprep.subr.mxu0 %v212
    %1957 = vmatpush1.msra.mxu0 %v211
    %1958 = vmatprep.subr.mxu0 %v210
    %1959 = vmatpush1.msra.mxu0 %v209
    %1960 = vmatprep.subr.mxu0 0.0
    %1961 = vmatpush2.msra.mxu0 0.0
    %1962 = vmatprep.subr.mxu0 0.0
    %1963 = vmatpush2.msra.mxu0 0.0
    %1964 = vmatprep.subr.mxu0 0.0
    %1965 = vmatpush2.msra.mxu0 0.0
    %1966 = vmatprep.subr.mxu0 0.0
    %1967 = vmatpush2.msra.mxu0 0.0
    %1968 = vmatprep.subr.mxu0 0.0
    %1969 = vmatpush2.msra.mxu0 0.0
    %1970 = vmatprep.subr.mxu0 0.0
    %1971 = vmatpush2.msra.mxu0 0.0
    %1972 = vmatprep.subr.mxu0 0.0
    %1973 = vmatpush2.msra.mxu0 0.0
    %1974 = vmatprep.subr.mxu0 0.0
    %1975 = vmatpush2.msra.mxu0 0.0
    %1976 = vmatprep.subr.mxu0 0.0
    %1977 = vmatpush2.msra.mxu0 0.0
    %1978 = vmatprep.subr.mxu0 0.0
    %1979 = vmatpush2.msra.mxu0 0.0
    %1980 = vmatprep.subr.mxu0 0.0
    %1981 = vmatpush2.msra.mxu0 0.0
    %1982 = vmatprep.subr.mxu0 0.0
    %1983 = vmatpush2.msra.mxu0 0.0
    %1984 = vmatprep.subr.mxu0 0.0
    %1985 = vmatpush2.msra.mxu0 0.0
    %1986 = vmatprep.subr.mxu0 0.0
    %1987 = vmatpush2.msra.mxu0 0.0
    %1988 = vmatprep.subr.mxu0 0.0
    %1989 = vmatpush2.msra.mxu0 0.0
    %1990 = vmatprep.subr.mxu0 0.0
    %1991 = vmatpush2.msra.mxu0 0.0
    %1992 = vmatprep.mubr.f32.mxu0 0.0
    %1993 = vmatmul.mubr.f32.gmra.mxu0 %v1926
    %v1994 = vpop.f32.mrf.mxu0
    %v1995 = vadd.f32 %v371, %v1994
    %v1996 = vpop.f32.mrf.mxu0
    %v1997 = vadd.f32 %v375, %v1996
    %1998 = vdwg.mxu0
    %v1999 = vmax.f32 %v1995, 0.0
    %v2000 = vmax.f32 %v1997, 0.0
    %v2003 = vcombine.low %v1999, %v2000
    %v2005 = vunpack.c.l.s4 1966171168
    %v2006 = vunpack.c.0.s8 %v2005
    %v2007 = vlaneseq
    %v2008 = vshrl.u32 %v2007, 7
    %v2009 = vsub.s32 %v2006, %v2008
    %v2010 = vrot.slane %v2003, %v2009
    %v2011 = vcombine.high %v2010, %v2010
    %v2013 = vunpack.c.l.s4 1966171168
    %v2014 = vunpack.c.0.s8 %v2013
    %v2015 = vlaneseq
    %v2016 = vshrl.u32 %v2015, 7
    %v2017 = vsub.s32 %v2014, %v2016
    %v2018 = vrot.slane %v2010, %v2017
    %v2020 = vunpack.c.l.s4 1966171168
    %v2021 = vunpack.c.0.s8 %v2020
    %v2022 = vlaneseq
    %v2023 = vshrl.u32 %v2022, 7
    %v2024 = vsub.s32 %v2021, %v2023
    %v2025 = vrot.slane %v2011, %v2024
    %s2028 = scalar_lea.vmem %s8, 6
    %2029 = vst.msk [vmem:[%s2028] ss:$8 sm:$0x3] %vm486, %v2018
    %2030 = vst.msk [vmem:[%s2028] ss:$8 sm:$0x0] %vm486, %v2018
    %s2031 = scalar_lea.vmem %s8, 38
    %2032 = vst.msk [vmem:[%s2031] ss:$8 sm:$0x3] %vm486, %v2025
    %2033 = vst.msk [vmem:[%s2031] ss:$8 sm:$0x0] %vm486, %v2025
    %v2034 = vsel %vm133, %v1880, 0
    %2036 = vmatprep.subr.mxu0 0.0
    %2037 = vmatpush1.msra.mxu0 0.0
    %2038 = vmatprep.subr.mxu0 0.0
    %2039 = vmatpush1.msra.mxu0 0.0
    %2040 = vmatprep.subr.mxu0 0.0
    %2041 = vmatpush1.msra.mxu0 0.0
    %2042 = vmatprep.subr.mxu0 0.0
    %2043 = vmatpush1.msra.mxu0 0.0
    %2044 = vmatprep.subr.mxu0 0.0
    %2045 = vmatpush1.msra.mxu0 0.0
    %2046 = vmatprep.subr.mxu0 0.0
    %2047 = vmatpush1.msra.mxu0 0.0
    %2048 = vmatprep.subr.mxu0 0.0
    %2049 = vmatpush1.msra.mxu0 0.0
    %2050 = vmatprep.subr.mxu0 0.0
    %2051 = vmatpush1.msra.mxu0 0.0
    %2052 = vmatprep.subr.mxu0 0.0
    %2053 = vmatpush1.msra.mxu0 0.0
    %2054 = vmatprep.subr.mxu0 0.0
    %2055 = vmatpush1.msra.mxu0 0.0
    %2056 = vmatprep.subr.mxu0 0.0
    %2057 = vmatpush1.msra.mxu0 0.0
    %2058 = vmatprep.subr.mxu0 0.0
    %2059 = vmatpush1.msra.mxu0 0.0
    %2060 = vmatprep.subr.mxu0 0.0
    %2061 = vmatpush1.msra.mxu0 0.0
    %2062 = vmatprep.subr.mxu0 0.0
    %2063 = vmatpush1.msra.mxu0 0.0
    %2064 = vmatprep.subr.mxu0 0.0
    %2065 = vmatpush1.msra.mxu0 %v208
    %2066 = vmatprep.subr.mxu0 0.0
    %2067 = vmatpush1.msra.mxu0 %v207
    %2068 = vmatprep.subr.mxu0 0.0
    %2069 = vmatpush2.msra.mxu0 0.0
    %2070 = vmatprep.subr.mxu0 0.0
    %2071 = vmatpush2.msra.mxu0 0.0
    %2072 = vmatprep.subr.mxu0 0.0
    %2073 = vmatpush2.msra.mxu0 0.0
    %2074 = vmatprep.subr.mxu0 0.0
    %2075 = vmatpush2.msra.mxu0 0.0
    %2076 = vmatprep.subr.mxu0 0.0
    %2077 = vmatpush2.msra.mxu0 0.0
    %2078 = vmatprep.subr.mxu0 0.0
    %2079 = vmatpush2.msra.mxu0 0.0
    %2080 = vmatprep.subr.mxu0 0.0
    %2081 = vmatpush2.msra.mxu0 0.0
    %2082 = vmatprep.subr.mxu0 0.0
    %2083 = vmatpush2.msra.mxu0 0.0
    %2084 = vmatprep.subr.mxu0 0.0
    %2085 = vmatpush2.msra.mxu0 0.0
    %2086 = vmatprep.subr.mxu0 0.0
    %2087 = vmatpush2.msra.mxu0 0.0
    %2088 = vmatprep.subr.mxu0 0.0
    %2089 = vmatpush2.msra.mxu0 0.0
    %2090 = vmatprep.subr.mxu0 0.0
    %2091 = vmatpush2.msra.mxu0 0.0
    %2092 = vmatprep.subr.mxu0 0.0
    %2093 = vmatpush2.msra.mxu0 0.0
    %2094 = vmatprep.subr.mxu0 0.0
    %2095 = vmatpush2.msra.mxu0 0.0
    %2096 = vmatprep.subr.mxu0 0.0
    %2097 = vmatpush2.msra.mxu0 0.0
    %2098 = vmatprep.subr.mxu0 0.0
    %2099 = vmatpush2.msra.mxu0 0.0
    %2100 = vmatprep.mubr.f32.mxu0 0.0
    %2101 = vmatmul.mubr.f32.gmra.mxu0 %v2034
    %v2102 = vpop.f32.mrf.mxu0
    %v2103 = vadd.f32 %v217, %v2102
    %v2104 = vpop.f32.mrf.mxu0
    %2105 = vdwg.mxu0
    %v2106 = vadd.f32 %v204, %v2103
    %v2107 = vxor.u32 %v2106, 2147483648
    %v2108 = vmul.f32 %v2107, 1.442695
    %v2109 = vpow.pop %v2108
    %v2110 = vadd.f32 %v2109, 1.0
    %v2111 = vrcp.pop %v2110
    %v2112 = vmul.f32 1.0, %v2111
    %2114 = vrot.lane.b32.xlu0 %v2103, 96
    %v2115 = vpop.permute.xlu0 %2114
    %v2117 = vmul.f32 %v2112, %v2115
    %2119 = vrot.lane.b32.xlu0 %v2117, 32
    %v2120 = vpop.permute.xlu0 %2119
    %v2122 = vadd.f32 %v204, %v2120
    %v2123 = vtanh.pop %v2122
    %v2124 = vsub.f32 %v1877, %v2123
    %2126 = vrot.lane.b32.xlu0 %v2124, 112
    %v2127 = vpop.permute.xlu0 %2126
    %v2129 = vmul.f32 %v2112, %v2127
    %2131 = vrot.lane.b32.xlu0 %v2129, 16
    %v2132 = vpop.permute.xlu0 %2131
    %v2134 = vadd.f32 %v2123, %v2132
    %2136 = vrot.lane.b32.xlu0 %v2134, 96
    %v2137 = vpop.permute.xlu0 %2136
    %v2139 = vsel %vm324, %v2137, 0.0
    %2140 = vadd.xlane.f32.xlu0 %v2139
    %v2141 = vpop.xlane.xlu0 %2140
    %v2142 = vrot.slane %v2141, 4
    %v2143 = vadd.f32 %v2141, %v2142
    %v2144 = vrot.slane %v2143, 2
    %v2145 = vadd.f32 %v2143, %v2144
    %v2146 = vrot.slane %v2145, 1
    %v2147 = vadd.f32 %v2145, %v2146
    %s2148 = vtos %v2147
    %v2149 = vstv %s2148
    %v2150 = vmul.f32 %v2149, %v336
    %v2151 = vsub.f32 %v2134, %v2150
    %v2152 = vmul.f32 %v2151, %v2151
    %2154 = vrot.lane.b32.xlu0 %v2152, 96
    %v2155 = vpop.permute.xlu0 %2154
    %v2157 = vsel %vm324, %v2155, 0.0
    %2158 = vadd.xlane.f32.xlu0 %v2157
    %v2159 = vpop.xlane.xlu0 %2158
    %v2160 = vrot.slane %v2159, 4
    %v2161 = vadd.f32 %v2159, %v2160
    %v2162 = vrot.slane %v2161, 2
    %v2163 = vadd.f32 %v2161, %v2162
    %v2164 = vrot.slane %v2163, 1
    %v2165 = vadd.f32 %v2163, %v2164
    %s2166 = vtos %v2165
    %v2167 = vstv %s2166
    %v2168 = vmul.f32 %v2167, %v336
    %v2169 = vadd.f32 %v2168, 1e-05
    %v2170 = vrsqrt.pop %v2169
    %s2171 = sld [smem:[#allocation2 + $0x7]]
    %v2172 = vstv %s2171
    %v2173 = vmul.f32 %v2170, %v2172
    %s2174 = sld [smem:[#allocation2 + $0x87]]
    %v2175 = vmul.f32 %v2150, %v2173
    %v2176 = vstv %s2174
    %v2177 = vsub.f32 %v2176, %v2175
    %v2178 = vmul.f32 %v2134, %v2173
    %v2179 = vadd.f32 %v2178, %v2177
    %2181 = vrot.lane.b32.xlu0 %v2179, 96
    %v2182 = vpop.permute.xlu0 %2181
    %v2183 = vsel %vm133, %v2182, 0
    %2185 = vmatprep.subr.mxu0 0.0
    %2186 = vmatpush1.msra.mxu0 0.0
    %2187 = vmatprep.subr.mxu0 0.0
    %2188 = vmatpush1.msra.mxu0 0.0
    %2189 = vmatprep.subr.mxu0 0.0
    %2190 = vmatpush1.msra.mxu0 0.0
    %2191 = vmatprep.subr.mxu0 0.0
    %2192 = vmatpush1.msra.mxu0 0.0
    %2193 = vmatprep.subr.mxu0 0.0
    %2194 = vmatpush1.msra.mxu0 0.0
    %2195 = vmatprep.subr.mxu0 0.0
    %2196 = vmatpush1.msra.mxu0 0.0
    %2197 = vmatprep.subr.mxu0 0.0
    %2198 = vmatpush1.msra.mxu0 0.0
    %2199 = vmatprep.subr.mxu0 0.0
    %2200 = vmatpush1.msra.mxu0 0.0
    %2201 = vmatprep.subr.mxu0 0.0
    %2202 = vmatpush1.msra.mxu0 0.0
    %2203 = vmatprep.subr.mxu0 0.0
    %2204 = vmatpush1.msra.mxu0 0.0
    %2205 = vmatprep.subr.mxu0 0.0
    %2206 = vmatpush1.msra.mxu0 0.0
    %2207 = vmatprep.subr.mxu0 0.0
    %2208 = vmatpush1.msra.mxu0 0.0
    %2209 = vmatprep.subr.mxu0 0.0
    %2210 = vmatpush1.msra.mxu0 0.0
    %2211 = vmatprep.subr.mxu0 0.0
    %2212 = vmatpush1.msra.mxu0 0.0
    %2213 = vmatprep.subr.mxu0 %v212
    %2214 = vmatpush1.msra.mxu0 %v211
    %2215 = vmatprep.subr.mxu0 %v210
    %2216 = vmatpush1.msra.mxu0 %v209
    %2217 = vmatprep.subr.mxu0 0.0
    %2218 = vmatpush2.msra.mxu0 0.0
    %2219 = vmatprep.subr.mxu0 0.0
    %2220 = vmatpush2.msra.mxu0 0.0
    %2221 = vmatprep.subr.mxu0 0.0
    %2222 = vmatpush2.msra.mxu0 0.0
    %2223 = vmatprep.subr.mxu0 0.0
    %2224 = vmatpush2.msra.mxu0 0.0
    %2225 = vmatprep.subr.mxu0 0.0
    %2226 = vmatpush2.msra.mxu0 0.0
    %2227 = vmatprep.subr.mxu0 0.0
    %2228 = vmatpush2.msra.mxu0 0.0
    %2229 = vmatprep.subr.mxu0 0.0
    %2230 = vmatpush2.msra.mxu0 0.0
    %2231 = vmatprep.subr.mxu0 0.0
    %2232 = vmatpush2.msra.mxu0 0.0
    %2233 = vmatprep.subr.mxu0 0.0
    %2234 = vmatpush2.msra.mxu0 0.0
    %2235 = vmatprep.subr.mxu0 0.0
    %2236 = vmatpush2.msra.mxu0 0.0
    %2237 = vmatprep.subr.mxu0 0.0
    %2238 = vmatpush2.msra.mxu0 0.0
    %2239 = vmatprep.subr.mxu0 0.0
    %2240 = vmatpush2.msra.mxu0 0.0
    %2241 = vmatprep.subr.mxu0 0.0
    %2242 = vmatpush2.msra.mxu0 0.0
    %2243 = vmatprep.subr.mxu0 0.0
    %2244 = vmatpush2.msra.mxu0 0.0
    %2245 = vmatprep.subr.mxu0 0.0
    %2246 = vmatpush2.msra.mxu0 0.0
    %2247 = vmatprep.subr.mxu0 0.0
    %2248 = vmatpush2.msra.mxu0 0.0
    %2249 = vmatprep.mubr.f32.mxu0 0.0
    %2250 = vmatmul.mubr.f32.gmra.mxu0 %v2183
    %v2251 = vpop.f32.mrf.mxu0
    %v2252 = vadd.f32 %v371, %v2251
    %v2253 = vpop.f32.mrf.mxu0
    %v2254 = vadd.f32 %v375, %v2253
    %2255 = vdwg.mxu0
    %v2256 = vmax.f32 %v2252, 0.0
    %v2257 = vmax.f32 %v2254, 0.0
    %v2260 = vcombine.low %v2256, %v2257
    %v2262 = vunpack.c.l.s4 1966171168
    %v2263 = vunpack.c.0.s8 %v2262
    %v2264 = vlaneseq
    %v2265 = vshrl.u32 %v2264, 7
    %v2266 = vsub.s32 %v2263, %v2265
    %v2267 = vrot.slane %v2260, %v2266
    %v2268 = vcombine.high %v2267, %v2267
    %v2270 = vunpack.c.l.s4 1966171168
    %v2271 = vunpack.c.0.s8 %v2270
    %v2272 = vlaneseq
    %v2273 = vshrl.u32 %v2272, 7
    %v2274 = vsub.s32 %v2271, %v2273
    %v2275 = vrot.slane %v2267, %v2274
    %v2277 = vunpack.c.l.s4 1966171168
    %v2278 = vunpack.c.0.s8 %v2277
    %v2279 = vlaneseq
    %v2280 = vshrl.u32 %v2279, 7
    %v2281 = vsub.s32 %v2278, %v2280
    %v2282 = vrot.slane %v2268, %v2281
    %s2285 = scalar_lea.vmem %s8, 7
    %2286 = vst.msk [vmem:[%s2285] ss:$8 sm:$0x3] %vm486, %v2275
    %2287 = vst.msk [vmem:[%s2285] ss:$8 sm:$0x0] %vm486, %v2275
    %s2288 = scalar_lea.vmem %s8, 39
    %2289 = vst.msk [vmem:[%s2288] ss:$8 sm:$0x3] %vm486, %v2282
    %2290 = vst.msk [vmem:[%s2288] ss:$8 sm:$0x0] %vm486, %v2282
    %v2291 = vsel %vm133, %v2137, 0
    %2293 = vmatprep.subr.mxu0 0.0
    %2294 = vmatpush1.msra.mxu0 0.0
    %2295 = vmatprep.subr.mxu0 0.0
    %2296 = vmatpush1.msra.mxu0 0.0
    %2297 = vmatprep.subr.mxu0 0.0
    %2298 = vmatpush1.msra.mxu0 0.0
    %2299 = vmatprep.subr.mxu0 0.0
    %2300 = vmatpush1.msra.mxu0 0.0
    %2301 = vmatprep.subr.mxu0 0.0
    %2302 = vmatpush1.msra.mxu0 0.0
    %2303 = vmatprep.subr.mxu0 0.0
    %2304 = vmatpush1.msra.mxu0 0.0
    %2305 = vmatprep.subr.mxu0 0.0
    %2306 = vmatpush1.msra.mxu0 0.0
    %2307 = vmatprep.subr.mxu0 0.0
    %2308 = vmatpush1.msra.mxu0 0.0
    %2309 = vmatprep.subr.mxu0 0.0
    %2310 = vmatpush1.msra.mxu0 0.0
    %2311 = vmatprep.subr.mxu0 0.0
    %2312 = vmatpush1.msra.mxu0 0.0
    %2313 = vmatprep.subr.mxu0 0.0
    %2314 = vmatpush1.msra.mxu0 0.0
    %2315 = vmatprep.subr.mxu0 0.0
    %2316 = vmatpush1.msra.mxu0 0.0
    %2317 = vmatprep.subr.mxu0 0.0
    %2318 = vmatpush1.msra.mxu0 0.0
    %2319 = vmatprep.subr.mxu0 0.0
    %2320 = vmatpush1.msra.mxu0 0.0
    %2321 = vmatprep.subr.mxu0 0.0
    %2322 = vmatpush1.msra.mxu0 %v208
    %2323 = vmatprep.subr.mxu0 0.0
    %2324 = vmatpush1.msra.mxu0 %v207
    %2325 = vmatprep.subr.mxu0 0.0
    %2326 = vmatpush2.msra.mxu0 0.0
    %2327 = vmatprep.subr.mxu0 0.0
    %2328 = vmatpush2.msra.mxu0 0.0
    %2329 = vmatprep.subr.mxu0 0.0
    %2330 = vmatpush2.msra.mxu0 0.0
    %2331 = vmatprep.subr.mxu0 0.0
    %2332 = vmatpush2.msra.mxu0 0.0
    %2333 = vmatprep.subr.mxu0 0.0
    %2334 = vmatpush2.msra.mxu0 0.0
    %2335 = vmatprep.subr.mxu0 0.0
    %2336 = vmatpush2.msra.mxu0 0.0
    %2337 = vmatprep.subr.mxu0 0.0
    %2338 = vmatpush2.msra.mxu0 0.0
    %2339 = vmatprep.subr.mxu0 0.0
    %2340 = vmatpush2.msra.mxu0 0.0
    %2341 = vmatprep.subr.mxu0 0.0
    %2342 = vmatpush2.msra.mxu0 0.0
    %2343 = vmatprep.subr.mxu0 0.0
    %2344 = vmatpush2.msra.mxu0 0.0
    %2345 = vmatprep.subr.mxu0 0.0
    %2346 = vmatpush2.msra.mxu0 0.0
    %2347 = vmatprep.subr.mxu0 0.0
    %2348 = vmatpush2.msra.mxu0 0.0
    %2349 = vmatprep.subr.mxu0 0.0
    %2350 = vmatpush2.msra.mxu0 0.0
    %2351 = vmatprep.subr.mxu0 0.0
    %2352 = vmatpush2.msra.mxu0 0.0
    %2353 = vmatprep.subr.mxu0 0.0
    %2354 = vmatpush2.msra.mxu0 0.0
    %2355 = vmatprep.subr.mxu0 0.0
    %2356 = vmatpush2.msra.mxu0 0.0
    %2357 = vmatprep.mubr.f32.mxu0 0.0
    %2358 = vmatmul.mubr.f32.gmra.mxu0 %v2291
    %v2359 = vpop.f32.mrf.mxu0
    %v2360 = vadd.f32 %v217, %v2359
    %v2361 = vpop.f32.mrf.mxu0
    %2362 = vdwg.mxu0
    %v2363 = vadd.f32 %v204, %v2360
    %v2364 = vxor.u32 %v2363, 2147483648
    %v2365 = vmul.f32 %v2364, 1.442695
    %v2366 = vpow.pop %v2365
    %v2367 = vadd.f32 %v2366, 1.0
    %v2368 = vrcp.pop %v2367
    %v2369 = vmul.f32 1.0, %v2368
    %2371 = vrot.lane.b32.xlu0 %v2360, 96
    %v2372 = vpop.permute.xlu0 %2371
    %v2374 = vmul.f32 %v2369, %v2372
    %2376 = vrot.lane.b32.xlu0 %v2374, 32
    %v2377 = vpop.permute.xlu0 %2376
    %v2379 = vadd.f32 %v204, %v2377
    %v2380 = vtanh.pop %v2379
    %v2381 = vsub.f32 %v2134, %v2380
    %2383 = vrot.lane.b32.xlu0 %v2381, 112
    %v2384 = vpop.permute.xlu0 %2383
    %v2386 = vmul.f32 %v2369, %v2384
    %2388 = vrot.lane.b32.xlu0 %v2386, 16
    %v2389 = vpop.permute.xlu0 %2388
    %v2391 = vadd.f32 %v2380, %v2389
    %2393 = vrot.lane.b32.xlu0 %v2391, 96
    %v2394 = vpop.permute.xlu0 %2393
    %v2396 = vsel %vm324, %v2394, 0.0
    %2397 = vadd.xlane.f32.xlu0 %v2396
    %v2398 = vpop.xlane.xlu0 %2397
    %v2399 = vrot.slane %v2398, 4
    %v2400 = vadd.f32 %v2398, %v2399
    %v2401 = vrot.slane %v2400, 2
    %v2402 = vadd.f32 %v2400, %v2401
    %v2403 = vrot.slane %v2402, 1
    %v2404 = vadd.f32 %v2402, %v2403
    %s2405 = vtos %v2404
    %v2406 = vstv %s2405
    %v2407 = vmul.f32 %v2406, %v336
    %v2408 = vsub.f32 %v2391, %v2407
    %v2409 = vmul.f32 %v2408, %v2408
    %2411 = vrot.lane.b32.xlu0 %v2409, 96
    %v2412 = vpop.permute.xlu0 %2411
    %v2414 = vsel %vm324, %v2412, 0.0
    %2415 = vadd.xlane.f32.xlu0 %v2414
    %v2416 = vpop.xlane.xlu0 %2415
    %v2417 = vrot.slane %v2416, 4
    %v2418 = vadd.f32 %v2416, %v2417
    %v2419 = vrot.slane %v2418, 2
    %v2420 = vadd.f32 %v2418, %v2419
    %v2421 = vrot.slane %v2420, 1
    %v2422 = vadd.f32 %v2420, %v2421
    %s2423 = vtos %v2422
    %v2424 = vstv %s2423
    %v2425 = vmul.f32 %v2424, %v336
    %v2426 = vadd.f32 %v2425, 1e-05
    %v2427 = vrsqrt.pop %v2426
    %s2428 = sld [smem:[#allocation2 + $0x8]]
    %v2429 = vstv %s2428
    %v2430 = vmul.f32 %v2427, %v2429
    %s2431 = sld [smem:[#allocation2 + $0x88]]
    %v2432 = vmul.f32 %v2407, %v2430
    %v2433 = vstv %s2431
    %v2434 = vsub.f32 %v2433, %v2432
    %v2435 = vmul.f32 %v2391, %v2430
    %v2436 = vadd.f32 %v2435, %v2434
    %2438 = vrot.lane.b32.xlu0 %v2436, 96
    %v2439 = vpop.permute.xlu0 %2438
    %v2440 = vsel %vm133, %v2439, 0
    %2442 = vmatprep.subr.mxu0 0.0
    %2443 = vmatpush1.msra.mxu0 0.0
    %2444 = vmatprep.subr.mxu0 0.0
    %2445 = vmatpush1.msra.mxu0 0.0
    %2446 = vmatprep.subr.mxu0 0.0
    %2447 = vmatpush1.msra.mxu0 0.0
    %2448 = vmatprep.subr.mxu0 0.0
    %2449 = vmatpush1.msra.mxu0 0.0
    %2450 = vmatprep.subr.mxu0 0.0
    %2451 = vmatpush1.msra.mxu0 0.0
    %2452 = vmatprep.subr.mxu0 0.0
    %2453 = vmatpush1.msra.mxu0 0.0
    %2454 = vmatprep.subr.mxu0 0.0
    %2455 = vmatpush1.msra.mxu0 0.0
    %2456 = vmatprep.subr.mxu0 0.0
    %2457 = vmatpush1.msra.mxu0 0.0
    %2458 = vmatprep.subr.mxu0 0.0
    %2459 = vmatpush1.msra.mxu0 0.0
    %2460 = vmatprep.subr.mxu0 0.0
    %2461 = vmatpush1.msra.mxu0 0.0
    %2462 = vmatprep.subr.mxu0 0.0
    %2463 = vmatpush1.msra.mxu0 0.0
    %2464 = vmatprep.subr.mxu0 0.0
    %2465 = vmatpush1.msra.mxu0 0.0
    %2466 = vmatprep.subr.mxu0 0.0
    %2467 = vmatpush1.msra.mxu0 0.0
    %2468 = vmatprep.subr.mxu0 0.0
    %2469 = vmatpush1.msra.mxu0 0.0
    %2470 = vmatprep.subr.mxu0 %v212
    %2471 = vmatpush1.msra.mxu0 %v211
    %2472 = vmatprep.subr.mxu0 %v210
    %2473 = vmatpush1.msra.mxu0 %v209
    %2474 = vmatprep.subr.mxu0 0.0
    %2475 = vmatpush2.msra.mxu0 0.0
    %2476 = vmatprep.subr.mxu0 0.0
    %2477 = vmatpush2.msra.mxu0 0.0
    %2478 = vmatprep.subr.mxu0 0.0
    %2479 = vmatpush2.msra.mxu0 0.0
    %2480 = vmatprep.subr.mxu0 0.0
    %2481 = vmatpush2.msra.mxu0 0.0
    %2482 = vmatprep.subr.mxu0 0.0
    %2483 = vmatpush2.msra.mxu0 0.0
    %2484 = vmatprep.subr.mxu0 0.0
    %2485 = vmatpush2.msra.mxu0 0.0
    %2486 = vmatprep.subr.mxu0 0.0
    %2487 = vmatpush2.msra.mxu0 0.0
    %2488 = vmatprep.subr.mxu0 0.0
    %2489 = vmatpush2.msra.mxu0 0.0
    %2490 = vmatprep.subr.mxu0 0.0
    %2491 = vmatpush2.msra.mxu0 0.0
    %2492 = vmatprep.subr.mxu0 0.0
    %2493 = vmatpush2.msra.mxu0 0.0
    %2494 = vmatprep.subr.mxu0 0.0
    %2495 = vmatpush2.msra.mxu0 0.0
    %2496 = vmatprep.subr.mxu0 0.0
    %2497 = vmatpush2.msra.mxu0 0.0
    %2498 = vmatprep.subr.mxu0 0.0
    %2499 = vmatpush2.msra.mxu0 0.0
    %2500 = vmatprep.subr.mxu0 0.0
    %2501 = vmatpush2.msra.mxu0 0.0
    %2502 = vmatprep.subr.mxu0 0.0
    %2503 = vmatpush2.msra.mxu0 0.0
    %2504 = vmatprep.subr.mxu0 0.0
    %2505 = vmatpush2.msra.mxu0 0.0
    %2506 = vmatprep.mubr.f32.mxu0 0.0
    %2507 = vmatmul.mubr.f32.gmra.mxu0 %v2440
    %v2508 = vpop.f32.mrf.mxu0
    %v2509 = vadd.f32 %v371, %v2508
    %v2510 = vpop.f32.mrf.mxu0
    %v2511 = vadd.f32 %v375, %v2510
    %2512 = vdwg.mxu0
    %v2513 = vmax.f32 %v2509, 0.0
    %v2514 = vmax.f32 %v2511, 0.0
    %v2517 = vcombine.low %v2513, %v2514
    %v2519 = vunpack.c.l.s4 1966171168
    %v2520 = vunpack.c.0.s8 %v2519
    %v2521 = vlaneseq
    %v2522 = vshrl.u32 %v2521, 7
    %v2523 = vsub.s32 %v2520, %v2522
    %v2524 = vrot.slane %v2517, %v2523
    %v2525 = vcombine.high %v2524, %v2524
    %v2527 = vunpack.c.l.s4 1966171168
    %v2528 = vunpack.c.0.s8 %v2527
    %v2529 = vlaneseq
    %v2530 = vshrl.u32 %v2529, 7
    %v2531 = vsub.s32 %v2528, %v2530
    %v2532 = vrot.slane %v2524, %v2531
    %v2534 = vunpack.c.l.s4 1966171168
    %v2535 = vunpack.c.0.s8 %v2534
    %v2536 = vlaneseq
    %v2537 = vshrl.u32 %v2536, 7
    %v2538 = vsub.s32 %v2535, %v2537
    %v2539 = vrot.slane %v2525, %v2538
    %s2542 = scalar_lea.vmem %s8, 16
    %2543 = vst.msk [vmem:[%s2542] ss:$8 sm:$0x3] %vm486, %v2532
    %2544 = vst.msk [vmem:[%s2542] ss:$8 sm:$0x0] %vm486, %v2532
    %s2545 = scalar_lea.vmem %s8, 48
    %2546 = vst.msk [vmem:[%s2545] ss:$8 sm:$0x3] %vm486, %v2539
    %2547 = vst.msk [vmem:[%s2545] ss:$8 sm:$0x0] %vm486, %v2539
    %v2548 = vsel %vm133, %v2394, 0
    %2550 = vmatprep.subr.mxu0 0.0
    %2551 = vmatpush1.msra.mxu0 0.0
    %2552 = vmatprep.subr.mxu0 0.0
    %2553 = vmatpush1.msra.mxu0 0.0
    %2554 = vmatprep.subr.mxu0 0.0
    %2555 = vmatpush1.msra.mxu0 0.0
    %2556 = vmatprep.subr.mxu0 0.0
    %2557 = vmatpush1.msra.mxu0 0.0
    %2558 = vmatprep.subr.mxu0 0.0
    %2559 = vmatpush1.msra.mxu0 0.0
    %2560 = vmatprep.subr.mxu0 0.0
    %2561 = vmatpush1.msra.mxu0 0.0
    %2562 = vmatprep.subr.mxu0 0.0
    %2563 = vmatpush1.msra.mxu0 0.0
    %2564 = vmatprep.subr.mxu0 0.0
    %2565 = vmatpush1.msra.mxu0 0.0
    %2566 = vmatprep.subr.mxu0 0.0
    %2567 = vmatpush1.msra.mxu0 0.0
    %2568 = vmatprep.subr.mxu0 0.0
    %2569 = vmatpush1.msra.mxu0 0.0
    %2570 = vmatprep.subr.mxu0 0.0
    %2571 = vmatpush1.msra.mxu0 0.0
    %2572 = vmatprep.subr.mxu0 0.0
    %2573 = vmatpush1.msra.mxu0 0.0
    %2574 = vmatprep.subr.mxu0 0.0
    %2575 = vmatpush1.msra.mxu0 0.0
    %2576 = vmatprep.subr.mxu0 0.0
    %2577 = vmatpush1.msra.mxu0 0.0
    %2578 = vmatprep.subr.mxu0 0.0
    %2579 = vmatpush1.msra.mxu0 %v208
    %2580 = vmatprep.subr.mxu0 0.0
    %2581 = vmatpush1.msra.mxu0 %v207
    %2582 = vmatprep.subr.mxu0 0.0
    %2583 = vmatpush2.msra.mxu0 0.0
    %2584 = vmatprep.subr.mxu0 0.0
    %2585 = vmatpush2.msra.mxu0 0.0
    %2586 = vmatprep.subr.mxu0 0.0
    %2587 = vmatpush2.msra.mxu0 0.0
    %2588 = vmatprep.subr.mxu0 0.0
    %2589 = vmatpush2.msra.mxu0 0.0
    %2590 = vmatprep.subr.mxu0 0.0
    %2591 = vmatpush2.msra.mxu0 0.0
    %2592 = vmatprep.subr.mxu0 0.0
    %2593 = vmatpush2.msra.mxu0 0.0
    %2594 = vmatprep.subr.mxu0 0.0
    %2595 = vmatpush2.msra.mxu0 0.0
    %2596 = vmatprep.subr.mxu0 0.0
    %2597 = vmatpush2.msra.mxu0 0.0
    %2598 = vmatprep.subr.mxu0 0.0
    %2599 = vmatpush2.msra.mxu0 0.0
    %2600 = vmatprep.subr.mxu0 0.0
    %2601 = vmatpush2.msra.mxu0 0.0
    %2602 = vmatprep.subr.mxu0 0.0
    %2603 = vmatpush2.msra.mxu0 0.0
    %2604 = vmatprep.subr.mxu0 0.0
    %2605 = vmatpush2.msra.mxu0 0.0
    %2606 = vmatprep.subr.mxu0 0.0
    %2607 = vmatpush2.msra.mxu0 0.0
    %2608 = vmatprep.subr.mxu0 0.0
    %2609 = vmatpush2.msra.mxu0 0.0
    %2610 = vmatprep.subr.mxu0 0.0
    %2611 = vmatpush2.msra.mxu0 0.0
    %2612 = vmatprep.subr.mxu0 0.0
    %2613 = vmatpush2.msra.mxu0 0.0
    %2614 = vmatprep.mubr.f32.mxu0 0.0
    %2615 = vmatmul.mubr.f32.gmra.mxu0 %v2548
    %v2616 = vpop.f32.mrf.mxu0
    %v2617 = vadd.f32 %v217, %v2616
    %v2618 = vpop.f32.mrf.mxu0
    %2619 = vdwg.mxu0
    %v2620 = vadd.f32 %v204, %v2617
    %v2621 = vxor.u32 %v2620, 2147483648
    %v2622 = vmul.f32 %v2621, 1.442695
    %v2623 = vpow.pop %v2622
    %v2624 = vadd.f32 %v2623, 1.0
    %v2625 = vrcp.pop %v2624
    %v2626 = vmul.f32 1.0, %v2625
    %2628 = vrot.lane.b32.xlu0 %v2617, 96
    %v2629 = vpop.permute.xlu0 %2628
    %v2631 = vmul.f32 %v2626, %v2629
    %2633 = vrot.lane.b32.xlu0 %v2631, 32
    %v2634 = vpop.permute.xlu0 %2633
    %v2636 = vadd.f32 %v204, %v2634
    %v2637 = vtanh.pop %v2636
    %v2638 = vsub.f32 %v2391, %v2637
    %2640 = vrot.lane.b32.xlu0 %v2638, 112
    %v2641 = vpop.permute.xlu0 %2640
    %v2643 = vmul.f32 %v2626, %v2641
    %2645 = vrot.lane.b32.xlu0 %v2643, 16
    %v2646 = vpop.permute.xlu0 %2645
    %v2648 = vadd.f32 %v2637, %v2646
    %2650 = vrot.lane.b32.xlu0 %v2648, 96
    %v2651 = vpop.permute.xlu0 %2650
    %v2653 = vsel %vm324, %v2651, 0.0
    %2654 = vadd.xlane.f32.xlu0 %v2653
    %v2655 = vpop.xlane.xlu0 %2654
    %v2656 = vrot.slane %v2655, 4
    %v2657 = vadd.f32 %v2655, %v2656
    %v2658 = vrot.slane %v2657, 2
    %v2659 = vadd.f32 %v2657, %v2658
    %v2660 = vrot.slane %v2659, 1
    %v2661 = vadd.f32 %v2659, %v2660
    %s2662 = vtos %v2661
    %v2663 = vstv %s2662
    %v2664 = vmul.f32 %v2663, %v336
    %v2665 = vsub.f32 %v2648, %v2664
    %v2666 = vmul.f32 %v2665, %v2665
    %2668 = vrot.lane.b32.xlu0 %v2666, 96
    %v2669 = vpop.permute.xlu0 %2668
    %v2671 = vsel %vm324, %v2669, 0.0
    %2672 = vadd.xlane.f32.xlu0 %v2671
    %v2673 = vpop.xlane.xlu0 %2672
    %v2674 = vrot.slane %v2673, 4
    %v2675 = vadd.f32 %v2673, %v2674
    %v2676 = vrot.slane %v2675, 2
    %v2677 = vadd.f32 %v2675, %v2676
    %v2678 = vrot.slane %v2677, 1
    %v2679 = vadd.f32 %v2677, %v2678
    %s2680 = vtos %v2679
    %v2681 = vstv %s2680
    %v2682 = vmul.f32 %v2681, %v336
    %v2683 = vadd.f32 %v2682, 1e-05
    %v2684 = vrsqrt.pop %v2683
    %s2685 = sld [smem:[#allocation2 + $0x9]]
    %v2686 = vstv %s2685
    %v2687 = vmul.f32 %v2684, %v2686
    %s2688 = sld [smem:[#allocation2 + $0x89]]
    %v2689 = vmul.f32 %v2664, %v2687
    %v2690 = vstv %s2688
    %v2691 = vsub.f32 %v2690, %v2689
    %v2692 = vmul.f32 %v2648, %v2687
    %v2693 = vadd.f32 %v2692, %v2691
    %2695 = vrot.lane.b32.xlu0 %v2693, 96
    %v2696 = vpop.permute.xlu0 %2695
    %v2697 = vsel %vm133, %v2696, 0
    %2699 = vmatprep.subr.mxu0 0.0
    %2700 = vmatpush1.msra.mxu0 0.0
    %2701 = vmatprep.subr.mxu0 0.0
    %2702 = vmatpush1.msra.mxu0 0.0
    %2703 = vmatprep.subr.mxu0 0.0
    %2704 = vmatpush1.msra.mxu0 0.0
    %2705 = vmatprep.subr.mxu0 0.0
    %2706 = vmatpush1.msra.mxu0 0.0
    %2707 = vmatprep.subr.mxu0 0.0
    %2708 = vmatpush1.msra.mxu0 0.0
    %2709 = vmatprep.subr.mxu0 0.0
    %2710 = vmatpush1.msra.mxu0 0.0
    %2711 = vmatprep.subr.mxu0 0.0
    %2712 = vmatpush1.msra.mxu0 0.0
    %2713 = vmatprep.subr.mxu0 0.0
    %2714 = vmatpush1.msra.mxu0 0.0
    %2715 = vmatprep.subr.mxu0 0.0
    %2716 = vmatpush1.msra.mxu0 0.0
    %2717 = vmatprep.subr.mxu0 0.0
    %2718 = vmatpush1.msra.mxu0 0.0
    %2719 = vmatprep.subr.mxu0 0.0
    %2720 = vmatpush1.msra.mxu0 0.0
    %2721 = vmatprep.subr.mxu0 0.0
    %2722 = vmatpush1.msra.mxu0 0.0
    %2723 = vmatprep.subr.mxu0 0.0
    %2724 = vmatpush1.msra.mxu0 0.0
    %2725 = vmatprep.subr.mxu0 0.0
    %2726 = vmatpush1.msra.mxu0 0.0
    %2727 = vmatprep.subr.mxu0 %v212
    %2728 = vmatpush1.msra.mxu0 %v211
    %2729 = vmatprep.subr.mxu0 %v210
    %2730 = vmatpush1.msra.mxu0 %v209
    %2731 = vmatprep.subr.mxu0 0.0
    %2732 = vmatpush2.msra.mxu0 0.0
    %2733 = vmatprep.subr.mxu0 0.0
    %2734 = vmatpush2.msra.mxu0 0.0
    %2735 = vmatprep.subr.mxu0 0.0
    %2736 = vmatpush2.msra.mxu0 0.0
    %2737 = vmatprep.subr.mxu0 0.0
    %2738 = vmatpush2.msra.mxu0 0.0
    %2739 = vmatprep.subr.mxu0 0.0
    %2740 = vmatpush2.msra.mxu0 0.0
    %2741 = vmatprep.subr.mxu0 0.0
    %2742 = vmatpush2.msra.mxu0 0.0
    %2743 = vmatprep.subr.mxu0 0.0
    %2744 = vmatpush2.msra.mxu0 0.0
    %2745 = vmatprep.subr.mxu0 0.0
    %2746 = vmatpush2.msra.mxu0 0.0
    %2747 = vmatprep.subr.mxu0 0.0
    %2748 = vmatpush2.msra.mxu0 0.0
    %2749 = vmatprep.subr.mxu0 0.0
    %2750 = vmatpush2.msra.mxu0 0.0
    %2751 = vmatprep.subr.mxu0 0.0
    %2752 = vmatpush2.msra.mxu0 0.0
    %2753 = vmatprep.subr.mxu0 0.0
    %2754 = vmatpush2.msra.mxu0 0.0
    %2755 = vmatprep.subr.mxu0 0.0
    %2756 = vmatpush2.msra.mxu0 0.0
    %2757 = vmatprep.subr.mxu0 0.0
    %2758 = vmatpush2.msra.mxu0 0.0
    %2759 = vmatprep.subr.mxu0 0.0
    %2760 = vmatpush2.msra.mxu0 0.0
    %2761 = vmatprep.subr.mxu0 0.0
    %2762 = vmatpush2.msra.mxu0 0.0
    %2763 = vmatprep.mubr.f32.mxu0 0.0
    %2764 = vmatmul.mubr.f32.gmra.mxu0 %v2697
    %v2765 = vpop.f32.mrf.mxu0
    %v2766 = vadd.f32 %v371, %v2765
    %v2767 = vpop.f32.mrf.mxu0
    %v2768 = vadd.f32 %v375, %v2767
    %2769 = vdwg.mxu0
    %v2770 = vmax.f32 %v2766, 0.0
    %v2771 = vmax.f32 %v2768, 0.0
    %v2774 = vcombine.low %v2770, %v2771
    %v2776 = vunpack.c.l.s4 1966171168
    %v2777 = vunpack.c.0.s8 %v2776
    %v2778 = vlaneseq
    %v2779 = vshrl.u32 %v2778, 7
    %v2780 = vsub.s32 %v2777, %v2779
    %v2781 = vrot.slane %v2774, %v2780
    %v2782 = vcombine.high %v2781, %v2781
    %v2784 = vunpack.c.l.s4 1966171168
    %v2785 = vunpack.c.0.s8 %v2784
    %v2786 = vlaneseq
    %v2787 = vshrl.u32 %v2786, 7
    %v2788 = vsub.s32 %v2785, %v2787
    %v2789 = vrot.slane %v2781, %v2788
    %v2791 = vunpack.c.l.s4 1966171168
    %v2792 = vunpack.c.0.s8 %v2791
    %v2793 = vlaneseq
    %v2794 = vshrl.u32 %v2793, 7
    %v2795 = vsub.s32 %v2792, %v2794
    %v2796 = vrot.slane %v2782, %v2795
    %s2799 = scalar_lea.vmem %s8, 17
    %2800 = vst.msk [vmem:[%s2799] ss:$8 sm:$0x3] %vm486, %v2789
    %2801 = vst.msk [vmem:[%s2799] ss:$8 sm:$0x0] %vm486, %v2789
    %s2802 = scalar_lea.vmem %s8, 49
    %2803 = vst.msk [vmem:[%s2802] ss:$8 sm:$0x3] %vm486, %v2796
    %2804 = vst.msk [vmem:[%s2802] ss:$8 sm:$0x0] %vm486, %v2796
    %v2805 = vsel %vm133, %v2651, 0
    %2807 = vmatprep.subr.mxu0 0.0
    %2808 = vmatpush1.msra.mxu0 0.0
    %2809 = vmatprep.subr.mxu0 0.0
    %2810 = vmatpush1.msra.mxu0 0.0
    %2811 = vmatprep.subr.mxu0 0.0
    %2812 = vmatpush1.msra.mxu0 0.0
    %2813 = vmatprep.subr.mxu0 0.0
    %2814 = vmatpush1.msra.mxu0 0.0
    %2815 = vmatprep.subr.mxu0 0.0
    %2816 = vmatpush1.msra.mxu0 0.0
    %2817 = vmatprep.subr.mxu0 0.0
    %2818 = vmatpush1.msra.mxu0 0.0
    %2819 = vmatprep.subr.mxu0 0.0
    %2820 = vmatpush1.msra.mxu0 0.0
    %2821 = vmatprep.subr.mxu0 0.0
    %2822 = vmatpush1.msra.mxu0 0.0
    %2823 = vmatprep.subr.mxu0 0.0
    %2824 = vmatpush1.msra.mxu0 0.0
    %2825 = vmatprep.subr.mxu0 0.0
    %2826 = vmatpush1.msra.mxu0 0.0
    %2827 = vmatprep.subr.mxu0 0.0
    %2828 = vmatpush1.msra.mxu0 0.0
    %2829 = vmatprep.subr.mxu0 0.0
    %2830 = vmatpush1.msra.mxu0 0.0
    %2831 = vmatprep.subr.mxu0 0.0
    %2832 = vmatpush1.msra.mxu0 0.0
    %2833 = vmatprep.subr.mxu0 0.0
    %2834 = vmatpush1.msra.mxu0 0.0
    %2835 = vmatprep.subr.mxu0 0.0
    %2836 = vmatpush1.msra.mxu0 %v208
    %2837 = vmatprep.subr.mxu0 0.0
    %2838 = vmatpush1.msra.mxu0 %v207
    %2839 = vmatprep.subr.mxu0 0.0
    %2840 = vmatpush2.msra.mxu0 0.0
    %2841 = vmatprep.subr.mxu0 0.0
    %2842 = vmatpush2.msra.mxu0 0.0
    %2843 = vmatprep.subr.mxu0 0.0
    %2844 = vmatpush2.msra.mxu0 0.0
    %2845 = vmatprep.subr.mxu0 0.0
    %2846 = vmatpush2.msra.mxu0 0.0
    %2847 = vmatprep.subr.mxu0 0.0
    %2848 = vmatpush2.msra.mxu0 0.0
    %2849 = vmatprep.subr.mxu0 0.0
    %2850 = vmatpush2.msra.mxu0 0.0
    %2851 = vmatprep.subr.mxu0 0.0
    %2852 = vmatpush2.msra.mxu0 0.0
    %2853 = vmatprep.subr.mxu0 0.0
    %2854 = vmatpush2.msra.mxu0 0.0
    %2855 = vmatprep.subr.mxu0 0.0
    %2856 = vmatpush2.msra.mxu0 0.0
    %2857 = vmatprep.subr.mxu0 0.0
    %2858 = vmatpush2.msra.mxu0 0.0
    %2859 = vmatprep.subr.mxu0 0.0
    %2860 = vmatpush2.msra.mxu0 0.0
    %2861 = vmatprep.subr.mxu0 0.0
    %2862 = vmatpush2.msra.mxu0 0.0
    %2863 = vmatprep.subr.mxu0 0.0
    %2864 = vmatpush2.msra.mxu0 0.0
    %2865 = vmatprep.subr.mxu0 0.0
    %2866 = vmatpush2.msra.mxu0 0.0
    %2867 = vmatprep.subr.mxu0 0.0
    %2868 = vmatpush2.msra.mxu0 0.0
    %2869 = vmatprep.subr.mxu0 0.0
    %2870 = vmatpush2.msra.mxu0 0.0
    %2871 = vmatprep.mubr.f32.mxu0 0.0
    %2872 = vmatmul.mubr.f32.gmra.mxu0 %v2805
    %v2873 = vpop.f32.mrf.mxu0
    %v2874 = vadd.f32 %v217, %v2873
    %v2875 = vpop.f32.mrf.mxu0
    %2876 = vdwg.mxu0
    %v2877 = vadd.f32 %v204, %v2874
    %v2878 = vxor.u32 %v2877, 2147483648
    %v2879 = vmul.f32 %v2878, 1.442695
    %v2880 = vpow.pop %v2879
    %v2881 = vadd.f32 %v2880, 1.0
    %v2882 = vrcp.pop %v2881
    %v2883 = vmul.f32 1.0, %v2882
    %2885 = vrot.lane.b32.xlu0 %v2874, 96
    %v2886 = vpop.permute.xlu0 %2885
    %v2888 = vmul.f32 %v2883, %v2886
    %2890 = vrot.lane.b32.xlu0 %v2888, 32
    %v2891 = vpop.permute.xlu0 %2890
    %v2893 = vadd.f32 %v204, %v2891
    %v2894 = vtanh.pop %v2893
    %v2895 = vsub.f32 %v2648, %v2894
    %2897 = vrot.lane.b32.xlu0 %v2895, 112
    %v2898 = vpop.permute.xlu0 %2897
    %v2900 = vmul.f32 %v2883, %v2898
    %2902 = vrot.lane.b32.xlu0 %v2900, 16
    %v2903 = vpop.permute.xlu0 %2902
    %v2905 = vadd.f32 %v2894, %v2903
    %2907 = vrot.lane.b32.xlu0 %v2905, 96
    %v2908 = vpop.permute.xlu0 %2907
    %v2910 = vsel %vm324, %v2908, 0.0
    %2911 = vadd.xlane.f32.xlu0 %v2910
    %v2912 = vpop.xlane.xlu0 %2911
    %v2913 = vrot.slane %v2912, 4
    %v2914 = vadd.f32 %v2912, %v2913
    %v2915 = vrot.slane %v2914, 2
    %v2916 = vadd.f32 %v2914, %v2915
    %v2917 = vrot.slane %v2916, 1
    %v2918 = vadd.f32 %v2916, %v2917
    %s2919 = vtos %v2918
    %v2920 = vstv %s2919
    %v2921 = vmul.f32 %v2920, %v336
    %v2922 = vsub.f32 %v2905, %v2921
    %v2923 = vmul.f32 %v2922, %v2922
    %2925 = vrot.lane.b32.xlu0 %v2923, 96
    %v2926 = vpop.permute.xlu0 %2925
    %v2928 = vsel %vm324, %v2926, 0.0
    %2929 = vadd.xlane.f32.xlu0 %v2928
    %v2930 = vpop.xlane.xlu0 %2929
    %v2931 = vrot.slane %v2930, 4
    %v2932 = vadd.f32 %v2930, %v2931
    %v2933 = vrot.slane %v2932, 2
    %v2934 = vadd.f32 %v2932, %v2933
    %v2935 = vrot.slane %v2934, 1
    %v2936 = vadd.f32 %v2934, %v2935
    %s2937 = vtos %v2936
    %v2938 = vstv %s2937
    %v2939 = vmul.f32 %v2938, %v336
    %v2940 = vadd.f32 %v2939, 1e-05
    %v2941 = vrsqrt.pop %v2940
    %s2942 = sld [smem:[#allocation2 + $0xa]]
    %v2943 = vstv %s2942
    %v2944 = vmul.f32 %v2941, %v2943
    %s2945 = sld [smem:[#allocation2 + $0x8a]]
    %v2946 = vmul.f32 %v2921, %v2944
    %v2947 = vstv %s2945
    %v2948 = vsub.f32 %v2947, %v2946
    %v2949 = vmul.f32 %v2905, %v2944
    %v2950 = vadd.f32 %v2949, %v2948
    %2952 = vrot.lane.b32.xlu0 %v2950, 96
    %v2953 = vpop.permute.xlu0 %2952
    %v2954 = vsel %vm133, %v2953, 0
    %2956 = vmatprep.subr.mxu0 0.0
    %2957 = vmatpush1.msra.mxu0 0.0
    %2958 = vmatprep.subr.mxu0 0.0
    %2959 = vmatpush1.msra.mxu0 0.0
    %2960 = vmatprep.subr.mxu0 0.0
    %2961 = vmatpush1.msra.mxu0 0.0
    %2962 = vmatprep.subr.mxu0 0.0
    %2963 = vmatpush1.msra.mxu0 0.0
    %2964 = vmatprep.subr.mxu0 0.0
    %2965 = vmatpush1.msra.mxu0 0.0
    %2966 = vmatprep.subr.mxu0 0.0
    %2967 = vmatpush1.msra.mxu0 0.0
    %2968 = vmatprep.subr.mxu0 0.0
    %2969 = vmatpush1.msra.mxu0 0.0
    %2970 = vmatprep.subr.mxu0 0.0
    %2971 = vmatpush1.msra.mxu0 0.0
    %2972 = vmatprep.subr.mxu0 0.0
    %2973 = vmatpush1.msra.mxu0 0.0
    %2974 = vmatprep.subr.mxu0 0.0
    %2975 = vmatpush1.msra.mxu0 0.0
    %2976 = vmatprep.subr.mxu0 0.0
    %2977 = vmatpush1.msra.mxu0 0.0
    %2978 = vmatprep.subr.mxu0 0.0
    %2979 = vmatpush1.msra.mxu0 0.0
    %2980 = vmatprep.subr.mxu0 0.0
    %2981 = vmatpush1.msra.mxu0 0.0
    %2982 = vmatprep.subr.mxu0 0.0
    %2983 = vmatpush1.msra.mxu0 0.0
    %2984 = vmatprep.subr.mxu0 %v212
    %2985 = vmatpush1.msra.mxu0 %v211
    %2986 = vmatprep.subr.mxu0 %v210
    %2987 = vmatpush1.msra.mxu0 %v209
    %2988 = vmatprep.subr.mxu0 0.0
    %2989 = vmatpush2.msra.mxu0 0.0
    %2990 = vmatprep.subr.mxu0 0.0
    %2991 = vmatpush2.msra.mxu0 0.0
    %2992 = vmatprep.subr.mxu0 0.0
    %2993 = vmatpush2.msra.mxu0 0.0
    %2994 = vmatprep.subr.mxu0 0.0
    %2995 = vmatpush2.msra.mxu0 0.0
    %2996 = vmatprep.subr.mxu0 0.0
    %2997 = vmatpush2.msra.mxu0 0.0
    %2998 = vmatprep.subr.mxu0 0.0
    %2999 = vmatpush2.msra.mxu0 0.0
    %3000 = vmatprep.subr.mxu0 0.0
    %3001 = vmatpush2.msra.mxu0 0.0
    %3002 = vmatprep.subr.mxu0 0.0
    %3003 = vmatpush2.msra.mxu0 0.0
    %3004 = vmatprep.subr.mxu0 0.0
    %3005 = vmatpush2.msra.mxu0 0.0
    %3006 = vmatprep.subr.mxu0 0.0
    %3007 = vmatpush2.msra.mxu0 0.0
    %3008 = vmatprep.subr.mxu0 0.0
    %3009 = vmatpush2.msra.mxu0 0.0
    %3010 = vmatprep.subr.mxu0 0.0
    %3011 = vmatpush2.msra.mxu0 0.0
    %3012 = vmatprep.subr.mxu0 0.0
    %3013 = vmatpush2.msra.mxu0 0.0
    %3014 = vmatprep.subr.mxu0 0.0
    %3015 = vmatpush2.msra.mxu0 0.0
    %3016 = vmatprep.subr.mxu0 0.0
    %3017 = vmatpush2.msra.mxu0 0.0
    %3018 = vmatprep.subr.mxu0 0.0
    %3019 = vmatpush2.msra.mxu0 0.0
    %3020 = vmatprep.mubr.f32.mxu0 0.0
    %3021 = vmatmul.mubr.f32.gmra.mxu0 %v2954
    %v3022 = vpop.f32.mrf.mxu0
    %v3023 = vadd.f32 %v371, %v3022
    %v3024 = vpop.f32.mrf.mxu0
    %v3025 = vadd.f32 %v375, %v3024
    %3026 = vdwg.mxu0
    %v3027 = vmax.f32 %v3023, 0.0
    %v3028 = vmax.f32 %v3025, 0.0
    %v3031 = vcombine.low %v3027, %v3028
    %v3033 = vunpack.c.l.s4 1966171168
    %v3034 = vunpack.c.0.s8 %v3033
    %v3035 = vlaneseq
    %v3036 = vshrl.u32 %v3035, 7
    %v3037 = vsub.s32 %v3034, %v3036
    %v3038 = vrot.slane %v3031, %v3037
    %v3039 = vcombine.high %v3038, %v3038
    %v3041 = vunpack.c.l.s4 1966171168
    %v3042 = vunpack.c.0.s8 %v3041
    %v3043 = vlaneseq
    %v3044 = vshrl.u32 %v3043, 7
    %v3045 = vsub.s32 %v3042, %v3044
    %v3046 = vrot.slane %v3038, %v3045
    %v3048 = vunpack.c.l.s4 1966171168
    %v3049 = vunpack.c.0.s8 %v3048
    %v3050 = vlaneseq
    %v3051 = vshrl.u32 %v3050, 7
    %v3052 = vsub.s32 %v3049, %v3051
    %v3053 = vrot.slane %v3039, %v3052
    %s3056 = scalar_lea.vmem %s8, 18
    %3057 = vst.msk [vmem:[%s3056] ss:$8 sm:$0x3] %vm486, %v3046
    %3058 = vst.msk [vmem:[%s3056] ss:$8 sm:$0x0] %vm486, %v3046
    %s3059 = scalar_lea.vmem %s8, 50
    %3060 = vst.msk [vmem:[%s3059] ss:$8 sm:$0x3] %vm486, %v3053
    %3061 = vst.msk [vmem:[%s3059] ss:$8 sm:$0x0] %vm486, %v3053
    %v3062 = vsel %vm133, %v2908, 0
    %3064 = vmatprep.subr.mxu0 0.0
    %3065 = vmatpush1.msra.mxu0 0.0
    %3066 = vmatprep.subr.mxu0 0.0
    %3067 = vmatpush1.msra.mxu0 0.0
    %3068 = vmatprep.subr.mxu0 0.0
    %3069 = vmatpush1.msra.mxu0 0.0
    %3070 = vmatprep.subr.mxu0 0.0
    %3071 = vmatpush1.msra.mxu0 0.0
    %3072 = vmatprep.subr.mxu0 0.0
    %3073 = vmatpush1.msra.mxu0 0.0
    %3074 = vmatprep.subr.mxu0 0.0
    %3075 = vmatpush1.msra.mxu0 0.0
    %3076 = vmatprep.subr.mxu0 0.0
    %3077 = vmatpush1.msra.mxu0 0.0
    %3078 = vmatprep.subr.mxu0 0.0
    %3079 = vmatpush1.msra.mxu0 0.0
    %3080 = vmatprep.subr.mxu0 0.0
    %3081 = vmatpush1.msra.mxu0 0.0
    %3082 = vmatprep.subr.mxu0 0.0
    %3083 = vmatpush1.msra.mxu0 0.0
    %3084 = vmatprep.subr.mxu0 0.0
    %3085 = vmatpush1.msra.mxu0 0.0
    %3086 = vmatprep.subr.mxu0 0.0
    %3087 = vmatpush1.msra.mxu0 0.0
    %3088 = vmatprep.subr.mxu0 0.0
    %3089 = vmatpush1.msra.mxu0 0.0
    %3090 = vmatprep.subr.mxu0 0.0
    %3091 = vmatpush1.msra.mxu0 0.0
    %3092 = vmatprep.subr.mxu0 0.0
    %3093 = vmatpush1.msra.mxu0 %v208
    %3094 = vmatprep.subr.mxu0 0.0
    %3095 = vmatpush1.msra.mxu0 %v207
    %3096 = vmatprep.subr.mxu0 0.0
    %3097 = vmatpush2.msra.mxu0 0.0
    %3098 = vmatprep.subr.mxu0 0.0
    %3099 = vmatpush2.msra.mxu0 0.0
    %3100 = vmatprep.subr.mxu0 0.0
    %3101 = vmatpush2.msra.mxu0 0.0
    %3102 = vmatprep.subr.mxu0 0.0
    %3103 = vmatpush2.msra.mxu0 0.0
    %3104 = vmatprep.subr.mxu0 0.0
    %3105 = vmatpush2.msra.mxu0 0.0
    %3106 = vmatprep.subr.mxu0 0.0
    %3107 = vmatpush2.msra.mxu0 0.0
    %3108 = vmatprep.subr.mxu0 0.0
    %3109 = vmatpush2.msra.mxu0 0.0
    %3110 = vmatprep.subr.mxu0 0.0
    %3111 = vmatpush2.msra.mxu0 0.0
    %3112 = vmatprep.subr.mxu0 0.0
    %3113 = vmatpush2.msra.mxu0 0.0
    %3114 = vmatprep.subr.mxu0 0.0
    %3115 = vmatpush2.msra.mxu0 0.0
    %3116 = vmatprep.subr.mxu0 0.0
    %3117 = vmatpush2.msra.mxu0 0.0
    %3118 = vmatprep.subr.mxu0 0.0
    %3119 = vmatpush2.msra.mxu0 0.0
    %3120 = vmatprep.subr.mxu0 0.0
    %3121 = vmatpush2.msra.mxu0 0.0
    %3122 = vmatprep.subr.mxu0 0.0
    %3123 = vmatpush2.msra.mxu0 0.0
    %3124 = vmatprep.subr.mxu0 0.0
    %3125 = vmatpush2.msra.mxu0 0.0
    %3126 = vmatprep.subr.mxu0 0.0
    %3127 = vmatpush2.msra.mxu0 0.0
    %3128 = vmatprep.mubr.f32.mxu0 0.0
    %3129 = vmatmul.mubr.f32.gmra.mxu0 %v3062
    %v3130 = vpop.f32.mrf.mxu0
    %v3131 = vadd.f32 %v217, %v3130
    %v3132 = vpop.f32.mrf.mxu0
    %3133 = vdwg.mxu0
    %v3134 = vadd.f32 %v204, %v3131
    %v3135 = vxor.u32 %v3134, 2147483648
    %v3136 = vmul.f32 %v3135, 1.442695
    %v3137 = vpow.pop %v3136
    %v3138 = vadd.f32 %v3137, 1.0
    %v3139 = vrcp.pop %v3138
    %v3140 = vmul.f32 1.0, %v3139
    %3142 = vrot.lane.b32.xlu0 %v3131, 96
    %v3143 = vpop.permute.xlu0 %3142
    %v3145 = vmul.f32 %v3140, %v3143
    %3147 = vrot.lane.b32.xlu0 %v3145, 32
    %v3148 = vpop.permute.xlu0 %3147
    %v3150 = vadd.f32 %v204, %v3148
    %v3151 = vtanh.pop %v3150
    %v3152 = vsub.f32 %v2905, %v3151
    %3154 = vrot.lane.b32.xlu0 %v3152, 112
    %v3155 = vpop.permute.xlu0 %3154
    %v3157 = vmul.f32 %v3140, %v3155
    %3159 = vrot.lane.b32.xlu0 %v3157, 16
    %v3160 = vpop.permute.xlu0 %3159
    %v3162 = vadd.f32 %v3151, %v3160
    %3164 = vrot.lane.b32.xlu0 %v3162, 96
    %v3165 = vpop.permute.xlu0 %3164
    %v3167 = vsel %vm324, %v3165, 0.0
    %3168 = vadd.xlane.f32.xlu0 %v3167
    %v3169 = vpop.xlane.xlu0 %3168
    %v3170 = vrot.slane %v3169, 4
    %v3171 = vadd.f32 %v3169, %v3170
    %v3172 = vrot.slane %v3171, 2
    %v3173 = vadd.f32 %v3171, %v3172
    %v3174 = vrot.slane %v3173, 1
    %v3175 = vadd.f32 %v3173, %v3174
    %s3176 = vtos %v3175
    %v3177 = vstv %s3176
    %v3178 = vmul.f32 %v3177, %v336
    %v3179 = vsub.f32 %v3162, %v3178
    %v3180 = vmul.f32 %v3179, %v3179
    %3182 = vrot.lane.b32.xlu0 %v3180, 96
    %v3183 = vpop.permute.xlu0 %3182
    %v3185 = vsel %vm324, %v3183, 0.0
    %3186 = vadd.xlane.f32.xlu0 %v3185
    %v3187 = vpop.xlane.xlu0 %3186
    %v3188 = vrot.slane %v3187, 4
    %v3189 = vadd.f32 %v3187, %v3188
    %v3190 = vrot.slane %v3189, 2
    %v3191 = vadd.f32 %v3189, %v3190
    %v3192 = vrot.slane %v3191, 1
    %v3193 = vadd.f32 %v3191, %v3192
    %s3194 = vtos %v3193
    %v3195 = vstv %s3194
    %v3196 = vmul.f32 %v3195, %v336
    %v3197 = vadd.f32 %v3196, 1e-05
    %v3198 = vrsqrt.pop %v3197
    %s3199 = sld [smem:[#allocation2 + $0xb]]
    %v3200 = vstv %s3199
    %v3201 = vmul.f32 %v3198, %v3200
    %s3202 = sld [smem:[#allocation2 + $0x8b]]
    %v3203 = vmul.f32 %v3178, %v3201
    %v3204 = vstv %s3202
    %v3205 = vsub.f32 %v3204, %v3203
    %v3206 = vmul.f32 %v3162, %v3201
    %v3207 = vadd.f32 %v3206, %v3205
    %3209 = vrot.lane.b32.xlu0 %v3207, 96
    %v3210 = vpop.permute.xlu0 %3209
    %v3211 = vsel %vm133, %v3210, 0
    %3213 = vmatprep.subr.mxu0 0.0
    %3214 = vmatpush1.msra.mxu0 0.0
    %3215 = vmatprep.subr.mxu0 0.0
    %3216 = vmatpush1.msra.mxu0 0.0
    %3217 = vmatprep.subr.mxu0 0.0
    %3218 = vmatpush1.msra.mxu0 0.0
    %3219 = vmatprep.subr.mxu0 0.0
    %3220 = vmatpush1.msra.mxu0 0.0
    %3221 = vmatprep.subr.mxu0 0.0
    %3222 = vmatpush1.msra.mxu0 0.0
    %3223 = vmatprep.subr.mxu0 0.0
    %3224 = vmatpush1.msra.mxu0 0.0
    %3225 = vmatprep.subr.mxu0 0.0
    %3226 = vmatpush1.msra.mxu0 0.0
    %3227 = vmatprep.subr.mxu0 0.0
    %3228 = vmatpush1.msra.mxu0 0.0
    %3229 = vmatprep.subr.mxu0 0.0
    %3230 = vmatpush1.msra.mxu0 0.0
    %3231 = vmatprep.subr.mxu0 0.0
    %3232 = vmatpush1.msra.mxu0 0.0
    %3233 = vmatprep.subr.mxu0 0.0
    %3234 = vmatpush1.msra.mxu0 0.0
    %3235 = vmatprep.subr.mxu0 0.0
    %3236 = vmatpush1.msra.mxu0 0.0
    %3237 = vmatprep.subr.mxu0 0.0
    %3238 = vmatpush1.msra.mxu0 0.0
    %3239 = vmatprep.subr.mxu0 0.0
    %3240 = vmatpush1.msra.mxu0 0.0
    %3241 = vmatprep.subr.mxu0 %v212
    %3242 = vmatpush1.msra.mxu0 %v211
    %3243 = vmatprep.subr.mxu0 %v210
    %3244 = vmatpush1.msra.mxu0 %v209
    %3245 = vmatprep.subr.mxu0 0.0
    %3246 = vmatpush2.msra.mxu0 0.0
    %3247 = vmatprep.subr.mxu0 0.0
    %3248 = vmatpush2.msra.mxu0 0.0
    %3249 = vmatprep.subr.mxu0 0.0
    %3250 = vmatpush2.msra.mxu0 0.0
    %3251 = vmatprep.subr.mxu0 0.0
    %3252 = vmatpush2.msra.mxu0 0.0
    %3253 = vmatprep.subr.mxu0 0.0
    %3254 = vmatpush2.msra.mxu0 0.0
    %3255 = vmatprep.subr.mxu0 0.0
    %3256 = vmatpush2.msra.mxu0 0.0
    %3257 = vmatprep.subr.mxu0 0.0
    %3258 = vmatpush2.msra.mxu0 0.0
    %3259 = vmatprep.subr.mxu0 0.0
    %3260 = vmatpush2.msra.mxu0 0.0
    %3261 = vmatprep.subr.mxu0 0.0
    %3262 = vmatpush2.msra.mxu0 0.0
    %3263 = vmatprep.subr.mxu0 0.0
    %3264 = vmatpush2.msra.mxu0 0.0
    %3265 = vmatprep.subr.mxu0 0.0
    %3266 = vmatpush2.msra.mxu0 0.0
    %3267 = vmatprep.subr.mxu0 0.0
    %3268 = vmatpush2.msra.mxu0 0.0
    %3269 = vmatprep.subr.mxu0 0.0
    %3270 = vmatpush2.msra.mxu0 0.0
    %3271 = vmatprep.subr.mxu0 0.0
    %3272 = vmatpush2.msra.mxu0 0.0
    %3273 = vmatprep.subr.mxu0 0.0
    %3274 = vmatpush2.msra.mxu0 0.0
    %3275 = vmatprep.subr.mxu0 0.0
    %3276 = vmatpush2.msra.mxu0 0.0
    %3277 = vmatprep.mubr.f32.mxu0 0.0
    %3278 = vmatmul.mubr.f32.gmra.mxu0 %v3211
    %v3279 = vpop.f32.mrf.mxu0
    %v3280 = vadd.f32 %v371, %v3279
    %v3281 = vpop.f32.mrf.mxu0
    %v3282 = vadd.f32 %v375, %v3281
    %3283 = vdwg.mxu0
    %v3284 = vmax.f32 %v3280, 0.0
    %v3285 = vmax.f32 %v3282, 0.0
    %v3288 = vcombine.low %v3284, %v3285
    %v3290 = vunpack.c.l.s4 1966171168
    %v3291 = vunpack.c.0.s8 %v3290
    %v3292 = vlaneseq
    %v3293 = vshrl.u32 %v3292, 7
    %v3294 = vsub.s32 %v3291, %v3293
    %v3295 = vrot.slane %v3288, %v3294
    %v3296 = vcombine.high %v3295, %v3295
    %v3298 = vunpack.c.l.s4 1966171168
    %v3299 = vunpack.c.0.s8 %v3298
    %v3300 = vlaneseq
    %v3301 = vshrl.u32 %v3300, 7
    %v3302 = vsub.s32 %v3299, %v3301
    %v3303 = vrot.slane %v3295, %v3302
    %v3305 = vunpack.c.l.s4 1966171168
    %v3306 = vunpack.c.0.s8 %v3305
    %v3307 = vlaneseq
    %v3308 = vshrl.u32 %v3307, 7
    %v3309 = vsub.s32 %v3306, %v3308
    %v3310 = vrot.slane %v3296, %v3309
    %s3313 = scalar_lea.vmem %s8, 19
    %3314 = vst.msk [vmem:[%s3313] ss:$8 sm:$0x3] %vm486, %v3303
    %3315 = vst.msk [vmem:[%s3313] ss:$8 sm:$0x0] %vm486, %v3303
    %s3316 = scalar_lea.vmem %s8, 51
    %3317 = vst.msk [vmem:[%s3316] ss:$8 sm:$0x3] %vm486, %v3310
    %3318 = vst.msk [vmem:[%s3316] ss:$8 sm:$0x0] %vm486, %v3310
    // Predicated region
    $region38: #{timeseries_decoder_forward.1} parent=1 // pred_check
      _
    $region39: #{timeseries_decoder_forward.1} parent=1 // pred_check_branch
      %3320 = sbr.rel (0) target = $region41
    $region40: #{timeseries_decoder_forward.1} parent=1 // pred_region
      _
    $region41: #{timeseries_decoder_forward.1} parent=1 // pred_fallthru
      _
    // Predicated region
    $region42: #{timeseries_decoder_forward.1} parent=1 // pred_check
      _
    $region43: #{timeseries_decoder_forward.1} parent=1 // pred_check_branch
      %3322 = sbr.rel (0) target = $region45
    $region44: #{timeseries_decoder_forward.1} parent=1 // pred_region
      _
    $region45: #{timeseries_decoder_forward.1} parent=1 // pred_fallthru
      _
    %3323 = vsyncpa [#allocation3], 1

</llo_original>
